<compile_context>
chip_gen: v5e
topology: v5e:2x2
jax: 0.10.0
libtpu: 0.0.40
codegen_flags: <defaults>
</compile_context>

<pallas_src>
import functools

import numpy as np
import jax
import jax.numpy as jnp
from jax.experimental import pallas as pl
from jax.experimental.pallas import tpu as pltpu


def _round_up(x, m):
    return ((x + m - 1) // m) * m


def _tree_gru_kernel(last_h_ref, type_f_ref, parent_f_ref, mem_ref,
                     wq_h_ref, wq_t_ref, bq_ref,
                     w_ih_ref, b_ih_ref, w_hh_ref, b_hh_ref,
                     out_ref, *, n_tokens):
    H = out_ref.shape[-1]

    # ---- attention query: Linear(cat(last_hidden, type_feats)) on the MXU ----
    # cat @ Wq == last_hidden @ Wq[:H] + type_feats @ Wq[H:]   (bf16 in, f32 acc)
    q = (jnp.dot(last_h_ref[...], wq_h_ref[...], preferred_element_type=jnp.float32)
         + jnp.dot(type_f_ref[...], wq_t_ref[...], preferred_element_type=jnp.float32)
         + bq_ref[...])                                          # (bB, H) f32

    # ---- dot-product attention over S memory tokens: VPU mul + lane reduce ----
    # (A batched dot_general here degenerates into ~bB tiny MXU ops; the
    #  per-token elementwise form keeps it on the VPU/XLU.  S is small+static.)
    score_cols = []
    for s in range(n_tokens):
        mem_s = mem_ref[:, s, :].astype(jnp.float32)             # (bB, H)
        score_cols.append(jnp.sum(q * mem_s, axis=-1, keepdims=True))
    scores = jnp.concatenate(score_cols, axis=-1)                # (bB, S) f32

    m = jnp.max(scores, axis=-1, keepdims=True)
    e = jnp.exp(scores - m)
    attn_w = e / jnp.sum(e, axis=-1, keepdims=True)              # exact softmax

    attn = jnp.zeros_like(q)                                     # (bB, H) f32
    for s in range(n_tokens):
        mem_s = mem_ref[:, s, :].astype(jnp.float32)
        attn = attn + attn_w[:, s:s + 1] * mem_s

    # ---- GRUCell(parent_node_features, attn): two fused (., 3H) matmuls ----
    gi = (jnp.dot(parent_f_ref[...], w_ih_ref[...],
                  preferred_element_type=jnp.float32) + b_ih_ref[...])   # (bB, 3H)
    gh = (jnp.dot(attn.astype(w_hh_ref.dtype), w_hh_ref[...],
                  preferred_element_type=jnp.float32) + b_hh_ref[...])   # (bB, 3H)

    rz = jax.nn.sigmoid(gi[:, :2 * H] + gh[:, :2 * H])           # r|z in one vreg
    r = rz[:, :H]
    z = rz[:, H:]
    n = jnp.tanh(gi[:, 2 * H:] + r * gh[:, 2 * H:])              # b_hn stays inside r*(...)
    out_ref[...] = ((1.0 - z) * n + z * attn).astype(out_ref.dtype)


def tree_rnn_cell_gru(last_hidden, type_feats, parent_feats, memory_tokens,
                      params, *, block_b=128):
    """Batched TreeRNNCellGRU forward. Returns (out, out) like the PyTorch module."""
    B, H = last_hidden.shape
    E = type_feats.shape[1]
    S = memory_tokens.shape[1]

    # Batch block: multiple of 8 sublanes, capped at block_b.
    # v5e/v6e: raise block_b toward the whole batch (1 TC, 128 MiB VMEM).
    # v7x: keep the grid length >= 2 so ("parallel",) shards across both TCs.
    bB = min(block_b, _round_up(B, 8))
    Bp = _round_up(B, bB)

    # bf16 storage for matmul operands and the dominant-traffic memory tokens;
    # all accumulation / elementwise math stays f32 inside the kernel.
    lh = last_hidden.astype(jnp.bfloat16)
    tf = type_feats.astype(jnp.bfloat16)
    pf = parent_feats.astype(jnp.bfloat16)
    mt = memory_tokens.astype(jnp.bfloat16)
    if Bp != B:
        pad = Bp - B
        lh = jnp.pad(lh, ((0, pad), (0, 0)))
        tf = jnp.pad(tf, ((0, pad), (0, 0)))
        pf = jnp.pad(pf, ((0, pad), (0, 0)))
        mt = jnp.pad(mt, ((0, pad), (0, 0), (0, 0)))

    const2 = lambda i: (0, 0)
    in_specs = [
        pl.BlockSpec((bB, H), lambda i: (i, 0)),          # last_hidden
        pl.BlockSpec((bB, E), lambda i: (i, 0)),          # type feats
        pl.BlockSpec((bB, E), lambda i: (i, 0)),          # parent feats
        pl.BlockSpec((bB, S, H), lambda i: (i, 0, 0)),    # memory tokens (per-block tile)
        pl.BlockSpec((H, H), const2),                     # wq_h   (resident)
        pl.BlockSpec((E, H), const2),                     # wq_t   (resident)
        pl.BlockSpec((1, H), const2),                     # bq     (resident)
        pl.BlockSpec((E, 3 * H), const2),                 # w_ih  (r|z|n along N)
        pl.BlockSpec((1, 3 * H), const2),                 # b_ih
        pl.BlockSpec((H, 3 * H), const2),                 # w_hh  (r|z|n along N)
        pl.BlockSpec((1, 3 * H), const2),                 # b_hh
    ]

    # Advisory cost hint for XLA's scheduler.
    flops = int(Bp * (2 * (H + E) * H + 4 * S * H + 2 * (E + H) * 3 * H))
    transcendentals = int(Bp * (S + 3 * H))
    bytes_accessed = int(
        Bp * (H + 2 * E + S * H) * 2              # bf16 activations + memory tokens in
        + Bp * H * 4                              # f32 output
        + ((H + E) * H + (E + H) * 3 * H) * 2     # bf16 weights (resident)
        + (H + 2 * 3 * H) * 4)                    # f32 biases

    kernel = functools.partial(_tree_gru_kernel, n_tokens=S)

    out = pl.pallas_call(
        kernel,
        out_shape=jax.ShapeDtypeStruct((Bp, H), jnp.float32),
        grid=(Bp // bB,),
        in_specs=in_specs,
        out_specs=pl.BlockSpec((bB, H), lambda i: (i, 0)),
        compiler_params=pltpu.CompilerParams(
            dimension_semantics=("parallel",)),
        cost_estimate=pl.CostEstimate(flops=flops,
                                      transcendentals=transcendentals,
                                      bytes_accessed=bytes_accessed),
    )(lh, tf, pf, mt,
      params["wq_h"], params["wq_t"], params["bq"],
      params["w_ih"], params["b_ih"], params["w_hh"], params["b_hh"])

    out = out[:B]
    # forward returns (out, out): prediction features and next hidden state
    return out, out


def _reference(last_hidden, type_feats, parent_feats, memory_tokens, flat_params):
    """Pure-JAX reference mirroring the PyTorch forward (eval mode) at the same
    precision policy as the kernel: bf16 matmul operands, f32 accumulation."""
    f32 = jnp.float32
    hi = jax.lax.Precision.HIGHEST
    bf = lambda x: x.astype(jnp.bfloat16).astype(f32)
    H = last_hidden.shape[1]

    cat = jnp.concatenate([bf(last_hidden), bf(type_feats)], axis=1)
    q = jnp.dot(cat, bf(flat_params["wq"]), precision=hi) + flat_params["bq"]

    mem = bf(memory_tokens)
    scores = jnp.einsum('bh,bsh->bs', q, mem, precision=hi)
    w = jax.nn.softmax(scores, axis=-1)
    attn = jnp.einsum('bs,bsh->bh', w, mem, precision=hi)

    gi = jnp.dot(bf(parent_feats), bf(flat_params["w_ih"]), precision=hi) + flat_params["b_ih"]
    gh = jnp.dot(bf(attn), bf(flat_params["w_hh"]), precision=hi) + flat_params["b_hh"]
    i_r, i_z, i_n = gi[:, :H], gi[:, H:2 * H], gi[:, 2 * H:]
    h_r, h_z, h_n = gh[:, :H], gh[:, H:2 * H], gh[:, 2 * H:]
    r = jax.nn.sigmoid(i_r + h_r)
    z = jax.nn.sigmoid(i_z + h_z)
    n = jnp.tanh(i_n + r * h_n)
    return (1.0 - z) * n + z * attn


if __name__ == "__main__":
    key = jax.random.PRNGKey(0)
    # One "tree level" worth of nodes is batched into a single call.
    B, S = 256, 8            # nodes in the frontier, number of memory tokens
    H = 32                   # hidden_size
    E = H // 2               # ast_node_embed_size (cat dim = 1.5 * H)

    ks = jax.random.split(key, 12)

    # PyTorch-module shaped params, stored (in_features, out_features):
    #   attn_query_lin: Linear(1.5H -> H); GRUCell(E -> H): (E,3H) / (H,3H),
    #   gate order r|z|n as in torch.nn.GRUCell.
    wq_full = 0.1 * jax.random.normal(ks[0], (H + E, H), jnp.float32)
    bq = 0.1 * jax.random.normal(ks[1], (1, H), jnp.float32)
    w_ih = 0.1 * jax.random.normal(ks[2], (E, 3 * H), jnp.float32)
    b_ih = 0.1 * jax.random.normal(ks[3], (1, 3 * H), jnp.float32)
    w_hh = 0.1 * jax.random.normal(ks[4], (H, 3 * H), jnp.float32)
    b_hh = 0.1 * jax.random.normal(ks[5], (1, 3 * H), jnp.float32)

    # Kernel-friendly layout: split query weight, bf16 matmul operands,
    # f32 biases (added after the f32 accumulation).
    params = dict(
        wq_h=wq_full[:H, :].astype(jnp.bfloat16),      # (H, H)
        wq_t=wq_full[H:, :].astype(jnp.bfloat16),      # (E, H)
        bq=bq,                                         # (1, H)  f32
        w_ih=w_ih.astype(jnp.bfloat16),                # (E, 3H)
        b_ih=b_ih,                                     # (1, 3H) f32
        w_hh=w_hh.astype(jnp.bfloat16),                # (H, 3H)
        b_hh=b_hh,                                     # (1, 3H) f32
    )
    flat_params = dict(wq=wq_full, bq=bq, w_ih=w_ih, b_ih=b_ih, w_hh=w_hh, b_hh=b_hh)

    # root_node_features (unused: parent_node_features passed explicitly)
    _root_node_features = jax.random.uniform(ks[6], (H,), jnp.float32)

    # Deterministic example inputs.
    last_hidden = jax.random.normal(ks[7], (B, H), jnp.float32)
    type_feats = jax.random.normal(ks[8], (B, E), jnp.float32)
    parent_feats = jax.random.normal(ks[9], (B, E), jnp.float32)
    memory_tokens = jax.random.normal(ks[10], (B, S, H), jnp.float32)

    out, state = jax.jit(tree_rnn_cell_gru)(
        last_hidden, type_feats, parent_feats, memory_tokens, params)
    out = jax.block_until_ready(out)

    ref = _reference(last_hidden, type_feats, parent_feats, memory_tokens, flat_params)
    assert out.shape == (B, H)
    assert np.allclose(np.asarray(out), np.asarray(ref), atol=2e-3, rtol=2e-3)

    print("KERNEL_OK")
</pallas_src>

<mosaic_0001>
module attributes {stable_mosaic.version = 11 : i64} {
  func.func @_tree_gru_kernel(%arg0: i32, %arg1: memref<128x32xbf16, #tpu.memory_space<vmem>>, %arg2: memref<128x16xbf16, #tpu.memory_space<vmem>>, %arg3: memref<128x16xbf16, #tpu.memory_space<vmem>>, %arg4: memref<128x8x32xbf16, #tpu.memory_space<vmem>>, %arg5: memref<32x32xbf16, #tpu.memory_space<vmem>>, %arg6: memref<16x32xbf16, #tpu.memory_space<vmem>>, %arg7: memref<1x32xf32, #tpu.memory_space<vmem>>, %arg8: memref<16x96xbf16, #tpu.memory_space<vmem>>, %arg9: memref<1x96xf32, #tpu.memory_space<vmem>>, %arg10: memref<32x96xbf16, #tpu.memory_space<vmem>>, %arg11: memref<1x96xf32, #tpu.memory_space<vmem>>, %arg12: memref<128x32xf32, #tpu.memory_space<vmem>>) attributes {dimension_semantics = [#tpu.dimension_semantics<parallel>], iteration_bounds = array<i64: 2>, scalar_prefetch = 0 : i64, scratch_operands = 0 : i64, tpu.core_type = #tpu.core_type<tc>, window_params = [{transform_indices = @transform_0, window_bounds = array<i64: 128, 32>}, {transform_indices = @transform_1, window_bounds = array<i64: 128, 16>}, {transform_indices = @transform_2, window_bounds = array<i64: 128, 16>}, {transform_indices = @transform_3, window_bounds = array<i64: 128, 8, 32>}, {pipeline_mode = #tpu.pipeline_mode<synchronous>, transform_indices = @transform_4, window_bounds = array<i64: 32, 32>}, {pipeline_mode = #tpu.pipeline_mode<synchronous>, transform_indices = @transform_5, window_bounds = array<i64: 16, 32>}, {pipeline_mode = #tpu.pipeline_mode<synchronous>, transform_indices = @transform_6, window_bounds = array<i64: 1, 32>}, {pipeline_mode = #tpu.pipeline_mode<synchronous>, transform_indices = @transform_7, window_bounds = array<i64: 16, 96>}, {pipeline_mode = #tpu.pipeline_mode<synchronous>, transform_indices = @transform_8, window_bounds = array<i64: 1, 96>}, {pipeline_mode = #tpu.pipeline_mode<synchronous>, transform_indices = @transform_9, window_bounds = array<i64: 32, 96>}, {pipeline_mode = #tpu.pipeline_mode<synchronous>, transform_indices = @transform_10, window_bounds = array<i64: 1, 96>}, {transform_indices = @transform_11, window_bounds = array<i64: 128, 32>}]} {
    %c0 = arith.constant 0 : index
    %c0_0 = arith.constant 0 : index
    %0 = vector.load %arg1[%c0, %c0_0] : memref<128x32xbf16, #tpu.memory_space<vmem>>, vector<128x32xbf16>
    %c0_1 = arith.constant 0 : index
    %c0_2 = arith.constant 0 : index
    %1 = vector.load %arg5[%c0_1, %c0_2] : memref<32x32xbf16, #tpu.memory_space<vmem>>, vector<32x32xbf16>
    %cst = arith.constant dense<0.000000e+00> : vector<128x32xf32>
    %2 = tpu.matmul %0, %1, %cst {dimension_numbers = #tpu.dot_dimension_numbers<[1], [0], [0], [1], [0, 0, 1, 1], [], []>} : vector<128x32xbf16>, vector<32x32xbf16>, vector<128x32xf32> -> vector<128x32xf32>
    %c0_3 = arith.constant 0 : index
    %c0_4 = arith.constant 0 : index
    %3 = vector.load %arg2[%c0_3, %c0_4] : memref<128x16xbf16, #tpu.memory_space<vmem>>, vector<128x16xbf16>
    %c0_5 = arith.constant 0 : index
    %c0_6 = arith.constant 0 : index
    %4 = vector.load %arg6[%c0_5, %c0_6] : memref<16x32xbf16, #tpu.memory_space<vmem>>, vector<16x32xbf16>
    %cst_7 = arith.constant dense<0.000000e+00> : vector<128x32xf32>
    %5 = tpu.matmul %3, %4, %cst_7 {dimension_numbers = #tpu.dot_dimension_numbers<[1], [0], [0], [1], [0, 0, 1, 1], [], []>} : vector<128x16xbf16>, vector<16x32xbf16>, vector<128x32xf32> -> vector<128x32xf32>
    %6 = arith.addf %2, %5 : vector<128x32xf32>
    %c0_8 = arith.constant 0 : index
    %c0_9 = arith.constant 0 : index
    %7 = vector.load %arg7[%c0_8, %c0_9] : memref<1x32xf32, #tpu.memory_space<vmem>>, vector<1x32xf32>
    %8 = vector.broadcast %7 : vector<1x32xf32> to vector<128x32xf32>
    %9 = arith.addf %6, %8 : vector<128x32xf32>
    %c0_10 = arith.constant 0 : index
    %c0_11 = arith.constant 0 : index
    %c0_12 = arith.constant 0 : index
    %10 = vector.load %arg4[%c0_10, %c0_11, %c0_12] : memref<128x8x32xbf16, #tpu.memory_space<vmem>>, vector<128x1x32xbf16>
    %11 = vector.shape_cast %10 : vector<128x1x32xbf16> to vector<128x32xbf16>
    %12 = arith.extf %11 : vector<128x32xbf16> to vector<128x32xf32>
    %13 = arith.mulf %9, %12 : vector<128x32xf32>
    %cst_13 = arith.constant dense<0.000000e+00> : vector<128xf32>
    %14 = vector.multi_reduction <add>, %13, %cst_13 [1] : vector<128x32xf32> to vector<128xf32>
    %15 = vector.shape_cast %14 : vector<128xf32> to vector<128x1xf32>
    %c0_14 = arith.constant 0 : index
    %c1 = arith.constant 1 : index
    %c0_15 = arith.constant 0 : index
    %16 = vector.load %arg4[%c0_14, %c1, %c0_15] : memref<128x8x32xbf16, #tpu.memory_space<vmem>>, vector<128x1x32xbf16>
    %17 = vector.shape_cast %16 : vector<128x1x32xbf16> to vector<128x32xbf16>
    %18 = arith.extf %17 : vector<128x32xbf16> to vector<128x32xf32>
    %19 = arith.mulf %9, %18 : vector<128x32xf32>
    %cst_16 = arith.constant dense<0.000000e+00> : vector<128xf32>
    %20 = vector.multi_reduction <add>, %19, %cst_16 [1] : vector<128x32xf32> to vector<128xf32>
    %21 = vector.shape_cast %20 : vector<128xf32> to vector<128x1xf32>
    %c0_17 = arith.constant 0 : index
    %c2 = arith.constant 2 : index
    %c0_18 = arith.constant 0 : index
    %22 = vector.load %arg4[%c0_17, %c2, %c0_18] : memref<128x8x32xbf16, #tpu.memory_space<vmem>>, vector<128x1x32xbf16>
    %23 = vector.shape_cast %22 : vector<128x1x32xbf16> to vector<128x32xbf16>
    %24 = arith.extf %23 : vector<128x32xbf16> to vector<128x32xf32>
    %25 = arith.mulf %9, %24 : vector<128x32xf32>
    %cst_19 = arith.constant dense<0.000000e+00> : vector<128xf32>
    %26 = vector.multi_reduction <add>, %25, %cst_19 [1] : vector<128x32xf32> to vector<128xf32>
    %27 = vector.shape_cast %26 : vector<128xf32> to vector<128x1xf32>
    %c0_20 = arith.constant 0 : index
    %c3 = arith.constant 3 : index
    %c0_21 = arith.constant 0 : index
    %28 = vector.load %arg4[%c0_20, %c3, %c0_21] : memref<128x8x32xbf16, #tpu.memory_space<vmem>>, vector<128x1x32xbf16>
    %29 = vector.shape_cast %28 : vector<128x1x32xbf16> to vector<128x32xbf16>
    %30 = arith.extf %29 : vector<128x32xbf16> to vector<128x32xf32>
    %31 = arith.mulf %9, %30 : vector<128x32xf32>
    %cst_22 = arith.constant dense<0.000000e+00> : vector<128xf32>
    %32 = vector.multi_reduction <add>, %31, %cst_22 [1] : vector<128x32xf32> to vector<128xf32>
    %33 = vector.shape_cast %32 : vector<128xf32> to vector<128x1xf32>
    %c0_23 = arith.constant 0 : index
    %c4 = arith.constant 4 : index
    %c0_24 = arith.constant 0 : index
    %34 = vector.load %arg4[%c0_23, %c4, %c0_24] : memref<128x8x32xbf16, #tpu.memory_space<vmem>>, vector<128x1x32xbf16>
    %35 = vector.shape_cast %34 : vector<128x1x32xbf16> to vector<128x32xbf16>
    %36 = arith.extf %35 : vector<128x32xbf16> to vector<128x32xf32>
    %37 = arith.mulf %9, %36 : vector<128x32xf32>
    %cst_25 = arith.constant dense<0.000000e+00> : vector<128xf32>
    %38 = vector.multi_reduction <add>, %37, %cst_25 [1] : vector<128x32xf32> to vector<128xf32>
    %39 = vector.shape_cast %38 : vector<128xf32> to vector<128x1xf32>
    %c0_26 = arith.constant 0 : index
    %c5 = arith.constant 5 : index
    %c0_27 = arith.constant 0 : index
    %40 = vector.load %arg4[%c0_26, %c5, %c0_27] : memref<128x8x32xbf16, #tpu.memory_space<vmem>>, vector<128x1x32xbf16>
    %41 = vector.shape_cast %40 : vector<128x1x32xbf16> to vector<128x32xbf16>
    %42 = arith.extf %41 : vector<128x32xbf16> to vector<128x32xf32>
    %43 = arith.mulf %9, %42 : vector<128x32xf32>
    %cst_28 = arith.constant dense<0.000000e+00> : vector<128xf32>
    %44 = vector.multi_reduction <add>, %43, %cst_28 [1] : vector<128x32xf32> to vector<128xf32>
    %45 = vector.shape_cast %44 : vector<128xf32> to vector<128x1xf32>
    %c0_29 = arith.constant 0 : index
    %c6 = arith.constant 6 : index
    %c0_30 = arith.constant 0 : index
    %46 = vector.load %arg4[%c0_29, %c6, %c0_30] : memref<128x8x32xbf16, #tpu.memory_space<vmem>>, vector<128x1x32xbf16>
    %47 = vector.shape_cast %46 : vector<128x1x32xbf16> to vector<128x32xbf16>
    %48 = arith.extf %47 : vector<128x32xbf16> to vector<128x32xf32>
    %49 = arith.mulf %9, %48 : vector<128x32xf32>
    %cst_31 = arith.constant dense<0.000000e+00> : vector<128xf32>
    %50 = vector.multi_reduction <add>, %49, %cst_31 [1] : vector<128x32xf32> to vector<128xf32>
    %51 = vector.shape_cast %50 : vector<128xf32> to vector<128x1xf32>
    %c0_32 = arith.constant 0 : index
    %c7 = arith.constant 7 : index
    %c0_33 = arith.constant 0 : index
    %52 = vector.load %arg4[%c0_32, %c7, %c0_33] : memref<128x8x32xbf16, #tpu.memory_space<vmem>>, vector<128x1x32xbf16>
    %53 = vector.shape_cast %52 : vector<128x1x32xbf16> to vector<128x32xbf16>
    %54 = arith.extf %53 : vector<128x32xbf16> to vector<128x32xf32>
    %55 = arith.mulf %9, %54 : vector<128x32xf32>
    %cst_34 = arith.constant dense<0.000000e+00> : vector<128xf32>
    %56 = vector.multi_reduction <add>, %55, %cst_34 [1] : vector<128x32xf32> to vector<128xf32>
    %57 = vector.shape_cast %56 : vector<128xf32> to vector<128x1xf32>
    %58 = tpu.concatenate %15, %21, %27, %33, %39, %45, %51, %57 in 1 : vector<128x1xf32>, vector<128x1xf32>, vector<128x1xf32>, vector<128x1xf32>, vector<128x1xf32>, vector<128x1xf32>, vector<128x1xf32>, vector<128x1xf32> -> vector<128x8xf32>
    %cst_35 = arith.constant dense<0xFF800000> : vector<128xf32>
    %59 = vector.multi_reduction <maximumf>, %58, %cst_35 [1] : vector<128x8xf32> to vector<128xf32>
    %60 = vector.shape_cast %59 : vector<128xf32> to vector<128x1xf32>
    %61 = vector.broadcast %60 : vector<128x1xf32> to vector<128x8xf32>
    %62 = arith.subf %58, %61 : vector<128x8xf32>
    %63 = math.exp %62 : vector<128x8xf32>
    %cst_36 = arith.constant dense<0.000000e+00> : vector<128xf32>
    %64 = vector.multi_reduction <add>, %63, %cst_36 [1] : vector<128x8xf32> to vector<128xf32>
    %65 = vector.shape_cast %64 : vector<128xf32> to vector<128x1xf32>
    %66 = vector.broadcast %65 : vector<128x1xf32> to vector<128x8xf32>
    %67 = arith.divf %63, %66 : vector<128x8xf32>
    %cst_37 = arith.constant 0.000000e+00 : f32
    %68 = vector.broadcast %cst_37 : f32 to vector<128x32xf32>
    %c0_38 = arith.constant 0 : index
    %c0_39 = arith.constant 0 : index
    %c0_40 = arith.constant 0 : index
    %69 = vector.load %arg4[%c0_38, %c0_39, %c0_40] : memref<128x8x32xbf16, #tpu.memory_space<vmem>>, vector<128x1x32xbf16>
    %70 = vector.shape_cast %69 : vector<128x1x32xbf16> to vector<128x32xbf16>
    %71 = arith.extf %70 : vector<128x32xbf16> to vector<128x32xf32>
    %72 = vector.extract_strided_slice %67 {offsets = [0, 0], sizes = [128, 1], strides = [1, 1]} : vector<128x8xf32> to vector<128x1xf32>
    %73 = vector.broadcast %72 : vector<128x1xf32> to vector<128x32xf32>
    %74 = arith.mulf %73, %71 : vector<128x32xf32>
    %75 = arith.addf %68, %74 : vector<128x32xf32>
    %c0_41 = arith.constant 0 : index
    %c1_42 = arith.constant 1 : index
    %c0_43 = arith.constant 0 : index
    %76 = vector.load %arg4[%c0_41, %c1_42, %c0_43] : memref<128x8x32xbf16, #tpu.memory_space<vmem>>, vector<128x1x32xbf16>
    %77 = vector.shape_cast %76 : vector<128x1x32xbf16> to vector<128x32xbf16>
    %78 = arith.extf %77 : vector<128x32xbf16> to vector<128x32xf32>
    %79 = vector.extract_strided_slice %67 {offsets = [0, 1], sizes = [128, 1], strides = [1, 1]} : vector<128x8xf32> to vector<128x1xf32>
    %80 = vector.broadcast %79 : vector<128x1xf32> to vector<128x32xf32>
    %81 = arith.mulf %80, %78 : vector<128x32xf32>
    %82 = arith.addf %75, %81 : vector<128x32xf32>
    %c0_44 = arith.constant 0 : index
    %c2_45 = arith.constant 2 : index
    %c0_46 = arith.constant 0 : index
    %83 = vector.load %arg4[%c0_44, %c2_45, %c0_46] : memref<128x8x32xbf16, #tpu.memory_space<vmem>>, vector<128x1x32xbf16>
    %84 = vector.shape_cast %83 : vector<128x1x32xbf16> to vector<128x32xbf16>
    %85 = arith.extf %84 : vector<128x32xbf16> to vector<128x32xf32>
    %86 = vector.extract_strided_slice %67 {offsets = [0, 2], sizes = [128, 1], strides = [1, 1]} : vector<128x8xf32> to vector<128x1xf32>
    %87 = vector.broadcast %86 : vector<128x1xf32> to vector<128x32xf32>
    %88 = arith.mulf %87, %85 : vector<128x32xf32>
    %89 = arith.addf %82, %88 : vector<128x32xf32>
    %c0_47 = arith.constant 0 : index
    %c3_48 = arith.constant 3 : index
    %c0_49 = arith.constant 0 : index
    %90 = vector.load %arg4[%c0_47, %c3_48, %c0_49] : memref<128x8x32xbf16, #tpu.memory_space<vmem>>, vector<128x1x32xbf16>
    %91 = vector.shape_cast %90 : vector<128x1x32xbf16> to vector<128x32xbf16>
    %92 = arith.extf %91 : vector<128x32xbf16> to vector<128x32xf32>
    %93 = vector.extract_strided_slice %67 {offsets = [0, 3], sizes = [128, 1], strides = [1, 1]} : vector<128x8xf32> to vector<128x1xf32>
    %94 = vector.broadcast %93 : vector<128x1xf32> to vector<128x32xf32>
    %95 = arith.mulf %94, %92 : vector<128x32xf32>
    %96 = arith.addf %89, %95 : vector<128x32xf32>
    %c0_50 = arith.constant 0 : index
    %c4_51 = arith.constant 4 : index
    %c0_52 = arith.constant 0 : index
    %97 = vector.load %arg4[%c0_50, %c4_51, %c0_52] : memref<128x8x32xbf16, #tpu.memory_space<vmem>>, vector<128x1x32xbf16>
    %98 = vector.shape_cast %97 : vector<128x1x32xbf16> to vector<128x32xbf16>
    %99 = arith.extf %98 : vector<128x32xbf16> to vector<128x32xf32>
    %100 = vector.extract_strided_slice %67 {offsets = [0, 4], sizes = [128, 1], strides = [1, 1]} : vector<128x8xf32> to vector<128x1xf32>
    %101 = vector.broadcast %100 : vector<128x1xf32> to vector<128x32xf32>
    %102 = arith.mulf %101, %99 : vector<128x32xf32>
    %103 = arith.addf %96, %102 : vector<128x32xf32>
    %c0_53 = arith.constant 0 : index
    %c5_54 = arith.constant 5 : index
    %c0_55 = arith.constant 0 : index
    %104 = vector.load %arg4[%c0_53, %c5_54, %c0_55] : memref<128x8x32xbf16, #tpu.memory_space<vmem>>, vector<128x1x32xbf16>
    %105 = vector.shape_cast %104 : vector<128x1x32xbf16> to vector<128x32xbf16>
    %106 = arith.extf %105 : vector<128x32xbf16> to vector<128x32xf32>
    %107 = vector.extract_strided_slice %67 {offsets = [0, 5], sizes = [128, 1], strides = [1, 1]} : vector<128x8xf32> to vector<128x1xf32>
    %108 = vector.broadcast %107 : vector<128x1xf32> to vector<128x32xf32>
    %109 = arith.mulf %108, %106 : vector<128x32xf32>
    %110 = arith.addf %103, %109 : vector<128x32xf32>
    %c0_56 = arith.constant 0 : index
    %c6_57 = arith.constant 6 : index
    %c0_58 = arith.constant 0 : index
    %111 = vector.load %arg4[%c0_56, %c6_57, %c0_58] : memref<128x8x32xbf16, #tpu.memory_space<vmem>>, vector<128x1x32xbf16>
    %112 = vector.shape_cast %111 : vector<128x1x32xbf16> to vector<128x32xbf16>
    %113 = arith.extf %112 : vector<128x32xbf16> to vector<128x32xf32>
    %114 = vector.extract_strided_slice %67 {offsets = [0, 6], sizes = [128, 1], strides = [1, 1]} : vector<128x8xf32> to vector<128x1xf32>
    %115 = vector.broadcast %114 : vector<128x1xf32> to vector<128x32xf32>
    %116 = arith.mulf %115, %113 : vector<128x32xf32>
    %117 = arith.addf %110, %116 : vector<128x32xf32>
    %c0_59 = arith.constant 0 : index
    %c7_60 = arith.constant 7 : index
    %c0_61 = arith.constant 0 : index
    %118 = vector.load %arg4[%c0_59, %c7_60, %c0_61] : memref<128x8x32xbf16, #tpu.memory_space<vmem>>, vector<128x1x32xbf16>
    %119 = vector.shape_cast %118 : vector<128x1x32xbf16> to vector<128x32xbf16>
    %120 = arith.extf %119 : vector<128x32xbf16> to vector<128x32xf32>
    %121 = vector.extract_strided_slice %67 {offsets = [0, 7], sizes = [128, 1], strides = [1, 1]} : vector<128x8xf32> to vector<128x1xf32>
    %122 = vector.broadcast %121 : vector<128x1xf32> to vector<128x32xf32>
    %123 = arith.mulf %122, %120 : vector<128x32xf32>
    %124 = arith.addf %117, %123 : vector<128x32xf32>
    %c0_62 = arith.constant 0 : index
    %c0_63 = arith.constant 0 : index
    %125 = vector.load %arg3[%c0_62, %c0_63] : memref<128x16xbf16, #tpu.memory_space<vmem>>, vector<128x16xbf16>
    %c0_64 = arith.constant 0 : index
    %c0_65 = arith.constant 0 : index
    %126 = vector.load %arg8[%c0_64, %c0_65] : memref<16x96xbf16, #tpu.memory_space<vmem>>, vector<16x96xbf16>
    %cst_66 = arith.constant dense<0.000000e+00> : vector<128x96xf32>
    %127 = tpu.matmul %125, %126, %cst_66 {dimension_numbers = #tpu.dot_dimension_numbers<[1], [0], [0], [1], [0, 0, 1, 1], [], []>} : vector<128x16xbf16>, vector<16x96xbf16>, vector<128x96xf32> -> vector<128x96xf32>
    %c0_67 = arith.constant 0 : index
    %c0_68 = arith.constant 0 : index
    %128 = vector.load %arg9[%c0_67, %c0_68] : memref<1x96xf32, #tpu.memory_space<vmem>>, vector<1x96xf32>
    %129 = vector.broadcast %128 : vector<1x96xf32> to vector<128x96xf32>
    %130 = arith.addf %127, %129 : vector<128x96xf32>
    %131 = arith.truncf %124 : vector<128x32xf32> to vector<128x32xbf16>
    %c0_69 = arith.constant 0 : index
    %c0_70 = arith.constant 0 : index
    %132 = vector.load %arg10[%c0_69, %c0_70] : memref<32x96xbf16, #tpu.memory_space<vmem>>, vector<32x96xbf16>
    %cst_71 = arith.constant dense<0.000000e+00> : vector<128x96xf32>
    %133 = tpu.matmul %131, %132, %cst_71 {dimension_numbers = #tpu.dot_dimension_numbers<[1], [0], [0], [1], [0, 0, 1, 1], [], []>} : vector<128x32xbf16>, vector<32x96xbf16>, vector<128x96xf32> -> vector<128x96xf32>
    %c0_72 = arith.constant 0 : index
    %c0_73 = arith.constant 0 : index
    %134 = vector.load %arg11[%c0_72, %c0_73] : memref<1x96xf32, #tpu.memory_space<vmem>>, vector<1x96xf32>
    %135 = vector.broadcast %134 : vector<1x96xf32> to vector<128x96xf32>
    %136 = arith.addf %133, %135 : vector<128x96xf32>
    %137 = vector.extract_strided_slice %130 {offsets = [0, 0], sizes = [128, 64], strides = [1, 1]} : vector<128x96xf32> to vector<128x64xf32>
    %138 = vector.extract_strided_slice %136 {offsets = [0, 0], sizes = [128, 64], strides = [1, 1]} : vector<128x96xf32> to vector<128x64xf32>
    %139 = arith.addf %137, %138 : vector<128x64xf32>
    %140 = arith.negf %139 : vector<128x64xf32>
    %141 = math.exp %140 : vector<128x64xf32>
    %cst_74 = arith.constant 1.000000e+00 : f32
    %142 = vector.broadcast %cst_74 : f32 to vector<128x64xf32>
    %143 = arith.addf %142, %141 : vector<128x64xf32>
    %144 = arith.divf %142, %143 : vector<128x64xf32>
    %145 = vector.extract_strided_slice %144 {offsets = [0, 0], sizes = [128, 32], strides = [1, 1]} : vector<128x64xf32> to vector<128x32xf32>
    %146 = vector.extract_strided_slice %144 {offsets = [0, 32], sizes = [128, 32], strides = [1, 1]} : vector<128x64xf32> to vector<128x32xf32>
    %147 = vector.extract_strided_slice %130 {offsets = [0, 64], sizes = [128, 32], strides = [1, 1]} : vector<128x96xf32> to vector<128x32xf32>
    %148 = vector.extract_strided_slice %136 {offsets = [0, 64], sizes = [128, 32], strides = [1, 1]} : vector<128x96xf32> to vector<128x32xf32>
    %149 = arith.mulf %145, %148 : vector<128x32xf32>
    %150 = arith.addf %147, %149 : vector<128x32xf32>
    %151 = math.tanh %150 : vector<128x32xf32>
    %cst_75 = arith.constant 1.000000e+00 : f32
    %152 = vector.broadcast %cst_75 : f32 to vector<128x32xf32>
    %153 = arith.subf %152, %146 : vector<128x32xf32>
    %154 = arith.mulf %153, %151 : vector<128x32xf32>
    %155 = arith.mulf %146, %124 : vector<128x32xf32>
    %156 = arith.addf %154, %155 : vector<128x32xf32>
    %c0_76 = arith.constant 0 : index
    %c0_77 = arith.constant 0 : index
    %157 = vector.load %arg12[%c0_76, %c0_77] : memref<128x32xf32, #tpu.memory_space<vmem>>, vector<128x32xf32>
    tpu.vector_store %arg12[%c0_76, %c0_77], %156 {strides = array<i32>} : memref<128x32xf32, #tpu.memory_space<vmem>>, vector<128x32xf32>,
    return
  }
  func.func @transform_0(%arg0: i32) -> (i32, i32) {
    %c0_i32 = arith.constant 0 : i32
    %c0_i32_0 = arith.constant 0 : i32
    return %arg0, %c0_i32 : i32, i32
  }
  func.func @transform_1(%arg0: i32) -> (i32, i32) {
    %c0_i32 = arith.constant 0 : i32
    %c0_i32_0 = arith.constant 0 : i32
    return %arg0, %c0_i32 : i32, i32
  }
  func.func @transform_2(%arg0: i32) -> (i32, i32) {
    %c0_i32 = arith.constant 0 : i32
    %c0_i32_0 = arith.constant 0 : i32
    return %arg0, %c0_i32 : i32, i32
  }
  func.func @transform_3(%arg0: i32) -> (i32, i32, i32) {
    %c0_i32 = arith.constant 0 : i32
    %c0_i32_0 = arith.constant 0 : i32
    %c0_i32_1 = arith.constant 0 : i32
    return %arg0, %c0_i32, %c0_i32_0 : i32, i32, i32
  }
  func.func @transform_4(%arg0: i32) -> (i32, i32) {
    %c0_i32 = arith.constant 0 : i32
    %c0_i32_0 = arith.constant 0 : i32
    %c0_i32_1 = arith.constant 0 : i32
    return %c0_i32, %c0_i32_0 : i32, i32
  }
  func.func @transform_5(%arg0: i32) -> (i32, i32) {
    %c0_i32 = arith.constant 0 : i32
    %c0_i32_0 = arith.constant 0 : i32
    %c0_i32_1 = arith.constant 0 : i32
    return %c0_i32, %c0_i32_0 : i32, i32
  }
  func.func @transform_6(%arg0: i32) -> (i32, i32) {
    %c0_i32 = arith.constant 0 : i32
    %c0_i32_0 = arith.constant 0 : i32
    %c0_i32_1 = arith.constant 0 : i32
    return %c0_i32, %c0_i32_0 : i32, i32
  }
  func.func @transform_7(%arg0: i32) -> (i32, i32) {
    %c0_i32 = arith.constant 0 : i32
    %c0_i32_0 = arith.constant 0 : i32
    %c0_i32_1 = arith.constant 0 : i32
    return %c0_i32, %c0_i32_0 : i32, i32
  }
  func.func @transform_8(%arg0: i32) -> (i32, i32) {
    %c0_i32 = arith.constant 0 : i32
    %c0_i32_0 = arith.constant 0 : i32
    %c0_i32_1 = arith.constant 0 : i32
    return %c0_i32, %c0_i32_0 : i32, i32
  }
  func.func @transform_9(%arg0: i32) -> (i32, i32) {
    %c0_i32 = arith.constant 0 : i32
    %c0_i32_0 = arith.constant 0 : i32
    %c0_i32_1 = arith.constant 0 : i32
    return %c0_i32, %c0_i32_0 : i32, i32
  }
  func.func @transform_10(%arg0: i32) -> (i32, i32) {
    %c0_i32 = arith.constant 0 : i32
    %c0_i32_0 = arith.constant 0 : i32
    %c0_i32_1 = arith.constant 0 : i32
    return %c0_i32, %c0_i32_0 : i32, i32
  }
  func.func @transform_11(%arg0: i32) -> (i32, i32) {
    %c0_i32 = arith.constant 0 : i32
    %c0_i32_0 = arith.constant 0 : i32
    return %arg0, %c0_i32 : i32, i32
  }
}

</mosaic_0001>

<llo_original>
// kernel: tree_rnn_cell_gru.1
$region0: #{tree_rnn_cell_gru.1}
  #allocation0 [shape = 'u32[]', space=smem, size = 0x4, offset = 0x4, fixed_abs, tag = 'smem constant byte address 0x4 - core index']
  #allocation1 [shape = 'u32[72,128]{1,0:T(1,128)}', space=vmem, size = 0x9000, scoped, tag = 'internal scratch']
  %s0 = inlined_call_operand.vmem [shape: bf16[256,32], index: 0, kind: input, shape index: {}]
  %s1 = inlined_call_operand.vmem [shape: bf16[256,16], index: 1, kind: input, shape index: {}]
  %s2 = inlined_call_operand.vmem [shape: bf16[256,16], index: 2, kind: input, shape index: {}]
  %s3 = inlined_call_operand.vmem [shape: bf16[256,8,32], index: 3, kind: input, shape index: {}]
  %s4 = inlined_call_operand.vmem [shape: bf16[32,32], index: 4, kind: input, shape index: {}]
  %s5 = inlined_call_operand.vmem [shape: bf16[16,32], index: 5, kind: input, shape index: {}]
  %s6 = inlined_call_operand.vmem [shape: f32[1,32], index: 6, kind: input, shape index: {}]
  %s7 = inlined_call_operand.vmem [shape: bf16[16,96], index: 7, kind: input, shape index: {}]
  %s8 = inlined_call_operand.vmem [shape: f32[1,96], index: 8, kind: input, shape index: {}]
  %s9 = inlined_call_operand.vmem [shape: bf16[32,96], index: 9, kind: input, shape index: {}]
  %s10 = inlined_call_operand.vmem [shape: f32[1,96], index: 10, kind: input, shape index: {}]
  %s11 = inlined_call_operand.vmem [shape: f32[256,32], index: 11, kind: output, shape index: {}]
  %s12 = sld [smem:[#allocation0]]
  $region77: #{tree_rnn_cell_gru.1} parent=0
    _
  %s14 = ssub.s32 1, %s12
  %s15 = scalar_select 0, %s14, %s12
  loop: start=0, step=1, limit=4
  $region2: #{tree_rnn_cell_gru.1} parent=0 // loop_pre_header
    _
  $region3: #{tree_rnn_cell_gru.1} parent=0 // loop_header
    %s17 = sphi 0, %s21
    %p18 = scmp.ge.s32.totalorder %s17, 4
    %s27 = sphi 0, %s29
    %s30 = sphi 0, %s27
    %s31 = sphi 0, %s30
    %s47 = sphi 0, %s31
    %s53 = sphi 0, %s55
    %s56 = sphi 0, %s53
    %s57 = sphi 0, %s56
    %s73 = sphi 0, %s57
    %s79 = sphi 0, %s81
    %s82 = sphi 0, %s79
    %s83 = sphi 0, %s82
    %s99 = sphi 0, %s83
    %s105 = sphi 0, %s107
    %s108 = sphi 0, %s105
    %s109 = sphi 0, %s108
    %s125 = sphi 0, %s109
    %s129 = sphi 0, %s129
    %s131 = sphi 0, %s129
    %s132 = sphi 0, %s131
    %s146 = sphi 0, %s132
    %s150 = sphi 0, %s150
    %s152 = sphi 0, %s150
    %s153 = sphi 0, %s152
    %s167 = sphi 0, %s153
    %s171 = sphi 0, %s171
    %s173 = sphi 0, %s171
    %s174 = sphi 0, %s173
    %s188 = sphi 0, %s174
    %s192 = sphi 0, %s192
    %s194 = sphi 0, %s192
    %s195 = sphi 0, %s194
    %s209 = sphi 0, %s195
    %s213 = sphi 0, %s213
    %s215 = sphi 0, %s213
    %s216 = sphi 0, %s215
    %s230 = sphi 0, %s216
    %s234 = sphi 0, %s234
    %s236 = sphi 0, %s234
    %s237 = sphi 0, %s236
    %s251 = sphi 0, %s237
    %s255 = sphi 0, %s255
    %s257 = sphi 0, %s255
    %s258 = sphi 0, %s257
    %s272 = sphi 0, %s258
    %s278 = sphi 0, %s280
    %s281 = sphi 0, %s278
    %s282 = sphi 0, %s281
    %s298 = sphi 0, %s282
  $region4: #{tree_rnn_cell_gru.1} parent=0 // loop_header_branch
    %20 = sbr.rel (%p18) target = $region8
  $region5: #{tree_rnn_cell_gru.1} parent=0 // loop_body
    %s22 = ssub.s32 %s17, 1
    %s23 = ssub.s32 %s17, 2
    %s24 = sadd.s32 %s17, 1
    %s25 = ssub.s32 %s17, %s24
    %p26 = scmp.eq.s32.totalorder %s25, 0
    %s28 = sadd.s32 %s27, 1
    %s29 = scalar_select %p26, %s27, %s28
    %p32 = pneg %p26
    %p33 = scmp.eq.s32.totalorder %s17, 1
    %p34 = por %p32, %p33
    %p35 = scmp.ne.s32.totalorder %s27, %s30
    %p36 = scmp.eq.s32.totalorder %s17, 0
    %p37 = por %p35, %p36
    %p38 = scmp.ne.s32.totalorder %s27, %s30
    %p39 = scmp.eq.s32.totalorder %s22, 1
    %p40 = por %p38, %p39
    %p41 = scmp.ne.s32.totalorder %s30, %s31
    %p42 = scmp.eq.s32.totalorder %s22, 0
    %p43 = por %p41, %p42
    %p44 = scmp.ne.s32.totalorder %s30, %s31
    %p45 = scmp.eq.s32.totalorder %s23, 1
    %p46 = por %p44, %p45
    %p48 = scmp.ne.s32.totalorder %s31, %s47
    %p49 = scmp.eq.s32.totalorder %s23, 0
    %p50 = por %p48, %p49
    %s51 = ssub.s32 %s17, %s24
    %p52 = scmp.eq.s32.totalorder %s51, 0
    %s54 = sadd.s32 %s53, 1
    %s55 = scalar_select %p52, %s53, %s54
    %p58 = pneg %p52
    %p59 = scmp.eq.s32.totalorder %s17, 1
    %p60 = por %p58, %p59
    %p61 = scmp.ne.s32.totalorder %s53, %s56
    %p62 = scmp.eq.s32.totalorder %s17, 0
    %p63 = por %p61, %p62
    %p64 = scmp.ne.s32.totalorder %s53, %s56
    %p65 = scmp.eq.s32.totalorder %s22, 1
    %p66 = por %p64, %p65
    %p67 = scmp.ne.s32.totalorder %s56, %s57
    %p68 = scmp.eq.s32.totalorder %s22, 0
    %p69 = por %p67, %p68
    %p70 = scmp.ne.s32.totalorder %s56, %s57
    %p71 = scmp.eq.s32.totalorder %s23, 1
    %p72 = por %p70, %p71
    %p74 = scmp.ne.s32.totalorder %s57, %s73
    %p75 = scmp.eq.s32.totalorder %s23, 0
    %p76 = por %p74, %p75
    %s77 = ssub.s32 %s17, %s24
    %p78 = scmp.eq.s32.totalorder %s77, 0
    %s80 = sadd.s32 %s79, 1
    %s81 = scalar_select %p78, %s79, %s80
    %p84 = pneg %p78
    %p85 = scmp.eq.s32.totalorder %s17, 1
    %p86 = por %p84, %p85
    %p87 = scmp.ne.s32.totalorder %s79, %s82
    %p88 = scmp.eq.s32.totalorder %s17, 0
    %p89 = por %p87, %p88
    %p90 = scmp.ne.s32.totalorder %s79, %s82
    %p91 = scmp.eq.s32.totalorder %s22, 1
    %p92 = por %p90, %p91
    %p93 = scmp.ne.s32.totalorder %s82, %s83
    %p94 = scmp.eq.s32.totalorder %s22, 0
    %p95 = por %p93, %p94
    %p96 = scmp.ne.s32.totalorder %s82, %s83
    %p97 = scmp.eq.s32.totalorder %s23, 1
    %p98 = por %p96, %p97
    %p100 = scmp.ne.s32.totalorder %s83, %s99
    %p101 = scmp.eq.s32.totalorder %s23, 0
    %p102 = por %p100, %p101
    %s103 = ssub.s32 %s17, %s24
    %p104 = scmp.eq.s32.totalorder %s103, 0
    %s106 = sadd.s32 %s105, 1
    %s107 = scalar_select %p104, %s105, %s106
    %p110 = pneg %p104
    %p111 = scmp.eq.s32.totalorder %s17, 1
    %p112 = por %p110, %p111
    %p113 = scmp.ne.s32.totalorder %s105, %s108
    %p114 = scmp.eq.s32.totalorder %s17, 0
    %p115 = por %p113, %p114
    %p116 = scmp.ne.s32.totalorder %s105, %s108
    %p117 = scmp.eq.s32.totalorder %s22, 1
    %p118 = por %p116, %p117
    %p119 = scmp.ne.s32.totalorder %s108, %s109
    %p120 = scmp.eq.s32.totalorder %s22, 0
    %p121 = por %p119, %p120
    %p122 = scmp.ne.s32.totalorder %s108, %s109
    %p123 = scmp.eq.s32.totalorder %s23, 1
    %p124 = por %p122, %p123
    %p126 = scmp.ne.s32.totalorder %s109, %s125
    %p127 = scmp.eq.s32.totalorder %s23, 0
    %p128 = por %p126, %p127
    %s130 = sadd.s32 %s129, 1
    %p133 = scmp.eq.s32.totalorder %s17, 1
    %p134 = scmp.ne.s32.totalorder %s129, %s131
    %p135 = scmp.eq.s32.totalorder %s17, 0
    %p136 = por %p134, %p135
    %p137 = scmp.ne.s32.totalorder %s129, %s131
    %p138 = scmp.eq.s32.totalorder %s22, 1
    %p139 = por %p137, %p138
    %p140 = scmp.ne.s32.totalorder %s131, %s132
    %p141 = scmp.eq.s32.totalorder %s22, 0
    %p142 = por %p140, %p141
    %p143 = scmp.ne.s32.totalorder %s131, %s132
    %p144 = scmp.eq.s32.totalorder %s23, 1
    %p145 = por %p143, %p144
    %p147 = scmp.ne.s32.totalorder %s132, %s146
    %p148 = scmp.eq.s32.totalorder %s23, 0
    %p149 = por %p147, %p148
    %s151 = sadd.s32 %s150, 1
    %p154 = scmp.eq.s32.totalorder %s17, 1
    %p155 = scmp.ne.s32.totalorder %s150, %s152
    %p156 = scmp.eq.s32.totalorder %s17, 0
    %p157 = por %p155, %p156
    %p158 = scmp.ne.s32.totalorder %s150, %s152
    %p159 = scmp.eq.s32.totalorder %s22, 1
    %p160 = por %p158, %p159
    %p161 = scmp.ne.s32.totalorder %s152, %s153
    %p162 = scmp.eq.s32.totalorder %s22, 0
    %p163 = por %p161, %p162
    %p164 = scmp.ne.s32.totalorder %s152, %s153
    %p165 = scmp.eq.s32.totalorder %s23, 1
    %p166 = por %p164, %p165
    %p168 = scmp.ne.s32.totalorder %s153, %s167
    %p169 = scmp.eq.s32.totalorder %s23, 0
    %p170 = por %p168, %p169
    %s172 = sadd.s32 %s171, 1
    %p175 = scmp.eq.s32.totalorder %s17, 1
    %p176 = scmp.ne.s32.totalorder %s171, %s173
    %p177 = scmp.eq.s32.totalorder %s17, 0
    %p178 = por %p176, %p177
    %p179 = scmp.ne.s32.totalorder %s171, %s173
    %p180 = scmp.eq.s32.totalorder %s22, 1
    %p181 = por %p179, %p180
    %p182 = scmp.ne.s32.totalorder %s173, %s174
    %p183 = scmp.eq.s32.totalorder %s22, 0
    %p184 = por %p182, %p183
    %p185 = scmp.ne.s32.totalorder %s173, %s174
    %p186 = scmp.eq.s32.totalorder %s23, 1
    %p187 = por %p185, %p186
    %p189 = scmp.ne.s32.totalorder %s174, %s188
    %p190 = scmp.eq.s32.totalorder %s23, 0
    %p191 = por %p189, %p190
    %s193 = sadd.s32 %s192, 1
    %p196 = scmp.eq.s32.totalorder %s17, 1
    %p197 = scmp.ne.s32.totalorder %s192, %s194
    %p198 = scmp.eq.s32.totalorder %s17, 0
    %p199 = por %p197, %p198
    %p200 = scmp.ne.s32.totalorder %s192, %s194
    %p201 = scmp.eq.s32.totalorder %s22, 1
    %p202 = por %p200, %p201
    %p203 = scmp.ne.s32.totalorder %s194, %s195
    %p204 = scmp.eq.s32.totalorder %s22, 0
    %p205 = por %p203, %p204
    %p206 = scmp.ne.s32.totalorder %s194, %s195
    %p207 = scmp.eq.s32.totalorder %s23, 1
    %p208 = por %p206, %p207
    %p210 = scmp.ne.s32.totalorder %s195, %s209
    %p211 = scmp.eq.s32.totalorder %s23, 0
    %p212 = por %p210, %p211
    %s214 = sadd.s32 %s213, 1
    %p217 = scmp.eq.s32.totalorder %s17, 1
    %p218 = scmp.ne.s32.totalorder %s213, %s215
    %p219 = scmp.eq.s32.totalorder %s17, 0
    %p220 = por %p218, %p219
    %p221 = scmp.ne.s32.totalorder %s213, %s215
    %p222 = scmp.eq.s32.totalorder %s22, 1
    %p223 = por %p221, %p222
    %p224 = scmp.ne.s32.totalorder %s215, %s216
    %p225 = scmp.eq.s32.totalorder %s22, 0
    %p226 = por %p224, %p225
    %p227 = scmp.ne.s32.totalorder %s215, %s216
    %p228 = scmp.eq.s32.totalorder %s23, 1
    %p229 = por %p227, %p228
    %p231 = scmp.ne.s32.totalorder %s216, %s230
    %p232 = scmp.eq.s32.totalorder %s23, 0
    %p233 = por %p231, %p232
    %s235 = sadd.s32 %s234, 1
    %p238 = scmp.eq.s32.totalorder %s17, 1
    %p239 = scmp.ne.s32.totalorder %s234, %s236
    %p240 = scmp.eq.s32.totalorder %s17, 0
    %p241 = por %p239, %p240
    %p242 = scmp.ne.s32.totalorder %s234, %s236
    %p243 = scmp.eq.s32.totalorder %s22, 1
    %p244 = por %p242, %p243
    %p245 = scmp.ne.s32.totalorder %s236, %s237
    %p246 = scmp.eq.s32.totalorder %s22, 0
    %p247 = por %p245, %p246
    %p248 = scmp.ne.s32.totalorder %s236, %s237
    %p249 = scmp.eq.s32.totalorder %s23, 1
    %p250 = por %p248, %p249
    %p252 = scmp.ne.s32.totalorder %s237, %s251
    %p253 = scmp.eq.s32.totalorder %s23, 0
    %p254 = por %p252, %p253
    %s256 = sadd.s32 %s255, 1
    %p259 = scmp.eq.s32.totalorder %s17, 1
    %p260 = scmp.ne.s32.totalorder %s255, %s257
    %p261 = scmp.eq.s32.totalorder %s17, 0
    %p262 = por %p260, %p261
    %p263 = scmp.ne.s32.totalorder %s255, %s257
    %p264 = scmp.eq.s32.totalorder %s22, 1
    %p265 = por %p263, %p264
    %p266 = scmp.ne.s32.totalorder %s257, %s258
    %p267 = scmp.eq.s32.totalorder %s22, 0
    %p268 = por %p266, %p267
    %p269 = scmp.ne.s32.totalorder %s257, %s258
    %p270 = scmp.eq.s32.totalorder %s23, 1
    %p271 = por %p269, %p270
    %p273 = scmp.ne.s32.totalorder %s258, %s272
    %p274 = scmp.eq.s32.totalorder %s23, 0
    %p275 = por %p273, %p274
    %s276 = ssub.s32 %s17, %s24
    %p277 = scmp.eq.s32.totalorder %s276, 0
    %s279 = sadd.s32 %s278, 1
    %s280 = scalar_select %p277, %s278, %s279
    %p283 = pneg %p277
    %p284 = scmp.eq.s32.totalorder %s17, 1
    %p285 = por %p283, %p284
    %p286 = scmp.ne.s32.totalorder %s278, %s281
    %p287 = scmp.eq.s32.totalorder %s17, 0
    %p288 = por %p286, %p287
    %p289 = scmp.ne.s32.totalorder %s278, %s281
    %p290 = scmp.eq.s32.totalorder %s22, 1
    %p291 = por %p289, %p290
    %p292 = scmp.ne.s32.totalorder %s281, %s282
    %p293 = scmp.eq.s32.totalorder %s22, 0
    %p294 = por %p292, %p293
    %p295 = scmp.ne.s32.totalorder %s281, %s282
    %p296 = scmp.eq.s32.totalorder %s23, 1
    %p297 = por %p295, %p296
    %p299 = scmp.ne.s32.totalorder %s282, %s298
    %p300 = scmp.eq.s32.totalorder %s23, 0
    %p301 = por %p299, %p300
    %p302 = scmp.le.s32.totalorder 1, %s17
    %p303 = scmp.lt.s32.totalorder %s17, 3
    %p304 = pnand %p302, %p303
    %p305 = pneg %p304
    // Predicated region
    $region9: #{tree_rnn_cell_gru.1} parent=5 // pred_check
      _
    $region10: #{tree_rnn_cell_gru.1} parent=5 // pred_check_branch
      %307 = sbr.rel (%p304) target = $region12
    $region11: #{tree_rnn_cell_gru.1} parent=5 // pred_region
      %s308 = ssub.s32 %s17, 1
      // Predicated region
      $region13: #{tree_rnn_cell_gru.1} parent=11 // pred_check
        %p309 = pneg %p142
      $region14: #{tree_rnn_cell_gru.1} parent=11 // pred_check_branch
        %311 = sbr.rel (%p309) target = $region16
      $region15: #{tree_rnn_cell_gru.1} parent=11 // pred_region
        _
      $region16: #{tree_rnn_cell_gru.1} parent=11 // pred_fallthru
        _
      // Predicated region
      $region17: #{tree_rnn_cell_gru.1} parent=11 // pred_check
        %p312 = pneg %p163
      $region18: #{tree_rnn_cell_gru.1} parent=11 // pred_check_branch
        %314 = sbr.rel (%p312) target = $region20
      $region19: #{tree_rnn_cell_gru.1} parent=11 // pred_region
        _
      $region20: #{tree_rnn_cell_gru.1} parent=11 // pred_fallthru
        _
      // Predicated region
      $region21: #{tree_rnn_cell_gru.1} parent=11 // pred_check
        %p315 = pneg %p184
      $region22: #{tree_rnn_cell_gru.1} parent=11 // pred_check_branch
        %317 = sbr.rel (%p315) target = $region24
      $region23: #{tree_rnn_cell_gru.1} parent=11 // pred_region
        _
      $region24: #{tree_rnn_cell_gru.1} parent=11 // pred_fallthru
        _
      // Predicated region
      $region25: #{tree_rnn_cell_gru.1} parent=11 // pred_check
        %p318 = pneg %p205
      $region26: #{tree_rnn_cell_gru.1} parent=11 // pred_check_branch
        %320 = sbr.rel (%p318) target = $region28
      $region27: #{tree_rnn_cell_gru.1} parent=11 // pred_region
        _
      $region28: #{tree_rnn_cell_gru.1} parent=11 // pred_fallthru
        _
      // Predicated region
      $region29: #{tree_rnn_cell_gru.1} parent=11 // pred_check
        %p321 = pneg %p226
      $region30: #{tree_rnn_cell_gru.1} parent=11 // pred_check_branch
        %323 = sbr.rel (%p321) target = $region32
      $region31: #{tree_rnn_cell_gru.1} parent=11 // pred_region
        _
      $region32: #{tree_rnn_cell_gru.1} parent=11 // pred_fallthru
        _
      // Predicated region
      $region33: #{tree_rnn_cell_gru.1} parent=11 // pred_check
        %p324 = pneg %p247
      $region34: #{tree_rnn_cell_gru.1} parent=11 // pred_check_branch
        %326 = sbr.rel (%p324) target = $region36
      $region35: #{tree_rnn_cell_gru.1} parent=11 // pred_region
        _
      $region36: #{tree_rnn_cell_gru.1} parent=11 // pred_fallthru
        _
      // Predicated region
      $region37: #{tree_rnn_cell_gru.1} parent=11 // pred_check
        %p327 = pneg %p268
      $region38: #{tree_rnn_cell_gru.1} parent=11 // pred_check_branch
        %329 = sbr.rel (%p327) target = $region40
      $region39: #{tree_rnn_cell_gru.1} parent=11 // pred_region
        _
      $region40: #{tree_rnn_cell_gru.1} parent=11 // pred_fallthru
        _
    $region12: #{tree_rnn_cell_gru.1} parent=5 // pred_fallthru
      _
    %p330 = scmp.lt.s32.totalorder %s17, 2
    // Predicated region
    $region41: #{tree_rnn_cell_gru.1} parent=5 // pred_check
      %p331 = pneg %p330
    $region42: #{tree_rnn_cell_gru.1} parent=5 // pred_check_branch
      %333 = sbr.rel (%p331) target = $region44
    $region43: #{tree_rnn_cell_gru.1} parent=5 // pred_region
      // Predicated region
      $region45: #{tree_rnn_cell_gru.1} parent=43 // pred_check
        %p334 = pneg %p37
      $region46: #{tree_rnn_cell_gru.1} parent=43 // pred_check_branch
        %336 = sbr.rel (%p334) target = $region48
      $region47: #{tree_rnn_cell_gru.1} parent=43 // pred_region
        %s337 = smul.u32 16, %s17
        %p338 = scmp.lt.s32.totalorder %s337, 31
        %s339 = scalar_select %p338, %s337, 31
        %s340 = smul.addr %s339, 4
        %s341 = scalar_lea.vmem %s0, %s340
        %s342 = smul.u32 16, %s17
      $region48: #{tree_rnn_cell_gru.1} parent=43 // pred_fallthru
        _
      // Predicated region
      $region49: #{tree_rnn_cell_gru.1} parent=43 // pred_check
        %p343 = pneg %p63
      $region50: #{tree_rnn_cell_gru.1} parent=43 // pred_check_branch
        %345 = sbr.rel (%p343) target = $region52
      $region51: #{tree_rnn_cell_gru.1} parent=43 // pred_region
        %s346 = smul.u32 16, %s17
        %p347 = scmp.lt.s32.totalorder %s346, 31
        %s348 = scalar_select %p347, %s346, 31
        %s349 = smul.addr %s348, 4
        %s350 = scalar_lea.vmem %s1, %s349
        %s351 = smul.u32 16, %s17
      $region52: #{tree_rnn_cell_gru.1} parent=43 // pred_fallthru
        _
      // Predicated region
      $region53: #{tree_rnn_cell_gru.1} parent=43 // pred_check
        %p352 = pneg %p89
      $region54: #{tree_rnn_cell_gru.1} parent=43 // pred_check_branch
        %354 = sbr.rel (%p352) target = $region56
      $region55: #{tree_rnn_cell_gru.1} parent=43 // pred_region
        %s355 = smul.u32 16, %s17
        %p356 = scmp.lt.s32.totalorder %s355, 31
        %s357 = scalar_select %p356, %s355, 31
        %s358 = smul.addr %s357, 4
        %s359 = scalar_lea.vmem %s2, %s358
        %s360 = smul.u32 16, %s17
      $region56: #{tree_rnn_cell_gru.1} parent=43 // pred_fallthru
        _
      // Predicated region
      $region57: #{tree_rnn_cell_gru.1} parent=43 // pred_check
        %p361 = pneg %p115
      $region58: #{tree_rnn_cell_gru.1} parent=43 // pred_check_branch
        %363 = sbr.rel (%p361) target = $region60
      $region59: #{tree_rnn_cell_gru.1} parent=43 // pred_region
        %s364 = smul.u32 128, %s17
        %p365 = scmp.lt.s32.totalorder %s364, 255
        %s366 = scalar_select %p365, %s364, 255
        %s367 = smul.addr %s366, 4
        %s368 = scalar_lea.vmem %s3, %s367
        %s369 = smul.u32 128, %s17
      $region60: #{tree_rnn_cell_gru.1} parent=43 // pred_fallthru
        _
    $region44: #{tree_rnn_cell_gru.1} parent=5 // pred_fallthru
      _
    %p370 = scmp.le.s32.totalorder 1, %s17
    %p371 = scmp.lt.s32.totalorder %s17, 3
    %p372 = pnand %p370, %p371
    %p373 = pneg %p372
    // Predicated region
    $region61: #{tree_rnn_cell_gru.1} parent=5 // pred_check
      _
    $region62: #{tree_rnn_cell_gru.1} parent=5 // pred_check_branch
      %375 = sbr.rel (%p372) target = $region64
    $region63: #{tree_rnn_cell_gru.1} parent=5 // pred_region
      %s376 = ssub.s32 %s17, 1
      %s377 = smul.u32 16, %s22
      %p378 = scmp.lt.s32.totalorder %s377, 31
      %s379 = scalar_select %p378, %s377, 31
      %s380 = smul.addr %s379, 4
      %s381 = scalar_lea.vmem %s0, %s380
      %p382 = pneg %p43
      %p383 = pneg %p40
      %s384 = smul.u32 16, %s22
      %p385 = scmp.lt.s32.totalorder %s384, 31
      %s386 = scalar_select %p385, %s384, 31
      %s387 = smul.addr %s386, 4
      %s388 = scalar_lea.vmem %s1, %s387
      %p389 = pneg %p69
      %p390 = pneg %p66
      %s391 = smul.u32 16, %s22
      %p392 = scmp.lt.s32.totalorder %s391, 31
      %s393 = scalar_select %p392, %s391, 31
      %s394 = smul.addr %s393, 4
      %s395 = scalar_lea.vmem %s2, %s394
      %p396 = pneg %p95
      %p397 = pneg %p92
      %s398 = smul.u32 128, %s22
      %p399 = scmp.lt.s32.totalorder %s398, 255
      %s400 = scalar_select %p399, %s398, 255
      %s401 = smul.addr %s400, 4
      %s402 = scalar_lea.vmem %s3, %s401
      %p403 = pneg %p121
      %p404 = pneg %p118
      %p405 = pneg %p142
      %p406 = pneg %p139
      %p407 = pneg %p163
      %p408 = pneg %p160
      %p409 = pneg %p184
      %p410 = pneg %p181
      %p411 = pneg %p205
      %p412 = pneg %p202
      %p413 = pneg %p226
      %p414 = pneg %p223
      %p415 = pneg %p247
      %p416 = pneg %p244
      %p417 = pneg %p268
      %p418 = pneg %p265
      %p419 = pneg %p294
      %p420 = pneg %p291
      %s421 = smul.u32 16, %s22
      %p422 = scmp.lt.s32.totalorder %s421, 31
      %s423 = scalar_select %p422, %s421, 31
      %s424 = smul.addr %s423, 8
      %s425 = scalar_lea.vmem %s11, %s424
      %s426 = smul.u32 16, %s22
      %p427 = scmp.lt.s32.totalorder %s426, 31
      %s428 = scalar_select %p427, %s426, 31
      %s429 = smul.addr %s428, 4
      %s430 = scalar_lea.vmem %s0, %s429
      %s431 = smul.u32 16, %s22
      %s432 = smul.u32 16, %s22
      %p433 = scmp.lt.s32.totalorder %s432, 31
      %s434 = scalar_select %p433, %s432, 31
      %s435 = smul.addr %s434, 4
      %s436 = scalar_lea.vmem %s1, %s435
      %s437 = smul.u32 16, %s22
      %s438 = smul.u32 16, %s22
      %p439 = scmp.lt.s32.totalorder %s438, 31
      %s440 = scalar_select %p439, %s438, 31
      %s441 = smul.addr %s440, 4
      %s442 = scalar_lea.vmem %s2, %s441
      %s443 = smul.u32 16, %s22
      %s444 = smul.u32 128, %s22
      %p445 = scmp.lt.s32.totalorder %s444, 255
      %s446 = scalar_select %p445, %s444, 255
      %s447 = smul.addr %s446, 4
      %s448 = scalar_lea.vmem %s3, %s447
      %s449 = smul.u32 128, %s22
      %s450 = smul.u32 16, %s22
      %p451 = scmp.lt.s32.totalorder %s450, 31
      %s452 = scalar_select %p451, %s450, 31
      %s453 = smul.addr %s452, 8
      %s454 = scalar_lea.vmem %s11, %s453
      %s455 = smul.u32 16, %s22
      %v457 = vld [vmem:[%s430] sm:$0xf]
      %v458 = vld [vmem:[%s430 + $0x4] sm:$0xf]
      %v459 = vld [vmem:[%s430 + $0x8] sm:$0xf]
      %v460 = vld [vmem:[%s430 + $0xc] sm:$0xf]
      %v461 = vld [vmem:[%s430 + $0x10] sm:$0xf]
      %v462 = vld [vmem:[%s430 + $0x14] sm:$0xf]
      %v463 = vld [vmem:[%s430 + $0x18] sm:$0xf]
      %v464 = vld [vmem:[%s430 + $0x1c] sm:$0xf]
      %v465 = vld [vmem:[%s430 + $0x20] sm:$0xf]
      %v466 = vld [vmem:[%s430 + $0x24] sm:$0xf]
      %v467 = vld [vmem:[%s430 + $0x28] sm:$0xf]
      %v468 = vld [vmem:[%s430 + $0x2c] sm:$0xf]
      %v469 = vld [vmem:[%s430 + $0x30] sm:$0xf]
      %v470 = vld [vmem:[%s430 + $0x34] sm:$0xf]
      %v471 = vld [vmem:[%s430 + $0x38] sm:$0xf]
      %v472 = vld [vmem:[%s430 + $0x3c] sm:$0xf]
      %v473 = vld [vmem:[%s4] sm:$0xf]
      %v474 = vld [vmem:[%s4 + $0x4] sm:$0xf]
      %v475 = vld [vmem:[%s4 + $0x8] sm:$0xf]
      %v476 = vld [vmem:[%s4 + $0xc] sm:$0xf]
      %v477 = vld [vmem:[%s436] sm:$0xf]
      %v478 = vld [vmem:[%s436 + $0x4] sm:$0xf]
      %v479 = vld [vmem:[%s436 + $0x8] sm:$0xf]
      %v480 = vld [vmem:[%s436 + $0xc] sm:$0xf]
      %v481 = vld [vmem:[%s436 + $0x10] sm:$0xf]
      %v482 = vld [vmem:[%s436 + $0x14] sm:$0xf]
      %v483 = vld [vmem:[%s436 + $0x18] sm:$0xf]
      %v484 = vld [vmem:[%s436 + $0x1c] sm:$0xf]
      %v485 = vld [vmem:[%s436 + $0x20] sm:$0xf]
      %v486 = vld [vmem:[%s436 + $0x24] sm:$0xf]
      %v487 = vld [vmem:[%s436 + $0x28] sm:$0xf]
      %v488 = vld [vmem:[%s436 + $0x2c] sm:$0xf]
      %v489 = vld [vmem:[%s436 + $0x30] sm:$0xf]
      %v490 = vld [vmem:[%s436 + $0x34] sm:$0xf]
      %v491 = vld [vmem:[%s436 + $0x38] sm:$0xf]
      %v492 = vld [vmem:[%s436 + $0x3c] sm:$0xf]
      %v493 = vld [vmem:[%s5] sm:$0xf]
      %v494 = vld [vmem:[%s5 + $0x4] sm:$0xf]
      %v511 = vunpack.c.l.b16 %v477
      %v512 = vunpack.c.l.b16 %v478
      %v513 = vunpack.c.l.b16 %v479
      %v514 = vunpack.c.l.b16 %v480
      %v515 = vunpack.c.l.b16 %v481
      %v516 = vunpack.c.l.b16 %v482
      %v517 = vunpack.c.l.b16 %v483
      %v518 = vunpack.c.l.b16 %v484
      %v519 = vunpack.c.l.b16 %v485
      %v520 = vunpack.c.l.b16 %v486
      %v521 = vunpack.c.l.b16 %v487
      %v522 = vunpack.c.l.b16 %v488
      %v523 = vunpack.c.l.b16 %v489
      %v524 = vunpack.c.l.b16 %v490
      %v525 = vunpack.c.l.b16 %v491
      %v526 = vunpack.c.l.b16 %v492
      %v527 = vpack.c.b16 %v512, %v511
      %v528 = vpack.c.b16 %v514, %v513
      %v529 = vpack.c.b16 %v516, %v515
      %v530 = vpack.c.b16 %v518, %v517
      %v531 = vpack.c.b16 %v520, %v519
      %v532 = vpack.c.b16 %v522, %v521
      %v533 = vpack.c.b16 %v524, %v523
      %v534 = vpack.c.b16 %v526, %v525
      %v537 = vunpack.c.l.b16 %v493
      %v538 = vunpack.c.l.b16 %v494
      %v539 = vpack.c.b16 %v538, %v537
      %vm541 = vcmask 130048
      %v543 = vsel %vm541, %v527, 0
      %v546 = vsel %vm541, %v528, 0
      %v549 = vsel %vm541, %v529, 0
      %v552 = vsel %vm541, %v530, 0
      %v555 = vsel %vm541, %v531, 0
      %v558 = vsel %vm541, %v532, 0
      %v561 = vsel %vm541, %v533, 0
      %v564 = vsel %vm541, %v534, 0
      %566 = vmatpush.bf16.msra.mxu0 0
      %567 = vmatpush.bf16.msra.mxu0 0
      %568 = vmatpush.bf16.msra.mxu0 0
      %569 = vmatpush.bf16.msra.mxu0 0
      %570 = vmatpush.bf16.msra.mxu0 0
      %571 = vmatpush.bf16.msra.mxu0 0
      %572 = vmatpush.bf16.msra.mxu0 0
      %573 = vmatpush.bf16.msra.mxu0 %v539
      %574 = vmatmul.bf16.gmra.mxu0 %v543
      %v575 = vpop.f32.mrf.mxu0
      %v576 = vadd.f32 0.0, %v575
      %v577 = vpop.f32.mrf.mxu0
      %v578 = vadd.f32 0.0, %v577
      %579 = vmatmul.bf16.gmra.mxu0 %v546
      %v580 = vpop.f32.mrf.mxu0
      %v581 = vadd.f32 0.0, %v580
      %v582 = vpop.f32.mrf.mxu0
      %v583 = vadd.f32 0.0, %v582
      %584 = vmatmul.bf16.gmra.mxu0 %v549
      %v585 = vpop.f32.mrf.mxu0
      %v586 = vadd.f32 0.0, %v585
      %v587 = vpop.f32.mrf.mxu0
      %v588 = vadd.f32 0.0, %v587
      %589 = vmatmul.bf16.gmra.mxu0 %v552
      %v590 = vpop.f32.mrf.mxu0
      %v591 = vadd.f32 0.0, %v590
      %v592 = vpop.f32.mrf.mxu0
      %v593 = vadd.f32 0.0, %v592
      %594 = vmatmul.bf16.gmra.mxu0 %v555
      %v595 = vpop.f32.mrf.mxu0
      %v596 = vadd.f32 0.0, %v595
      %v597 = vpop.f32.mrf.mxu0
      %v598 = vadd.f32 0.0, %v597
      %599 = vmatmul.bf16.gmra.mxu0 %v558
      %v600 = vpop.f32.mrf.mxu0
      %v601 = vadd.f32 0.0, %v600
      %v602 = vpop.f32.mrf.mxu0
      %v603 = vadd.f32 0.0, %v602
      %604 = vmatmul.bf16.gmra.mxu0 %v561
      %v605 = vpop.f32.mrf.mxu0
      %v606 = vadd.f32 0.0, %v605
      %v607 = vpop.f32.mrf.mxu0
      %v608 = vadd.f32 0.0, %v607
      %609 = vmatmul.bf16.gmra.mxu0 %v564
      %v610 = vpop.f32.mrf.mxu0
      %v611 = vadd.f32 0.0, %v610
      %v612 = vpop.f32.mrf.mxu0
      %v613 = vadd.f32 0.0, %v612
      %614 = vdwg.mxu0
      %v631 = vunpack.c.l.b16 %v457
      %v632 = vunpack.c.l.b16 %v458
      %v633 = vunpack.c.l.b16 %v459
      %v634 = vunpack.c.l.b16 %v460
      %v635 = vunpack.c.l.b16 %v461
      %v636 = vunpack.c.l.b16 %v462
      %v637 = vunpack.c.l.b16 %v463
      %v638 = vunpack.c.l.b16 %v464
      %v639 = vunpack.c.l.b16 %v465
      %v640 = vunpack.c.l.b16 %v466
      %v641 = vunpack.c.l.b16 %v467
      %v642 = vunpack.c.l.b16 %v468
      %v643 = vunpack.c.l.b16 %v469
      %v644 = vunpack.c.l.b16 %v470
      %v645 = vunpack.c.l.b16 %v471
      %v646 = vunpack.c.l.b16 %v472
      %v647 = vpack.c.b16 %v632, %v631
      %v648 = vpack.c.b16 %v634, %v633
      %v649 = vpack.c.b16 %v636, %v635
      %v650 = vpack.c.b16 %v638, %v637
      %v651 = vpack.c.b16 %v640, %v639
      %v652 = vpack.c.b16 %v642, %v641
      %v653 = vpack.c.b16 %v644, %v643
      %v654 = vpack.c.b16 %v646, %v645
      %v659 = vunpack.c.l.b16 %v473
      %v660 = vunpack.c.l.b16 %v474
      %v661 = vunpack.c.l.b16 %v475
      %v662 = vunpack.c.l.b16 %v476
      %v663 = vpack.c.b16 %v660, %v659
      %v664 = vpack.c.b16 %v662, %v661
      %vm667 = vcmask 261120
      %v669 = vsel %vm667, %v647, 0
      %v672 = vsel %vm667, %v648, 0
      %v675 = vsel %vm667, %v649, 0
      %v678 = vsel %vm667, %v650, 0
      %v681 = vsel %vm667, %v651, 0
      %v684 = vsel %vm667, %v652, 0
      %v687 = vsel %vm667, %v653, 0
      %v690 = vsel %vm667, %v654, 0
      %692 = vmatpush.bf16.msra.mxu0 0
      %693 = vmatpush.bf16.msra.mxu0 0
      %694 = vmatpush.bf16.msra.mxu0 0
      %695 = vmatpush.bf16.msra.mxu0 0
      %696 = vmatpush.bf16.msra.mxu0 0
      %697 = vmatpush.bf16.msra.mxu0 0
      %698 = vmatpush.bf16.msra.mxu0 %v664
      %699 = vmatpush.bf16.msra.mxu0 %v663
      %700 = vmatmul.bf16.gmra.mxu0 %v669
      %v701 = vpop.f32.mrf.mxu0
      %v702 = vadd.f32 %v576, %v701
      %v703 = vpop.f32.mrf.mxu0
      %v704 = vadd.f32 %v578, %v703
      %705 = vmatmul.bf16.gmra.mxu0 %v672
      %v706 = vpop.f32.mrf.mxu0
      %v707 = vadd.f32 %v581, %v706
      %v708 = vpop.f32.mrf.mxu0
      %v709 = vadd.f32 %v583, %v708
      %710 = vmatmul.bf16.gmra.mxu0 %v675
      %v711 = vpop.f32.mrf.mxu0
      %v712 = vadd.f32 %v586, %v711
      %v713 = vpop.f32.mrf.mxu0
      %v714 = vadd.f32 %v588, %v713
      %715 = vmatmul.bf16.gmra.mxu0 %v678
      %v716 = vpop.f32.mrf.mxu0
      %v717 = vadd.f32 %v591, %v716
      %v718 = vpop.f32.mrf.mxu0
      %v719 = vadd.f32 %v593, %v718
      %720 = vmatmul.bf16.gmra.mxu0 %v681
      %v721 = vpop.f32.mrf.mxu0
      %v722 = vadd.f32 %v596, %v721
      %v723 = vpop.f32.mrf.mxu0
      %v724 = vadd.f32 %v598, %v723
      %725 = vmatmul.bf16.gmra.mxu0 %v684
      %v726 = vpop.f32.mrf.mxu0
      %v727 = vadd.f32 %v601, %v726
      %v728 = vpop.f32.mrf.mxu0
      %v729 = vadd.f32 %v603, %v728
      %730 = vmatmul.bf16.gmra.mxu0 %v687
      %v731 = vpop.f32.mrf.mxu0
      %v732 = vadd.f32 %v606, %v731
      %v733 = vpop.f32.mrf.mxu0
      %v734 = vadd.f32 %v608, %v733
      %735 = vmatmul.bf16.gmra.mxu0 %v690
      %v736 = vpop.f32.mrf.mxu0
      %v737 = vadd.f32 %v611, %v736
      %v738 = vpop.f32.mrf.mxu0
      %v739 = vadd.f32 %v613, %v738
      %740 = vdwg.mxu0
      %v741 = vld [vmem:[%s6] sm:$0x1]
      %v743 = vperm.slane %v741, 0
      %v745 = vadd.f32 %v702, %v743
      %v746 = vadd.f32 %v704, %v743
      %v747 = vadd.f32 %v707, %v743
      %v748 = vadd.f32 %v709, %v743
      %v749 = vadd.f32 %v712, %v743
      %v750 = vadd.f32 %v714, %v743
      %v751 = vadd.f32 %v717, %v743
      %v752 = vadd.f32 %v719, %v743
      %v753 = vadd.f32 %v722, %v743
      %v754 = vadd.f32 %v724, %v743
      %v755 = vadd.f32 %v727, %v743
      %v756 = vadd.f32 %v729, %v743
      %v757 = vadd.f32 %v732, %v743
      %v758 = vadd.f32 %v734, %v743
      %v759 = vadd.f32 %v737, %v743
      %v760 = vadd.f32 %v739, %v743
      %v761 = vld [vmem:[%s448] sm:$0x1]
      %v762 = vld [vmem:[%s448 + $0x4] sm:$0x1]
      %v763 = vld [vmem:[%s448 + $0x8] sm:$0x1]
      %v764 = vld [vmem:[%s448 + $0xc] sm:$0x1]
      %v765 = vld [vmem:[%s448 + $0x10] sm:$0x1]
      %v766 = vld [vmem:[%s448 + $0x14] sm:$0x1]
      %v767 = vld [vmem:[%s448 + $0x18] sm:$0x1]
      %v768 = vld [vmem:[%s448 + $0x1c] sm:$0x1]
      %v769 = vld [vmem:[%s448 + $0x20] sm:$0x1]
      %v770 = vld [vmem:[%s448 + $0x24] sm:$0x1]
      %v771 = vld [vmem:[%s448 + $0x28] sm:$0x1]
      %v772 = vld [vmem:[%s448 + $0x2c] sm:$0x1]
      %v773 = vld [vmem:[%s448 + $0x30] sm:$0x1]
      %v774 = vld [vmem:[%s448 + $0x34] sm:$0x1]
      %v775 = vld [vmem:[%s448 + $0x38] sm:$0x1]
      %v776 = vld [vmem:[%s448 + $0x3c] sm:$0x1]
      %v777 = vld [vmem:[%s448 + $0x40] sm:$0x1]
      %v778 = vld [vmem:[%s448 + $0x44] sm:$0x1]
      %v779 = vld [vmem:[%s448 + $0x48] sm:$0x1]
      %v780 = vld [vmem:[%s448 + $0x4c] sm:$0x1]
      %v781 = vld [vmem:[%s448 + $0x50] sm:$0x1]
      %v782 = vld [vmem:[%s448 + $0x54] sm:$0x1]
      %v783 = vld [vmem:[%s448 + $0x58] sm:$0x1]
      %v784 = vld [vmem:[%s448 + $0x5c] sm:$0x1]
      %v785 = vld [vmem:[%s448 + $0x60] sm:$0x1]
      %v786 = vld [vmem:[%s448 + $0x64] sm:$0x1]
      %v787 = vld [vmem:[%s448 + $0x68] sm:$0x1]
      %v788 = vld [vmem:[%s448 + $0x6c] sm:$0x1]
      %v789 = vld [vmem:[%s448 + $0x70] sm:$0x1]
      %v790 = vld [vmem:[%s448 + $0x74] sm:$0x1]
      %v791 = vld [vmem:[%s448 + $0x78] sm:$0x1]
      %v792 = vld [vmem:[%s448 + $0x7c] sm:$0x1]
      %v793 = vld [vmem:[%s448 + $0x80] sm:$0x1]
      %v794 = vld [vmem:[%s448 + $0x84] sm:$0x1]
      %v795 = vld [vmem:[%s448 + $0x88] sm:$0x1]
      %v796 = vld [vmem:[%s448 + $0x8c] sm:$0x1]
      %v797 = vld [vmem:[%s448 + $0x90] sm:$0x1]
      %v798 = vld [vmem:[%s448 + $0x94] sm:$0x1]
      %v799 = vld [vmem:[%s448 + $0x98] sm:$0x1]
      %v800 = vld [vmem:[%s448 + $0x9c] sm:$0x1]
      %v801 = vld [vmem:[%s448 + $0xa0] sm:$0x1]
      %v802 = vld [vmem:[%s448 + $0xa4] sm:$0x1]
      %v803 = vld [vmem:[%s448 + $0xa8] sm:$0x1]
      %v804 = vld [vmem:[%s448 + $0xac] sm:$0x1]
      %v805 = vld [vmem:[%s448 + $0xb0] sm:$0x1]
      %v806 = vld [vmem:[%s448 + $0xb4] sm:$0x1]
      %v807 = vld [vmem:[%s448 + $0xb8] sm:$0x1]
      %v808 = vld [vmem:[%s448 + $0xbc] sm:$0x1]
      %v809 = vld [vmem:[%s448 + $0xc0] sm:$0x1]
      %v810 = vld [vmem:[%s448 + $0xc4] sm:$0x1]
      %v811 = vld [vmem:[%s448 + $0xc8] sm:$0x1]
      %v812 = vld [vmem:[%s448 + $0xcc] sm:$0x1]
      %v813 = vld [vmem:[%s448 + $0xd0] sm:$0x1]
      %v814 = vld [vmem:[%s448 + $0xd4] sm:$0x1]
      %v815 = vld [vmem:[%s448 + $0xd8] sm:$0x1]
      %v816 = vld [vmem:[%s448 + $0xdc] sm:$0x1]
      %v817 = vld [vmem:[%s448 + $0xe0] sm:$0x1]
      %v818 = vld [vmem:[%s448 + $0xe4] sm:$0x1]
      %v819 = vld [vmem:[%s448 + $0xe8] sm:$0x1]
      %v820 = vld [vmem:[%s448 + $0xec] sm:$0x1]
      %v821 = vld [vmem:[%s448 + $0xf0] sm:$0x1]
      %v822 = vld [vmem:[%s448 + $0xf4] sm:$0x1]
      %v823 = vld [vmem:[%s448 + $0xf8] sm:$0x1]
      %v824 = vld [vmem:[%s448 + $0xfc] sm:$0x1]
      %v825 = vld [vmem:[%s448 + $0x100] sm:$0x1]
      %v826 = vld [vmem:[%s448 + $0x104] sm:$0x1]
      %v827 = vld [vmem:[%s448 + $0x108] sm:$0x1]
      %v828 = vld [vmem:[%s448 + $0x10c] sm:$0x1]
      %v829 = vld [vmem:[%s448 + $0x110] sm:$0x1]
      %v830 = vld [vmem:[%s448 + $0x114] sm:$0x1]
      %v831 = vld [vmem:[%s448 + $0x118] sm:$0x1]
      %v832 = vld [vmem:[%s448 + $0x11c] sm:$0x1]
      %v833 = vld [vmem:[%s448 + $0x120] sm:$0x1]
      %v834 = vld [vmem:[%s448 + $0x124] sm:$0x1]
      %v835 = vld [vmem:[%s448 + $0x128] sm:$0x1]
      %v836 = vld [vmem:[%s448 + $0x12c] sm:$0x1]
      %v837 = vld [vmem:[%s448 + $0x130] sm:$0x1]
      %v838 = vld [vmem:[%s448 + $0x134] sm:$0x1]
      %v839 = vld [vmem:[%s448 + $0x138] sm:$0x1]
      %v840 = vld [vmem:[%s448 + $0x13c] sm:$0x1]
      %v841 = vld [vmem:[%s448 + $0x140] sm:$0x1]
      %v842 = vld [vmem:[%s448 + $0x144] sm:$0x1]
      %v843 = vld [vmem:[%s448 + $0x148] sm:$0x1]
      %v844 = vld [vmem:[%s448 + $0x14c] sm:$0x1]
      %v845 = vld [vmem:[%s448 + $0x150] sm:$0x1]
      %v846 = vld [vmem:[%s448 + $0x154] sm:$0x1]
      %v847 = vld [vmem:[%s448 + $0x158] sm:$0x1]
      %v848 = vld [vmem:[%s448 + $0x15c] sm:$0x1]
      %v849 = vld [vmem:[%s448 + $0x160] sm:$0x1]
      %v850 = vld [vmem:[%s448 + $0x164] sm:$0x1]
      %v851 = vld [vmem:[%s448 + $0x168] sm:$0x1]
      %v852 = vld [vmem:[%s448 + $0x16c] sm:$0x1]
      %v853 = vld [vmem:[%s448 + $0x170] sm:$0x1]
      %v854 = vld [vmem:[%s448 + $0x174] sm:$0x1]
      %v855 = vld [vmem:[%s448 + $0x178] sm:$0x1]
      %v856 = vld [vmem:[%s448 + $0x17c] sm:$0x1]
      %v857 = vld [vmem:[%s448 + $0x180] sm:$0x1]
      %v858 = vld [vmem:[%s448 + $0x184] sm:$0x1]
      %v859 = vld [vmem:[%s448 + $0x188] sm:$0x1]
      %v860 = vld [vmem:[%s448 + $0x18c] sm:$0x1]
      %v861 = vld [vmem:[%s448 + $0x190] sm:$0x1]
      %v862 = vld [vmem:[%s448 + $0x194] sm:$0x1]
      %v863 = vld [vmem:[%s448 + $0x198] sm:$0x1]
      %v864 = vld [vmem:[%s448 + $0x19c] sm:$0x1]
      %v865 = vld [vmem:[%s448 + $0x1a0] sm:$0x1]
      %v866 = vld [vmem:[%s448 + $0x1a4] sm:$0x1]
      %v867 = vld [vmem:[%s448 + $0x1a8] sm:$0x1]
      %v868 = vld [vmem:[%s448 + $0x1ac] sm:$0x1]
      %v869 = vld [vmem:[%s448 + $0x1b0] sm:$0x1]
      %v870 = vld [vmem:[%s448 + $0x1b4] sm:$0x1]
      %v871 = vld [vmem:[%s448 + $0x1b8] sm:$0x1]
      %v872 = vld [vmem:[%s448 + $0x1bc] sm:$0x1]
      %v873 = vld [vmem:[%s448 + $0x1c0] sm:$0x1]
      %v874 = vld [vmem:[%s448 + $0x1c4] sm:$0x1]
      %v875 = vld [vmem:[%s448 + $0x1c8] sm:$0x1]
      %v876 = vld [vmem:[%s448 + $0x1cc] sm:$0x1]
      %v877 = vld [vmem:[%s448 + $0x1d0] sm:$0x1]
      %v878 = vld [vmem:[%s448 + $0x1d4] sm:$0x1]
      %v879 = vld [vmem:[%s448 + $0x1d8] sm:$0x1]
      %v880 = vld [vmem:[%s448 + $0x1dc] sm:$0x1]
      %v881 = vld [vmem:[%s448 + $0x1e0] sm:$0x1]
      %v882 = vld [vmem:[%s448 + $0x1e4] sm:$0x1]
      %v883 = vld [vmem:[%s448 + $0x1e8] sm:$0x1]
      %v884 = vld [vmem:[%s448 + $0x1ec] sm:$0x1]
      %v885 = vld [vmem:[%s448 + $0x1f0] sm:$0x1]
      %v886 = vld [vmem:[%s448 + $0x1f4] sm:$0x1]
      %v887 = vld [vmem:[%s448 + $0x1f8] sm:$0x1]
      %v888 = vld [vmem:[%s448 + $0x1fc] sm:$0x1]
      %v889 = vunpack.c.l.bf16 %v761
      %v890 = vunpack.c.l.bf16 %v762
      %v891 = vunpack.c.l.bf16 %v763
      %v892 = vunpack.c.l.bf16 %v764
      %v893 = vunpack.c.l.bf16 %v765
      %v894 = vunpack.c.l.bf16 %v766
      %v895 = vunpack.c.l.bf16 %v767
      %v896 = vunpack.c.l.bf16 %v768
      %v897 = vunpack.c.l.bf16 %v769
      %v898 = vunpack.c.l.bf16 %v770
      %v899 = vunpack.c.l.bf16 %v771
      %v900 = vunpack.c.l.bf16 %v772
      %v901 = vunpack.c.l.bf16 %v773
      %v902 = vunpack.c.l.bf16 %v774
      %v903 = vunpack.c.l.bf16 %v775
      %v904 = vunpack.c.l.bf16 %v776
      %v905 = vunpack.c.l.bf16 %v777
      %v906 = vunpack.c.l.bf16 %v778
      %v907 = vunpack.c.l.bf16 %v779
      %v908 = vunpack.c.l.bf16 %v780
      %v909 = vunpack.c.l.bf16 %v781
      %v910 = vunpack.c.l.bf16 %v782
      %v911 = vunpack.c.l.bf16 %v783
      %v912 = vunpack.c.l.bf16 %v784
      %v913 = vunpack.c.l.bf16 %v785
      %v914 = vunpack.c.l.bf16 %v786
      %v915 = vunpack.c.l.bf16 %v787
      %v916 = vunpack.c.l.bf16 %v788
      %v917 = vunpack.c.l.bf16 %v789
      %v918 = vunpack.c.l.bf16 %v790
      %v919 = vunpack.c.l.bf16 %v791
      %v920 = vunpack.c.l.bf16 %v792
      %v921 = vunpack.c.l.bf16 %v793
      %v922 = vunpack.c.l.bf16 %v794
      %v923 = vunpack.c.l.bf16 %v795
      %v924 = vunpack.c.l.bf16 %v796
      %v925 = vunpack.c.l.bf16 %v797
      %v926 = vunpack.c.l.bf16 %v798
      %v927 = vunpack.c.l.bf16 %v799
      %v928 = vunpack.c.l.bf16 %v800
      %v929 = vunpack.c.l.bf16 %v801
      %v930 = vunpack.c.l.bf16 %v802
      %v931 = vunpack.c.l.bf16 %v803
      %v932 = vunpack.c.l.bf16 %v804
      %v933 = vunpack.c.l.bf16 %v805
      %v934 = vunpack.c.l.bf16 %v806
      %v935 = vunpack.c.l.bf16 %v807
      %v936 = vunpack.c.l.bf16 %v808
      %v937 = vunpack.c.l.bf16 %v809
      %v938 = vunpack.c.l.bf16 %v810
      %v939 = vunpack.c.l.bf16 %v811
      %v940 = vunpack.c.l.bf16 %v812
      %v941 = vunpack.c.l.bf16 %v813
      %v942 = vunpack.c.l.bf16 %v814
      %v943 = vunpack.c.l.bf16 %v815
      %v944 = vunpack.c.l.bf16 %v816
      %v945 = vunpack.c.l.bf16 %v817
      %v946 = vunpack.c.l.bf16 %v818
      %v947 = vunpack.c.l.bf16 %v819
      %v948 = vunpack.c.l.bf16 %v820
      %v949 = vunpack.c.l.bf16 %v821
      %v950 = vunpack.c.l.bf16 %v822
      %v951 = vunpack.c.l.bf16 %v823
      %v952 = vunpack.c.l.bf16 %v824
      %v953 = vunpack.c.l.bf16 %v825
      %v954 = vunpack.c.l.bf16 %v826
      %v955 = vunpack.c.l.bf16 %v827
      %v956 = vunpack.c.l.bf16 %v828
      %v957 = vunpack.c.l.bf16 %v829
      %v958 = vunpack.c.l.bf16 %v830
      %v959 = vunpack.c.l.bf16 %v831
      %v960 = vunpack.c.l.bf16 %v832
      %v961 = vunpack.c.l.bf16 %v833
      %v962 = vunpack.c.l.bf16 %v834
      %v963 = vunpack.c.l.bf16 %v835
      %v964 = vunpack.c.l.bf16 %v836
      %v965 = vunpack.c.l.bf16 %v837
      %v966 = vunpack.c.l.bf16 %v838
      %v967 = vunpack.c.l.bf16 %v839
      %v968 = vunpack.c.l.bf16 %v840
      %v969 = vunpack.c.l.bf16 %v841
      %v970 = vunpack.c.l.bf16 %v842
      %v971 = vunpack.c.l.bf16 %v843
      %v972 = vunpack.c.l.bf16 %v844
      %v973 = vunpack.c.l.bf16 %v845
      %v974 = vunpack.c.l.bf16 %v846
      %v975 = vunpack.c.l.bf16 %v847
      %v976 = vunpack.c.l.bf16 %v848
      %v977 = vunpack.c.l.bf16 %v849
      %v978 = vunpack.c.l.bf16 %v850
      %v979 = vunpack.c.l.bf16 %v851
      %v980 = vunpack.c.l.bf16 %v852
      %v981 = vunpack.c.l.bf16 %v853
      %v982 = vunpack.c.l.bf16 %v854
      %v983 = vunpack.c.l.bf16 %v855
      %v984 = vunpack.c.l.bf16 %v856
      %v985 = vunpack.c.l.bf16 %v857
      %v986 = vunpack.c.l.bf16 %v858
      %v987 = vunpack.c.l.bf16 %v859
      %v988 = vunpack.c.l.bf16 %v860
      %v989 = vunpack.c.l.bf16 %v861
      %v990 = vunpack.c.l.bf16 %v862
      %v991 = vunpack.c.l.bf16 %v863
      %v992 = vunpack.c.l.bf16 %v864
      %v993 = vunpack.c.l.bf16 %v865
      %v994 = vunpack.c.l.bf16 %v866
      %v995 = vunpack.c.l.bf16 %v867
      %v996 = vunpack.c.l.bf16 %v868
      %v997 = vunpack.c.l.bf16 %v869
      %v998 = vunpack.c.l.bf16 %v870
      %v999 = vunpack.c.l.bf16 %v871
      %v1000 = vunpack.c.l.bf16 %v872
      %v1001 = vunpack.c.l.bf16 %v873
      %v1002 = vunpack.c.l.bf16 %v874
      %v1003 = vunpack.c.l.bf16 %v875
      %v1004 = vunpack.c.l.bf16 %v876
      %v1005 = vunpack.c.l.bf16 %v877
      %v1006 = vunpack.c.l.bf16 %v878
      %v1007 = vunpack.c.l.bf16 %v879
      %v1008 = vunpack.c.l.bf16 %v880
      %v1009 = vunpack.c.l.bf16 %v881
      %v1010 = vunpack.c.l.bf16 %v882
      %v1011 = vunpack.c.l.bf16 %v883
      %v1012 = vunpack.c.l.bf16 %v884
      %v1013 = vunpack.c.l.bf16 %v885
      %v1014 = vunpack.c.l.bf16 %v886
      %v1015 = vunpack.c.l.bf16 %v887
      %v1016 = vunpack.c.l.bf16 %v888
      %v1145 = vrot.slane %v890, 7
      %vm1146 = vcmask 1041409
      %v1147 = vsel %vm1146, %v1145, %v889
      %v1148 = vrot.slane %v891, 6
      %vm1149 = vcmask 1042434
      %v1150 = vsel %vm1149, %v1148, %v1147
      %v1151 = vrot.slane %v892, 5
      %vm1152 = vcmask 1043459
      %v1153 = vsel %vm1152, %v1151, %v1150
      %v1154 = vrot.slane %v893, 4
      %vm1155 = vcmask 1044484
      %v1156 = vsel %vm1155, %v1154, %v1153
      %v1157 = vrot.slane %v894, 3
      %vm1158 = vcmask 1045509
      %v1159 = vsel %vm1158, %v1157, %v1156
      %v1160 = vrot.slane %v895, 2
      %vm1161 = vcmask 1046534
      %v1162 = vsel %vm1161, %v1160, %v1159
      %v1163 = vrot.slane %v896, 1
      %vm1164 = vcmask 1047559
      %v1165 = vsel %vm1164, %v1163, %v1162
      %v1166 = vrot.slane %v898, 7
      %v1167 = vsel %vm1146, %v1166, %v897
      %v1168 = vrot.slane %v899, 6
      %v1169 = vsel %vm1149, %v1168, %v1167
      %v1170 = vrot.slane %v900, 5
      %v1171 = vsel %vm1152, %v1170, %v1169
      %v1172 = vrot.slane %v901, 4
      %v1173 = vsel %vm1155, %v1172, %v1171
      %v1174 = vrot.slane %v902, 3
      %v1175 = vsel %vm1158, %v1174, %v1173
      %v1176 = vrot.slane %v903, 2
      %v1177 = vsel %vm1161, %v1176, %v1175
      %v1178 = vrot.slane %v904, 1
      %v1179 = vsel %vm1164, %v1178, %v1177
      %v1180 = vrot.slane %v906, 7
      %v1181 = vsel %vm1146, %v1180, %v905
      %v1182 = vrot.slane %v907, 6
      %v1183 = vsel %vm1149, %v1182, %v1181
      %v1184 = vrot.slane %v908, 5
      %v1185 = vsel %vm1152, %v1184, %v1183
      %v1186 = vrot.slane %v909, 4
      %v1187 = vsel %vm1155, %v1186, %v1185
      %v1188 = vrot.slane %v910, 3
      %v1189 = vsel %vm1158, %v1188, %v1187
      %v1190 = vrot.slane %v911, 2
      %v1191 = vsel %vm1161, %v1190, %v1189
      %v1192 = vrot.slane %v912, 1
      %v1193 = vsel %vm1164, %v1192, %v1191
      %v1194 = vrot.slane %v914, 7
      %v1195 = vsel %vm1146, %v1194, %v913
      %v1196 = vrot.slane %v915, 6
      %v1197 = vsel %vm1149, %v1196, %v1195
      %v1198 = vrot.slane %v916, 5
      %v1199 = vsel %vm1152, %v1198, %v1197
      %v1200 = vrot.slane %v917, 4
      %v1201 = vsel %vm1155, %v1200, %v1199
      %v1202 = vrot.slane %v918, 3
      %v1203 = vsel %vm1158, %v1202, %v1201
      %v1204 = vrot.slane %v919, 2
      %v1205 = vsel %vm1161, %v1204, %v1203
      %v1206 = vrot.slane %v920, 1
      %v1207 = vsel %vm1164, %v1206, %v1205
      %v1208 = vrot.slane %v922, 7
      %v1209 = vsel %vm1146, %v1208, %v921
      %v1210 = vrot.slane %v923, 6
      %v1211 = vsel %vm1149, %v1210, %v1209
      %v1212 = vrot.slane %v924, 5
      %v1213 = vsel %vm1152, %v1212, %v1211
      %v1214 = vrot.slane %v925, 4
      %v1215 = vsel %vm1155, %v1214, %v1213
      %v1216 = vrot.slane %v926, 3
      %v1217 = vsel %vm1158, %v1216, %v1215
      %v1218 = vrot.slane %v927, 2
      %v1219 = vsel %vm1161, %v1218, %v1217
      %v1220 = vrot.slane %v928, 1
      %v1221 = vsel %vm1164, %v1220, %v1219
      %v1222 = vrot.slane %v930, 7
      %v1223 = vsel %vm1146, %v1222, %v929
      %v1224 = vrot.slane %v931, 6
      %v1225 = vsel %vm1149, %v1224, %v1223
      %v1226 = vrot.slane %v932, 5
      %v1227 = vsel %vm1152, %v1226, %v1225
      %v1228 = vrot.slane %v933, 4
      %v1229 = vsel %vm1155, %v1228, %v1227
      %v1230 = vrot.slane %v934, 3
      %v1231 = vsel %vm1158, %v1230, %v1229
      %v1232 = vrot.slane %v935, 2
      %v1233 = vsel %vm1161, %v1232, %v1231
      %v1234 = vrot.slane %v936, 1
      %v1235 = vsel %vm1164, %v1234, %v1233
      %v1236 = vrot.slane %v938, 7
      %v1237 = vsel %vm1146, %v1236, %v937
      %v1238 = vrot.slane %v939, 6
      %v1239 = vsel %vm1149, %v1238, %v1237
      %v1240 = vrot.slane %v940, 5
      %v1241 = vsel %vm1152, %v1240, %v1239
      %v1242 = vrot.slane %v941, 4
      %v1243 = vsel %vm1155, %v1242, %v1241
      %v1244 = vrot.slane %v942, 3
      %v1245 = vsel %vm1158, %v1244, %v1243
      %v1246 = vrot.slane %v943, 2
      %v1247 = vsel %vm1161, %v1246, %v1245
      %v1248 = vrot.slane %v944, 1
      %v1249 = vsel %vm1164, %v1248, %v1247
      %v1250 = vrot.slane %v946, 7
      %v1251 = vsel %vm1146, %v1250, %v945
      %v1252 = vrot.slane %v947, 6
      %v1253 = vsel %vm1149, %v1252, %v1251
      %v1254 = vrot.slane %v948, 5
      %v1255 = vsel %vm1152, %v1254, %v1253
      %v1256 = vrot.slane %v949, 4
      %v1257 = vsel %vm1155, %v1256, %v1255
      %v1258 = vrot.slane %v950, 3
      %v1259 = vsel %vm1158, %v1258, %v1257
      %v1260 = vrot.slane %v951, 2
      %v1261 = vsel %vm1161, %v1260, %v1259
      %v1262 = vrot.slane %v952, 1
      %v1263 = vsel %vm1164, %v1262, %v1261
      %v1264 = vrot.slane %v954, 7
      %v1265 = vsel %vm1146, %v1264, %v953
      %v1266 = vrot.slane %v955, 6
      %v1267 = vsel %vm1149, %v1266, %v1265
      %v1268 = vrot.slane %v956, 5
      %v1269 = vsel %vm1152, %v1268, %v1267
      %v1270 = vrot.slane %v957, 4
      %v1271 = vsel %vm1155, %v1270, %v1269
      %v1272 = vrot.slane %v958, 3
      %v1273 = vsel %vm1158, %v1272, %v1271
      %v1274 = vrot.slane %v959, 2
      %v1275 = vsel %vm1161, %v1274, %v1273
      %v1276 = vrot.slane %v960, 1
      %v1277 = vsel %vm1164, %v1276, %v1275
      %v1278 = vrot.slane %v962, 7
      %v1279 = vsel %vm1146, %v1278, %v961
      %v1280 = vrot.slane %v963, 6
      %v1281 = vsel %vm1149, %v1280, %v1279
      %v1282 = vrot.slane %v964, 5
      %v1283 = vsel %vm1152, %v1282, %v1281
      %v1284 = vrot.slane %v965, 4
      %v1285 = vsel %vm1155, %v1284, %v1283
      %v1286 = vrot.slane %v966, 3
      %v1287 = vsel %vm1158, %v1286, %v1285
      %v1288 = vrot.slane %v967, 2
      %v1289 = vsel %vm1161, %v1288, %v1287
      %v1290 = vrot.slane %v968, 1
      %v1291 = vsel %vm1164, %v1290, %v1289
      %v1292 = vrot.slane %v970, 7
      %v1293 = vsel %vm1146, %v1292, %v969
      %v1294 = vrot.slane %v971, 6
      %v1295 = vsel %vm1149, %v1294, %v1293
      %v1296 = vrot.slane %v972, 5
      %v1297 = vsel %vm1152, %v1296, %v1295
      %v1298 = vrot.slane %v973, 4
      %v1299 = vsel %vm1155, %v1298, %v1297
      %v1300 = vrot.slane %v974, 3
      %v1301 = vsel %vm1158, %v1300, %v1299
      %v1302 = vrot.slane %v975, 2
      %v1303 = vsel %vm1161, %v1302, %v1301
      %v1304 = vrot.slane %v976, 1
      %v1305 = vsel %vm1164, %v1304, %v1303
      %v1306 = vrot.slane %v978, 7
      %v1307 = vsel %vm1146, %v1306, %v977
      %v1308 = vrot.slane %v979, 6
      %v1309 = vsel %vm1149, %v1308, %v1307
      %v1310 = vrot.slane %v980, 5
      %v1311 = vsel %vm1152, %v1310, %v1309
      %v1312 = vrot.slane %v981, 4
      %v1313 = vsel %vm1155, %v1312, %v1311
      %v1314 = vrot.slane %v982, 3
      %v1315 = vsel %vm1158, %v1314, %v1313
      %v1316 = vrot.slane %v983, 2
      %v1317 = vsel %vm1161, %v1316, %v1315
      %v1318 = vrot.slane %v984, 1
      %v1319 = vsel %vm1164, %v1318, %v1317
      %v1320 = vrot.slane %v986, 7
      %v1321 = vsel %vm1146, %v1320, %v985
      %v1322 = vrot.slane %v987, 6
      %v1323 = vsel %vm1149, %v1322, %v1321
      %v1324 = vrot.slane %v988, 5
      %v1325 = vsel %vm1152, %v1324, %v1323
      %v1326 = vrot.slane %v989, 4
      %v1327 = vsel %vm1155, %v1326, %v1325
      %v1328 = vrot.slane %v990, 3
      %v1329 = vsel %vm1158, %v1328, %v1327
      %v1330 = vrot.slane %v991, 2
      %v1331 = vsel %vm1161, %v1330, %v1329
      %v1332 = vrot.slane %v992, 1
      %v1333 = vsel %vm1164, %v1332, %v1331
      %v1334 = vrot.slane %v994, 7
      %v1335 = vsel %vm1146, %v1334, %v993
      %v1336 = vrot.slane %v995, 6
      %v1337 = vsel %vm1149, %v1336, %v1335
      %v1338 = vrot.slane %v996, 5
      %v1339 = vsel %vm1152, %v1338, %v1337
      %v1340 = vrot.slane %v997, 4
      %v1341 = vsel %vm1155, %v1340, %v1339
      %v1342 = vrot.slane %v998, 3
      %v1343 = vsel %vm1158, %v1342, %v1341
      %v1344 = vrot.slane %v999, 2
      %v1345 = vsel %vm1161, %v1344, %v1343
      %v1346 = vrot.slane %v1000, 1
      %v1347 = vsel %vm1164, %v1346, %v1345
      %v1348 = vrot.slane %v1002, 7
      %v1349 = vsel %vm1146, %v1348, %v1001
      %v1350 = vrot.slane %v1003, 6
      %v1351 = vsel %vm1149, %v1350, %v1349
      %v1352 = vrot.slane %v1004, 5
      %v1353 = vsel %vm1152, %v1352, %v1351
      %v1354 = vrot.slane %v1005, 4
      %v1355 = vsel %vm1155, %v1354, %v1353
      %v1356 = vrot.slane %v1006, 3
      %v1357 = vsel %vm1158, %v1356, %v1355
      %v1358 = vrot.slane %v1007, 2
      %v1359 = vsel %vm1161, %v1358, %v1357
      %v1360 = vrot.slane %v1008, 1
      %v1361 = vsel %vm1164, %v1360, %v1359
      %v1362 = vrot.slane %v1010, 7
      %v1363 = vsel %vm1146, %v1362, %v1009
      %v1364 = vrot.slane %v1011, 6
      %v1365 = vsel %vm1149, %v1364, %v1363
      %v1366 = vrot.slane %v1012, 5
      %v1367 = vsel %vm1152, %v1366, %v1365
      %v1368 = vrot.slane %v1013, 4
      %v1369 = vsel %vm1155, %v1368, %v1367
      %v1370 = vrot.slane %v1014, 3
      %v1371 = vsel %vm1158, %v1370, %v1369
      %v1372 = vrot.slane %v1015, 2
      %v1373 = vsel %vm1161, %v1372, %v1371
      %v1374 = vrot.slane %v1016, 1
      %v1375 = vsel %vm1164, %v1374, %v1373
      %v1392 = vmul.f32 %v745, %v1165
      %v1393 = vmul.f32 %v746, %v1179
      %v1394 = vmul.f32 %v747, %v1193
      %v1395 = vmul.f32 %v748, %v1207
      %v1396 = vmul.f32 %v749, %v1221
      %v1397 = vmul.f32 %v750, %v1235
      %v1398 = vmul.f32 %v751, %v1249
      %v1399 = vmul.f32 %v752, %v1263
      %v1400 = vmul.f32 %v753, %v1277
      %v1401 = vmul.f32 %v754, %v1291
      %v1402 = vmul.f32 %v755, %v1305
      %v1403 = vmul.f32 %v756, %v1319
      %v1404 = vmul.f32 %v757, %v1333
      %v1405 = vmul.f32 %v758, %v1347
      %v1406 = vmul.f32 %v759, %v1361
      %v1407 = vmul.f32 %v760, %v1375
      %v1408 = vsel %vm667, %v1392, 0.0
      %1409 = vadd.xlane.f32.xlu0 %v1408
      %v1410 = vpop.xlane.xlu0 %1409
      %v1411 = vsel %vm667, %v1393, 0.0
      %1412 = vadd.xlane.f32.xlu0 %v1411
      %v1413 = vpop.xlane.xlu0 %1412
      %v1414 = vsel %vm667, %v1394, 0.0
      %1415 = vadd.xlane.f32.xlu0 %v1414
      %v1416 = vpop.xlane.xlu0 %1415
      %v1417 = vsel %vm667, %v1395, 0.0
      %1418 = vadd.xlane.f32.xlu0 %v1417
      %v1419 = vpop.xlane.xlu0 %1418
      %v1420 = vsel %vm667, %v1396, 0.0
      %1421 = vadd.xlane.f32.xlu0 %v1420
      %v1422 = vpop.xlane.xlu0 %1421
      %v1423 = vsel %vm667, %v1397, 0.0
      %1424 = vadd.xlane.f32.xlu0 %v1423
      %v1425 = vpop.xlane.xlu0 %1424
      %v1426 = vsel %vm667, %v1398, 0.0
      %1427 = vadd.xlane.f32.xlu0 %v1426
      %v1428 = vpop.xlane.xlu0 %1427
      %v1429 = vsel %vm667, %v1399, 0.0
      %1430 = vadd.xlane.f32.xlu0 %v1429
      %v1431 = vpop.xlane.xlu0 %1430
      %v1432 = vsel %vm667, %v1400, 0.0
      %1433 = vadd.xlane.f32.xlu0 %v1432
      %v1434 = vpop.xlane.xlu0 %1433
      %v1435 = vsel %vm667, %v1401, 0.0
      %1436 = vadd.xlane.f32.xlu0 %v1435
      %v1437 = vpop.xlane.xlu0 %1436
      %v1438 = vsel %vm667, %v1402, 0.0
      %1439 = vadd.xlane.f32.xlu0 %v1438
      %v1440 = vpop.xlane.xlu0 %1439
      %v1441 = vsel %vm667, %v1403, 0.0
      %1442 = vadd.xlane.f32.xlu0 %v1441
      %v1443 = vpop.xlane.xlu0 %1442
      %v1444 = vsel %vm667, %v1404, 0.0
      %1445 = vadd.xlane.f32.xlu0 %v1444
      %v1446 = vpop.xlane.xlu0 %1445
      %v1447 = vsel %vm667, %v1405, 0.0
      %1448 = vadd.xlane.f32.xlu0 %v1447
      %v1449 = vpop.xlane.xlu0 %1448
      %v1450 = vsel %vm667, %v1406, 0.0
      %1451 = vadd.xlane.f32.xlu0 %v1450
      %v1452 = vpop.xlane.xlu0 %1451
      %v1453 = vsel %vm667, %v1407, 0.0
      %1454 = vadd.xlane.f32.xlu0 %v1453
      %v1455 = vpop.xlane.xlu0 %1454
      %v1456 = vrot.slane %v889, 1
      %v1457 = vsel %vm1146, %v890, %v1456
      %v1458 = vrot.slane %v891, 7
      %v1459 = vsel %vm1149, %v1458, %v1457
      %v1460 = vrot.slane %v892, 6
      %v1461 = vsel %vm1152, %v1460, %v1459
      %v1462 = vrot.slane %v893, 5
      %v1463 = vsel %vm1155, %v1462, %v1461
      %v1464 = vrot.slane %v894, 4
      %v1465 = vsel %vm1158, %v1464, %v1463
      %v1466 = vrot.slane %v895, 3
      %v1467 = vsel %vm1161, %v1466, %v1465
      %v1468 = vrot.slane %v896, 2
      %v1469 = vsel %vm1164, %v1468, %v1467
      %v1470 = vrot.slane %v897, 1
      %v1471 = vsel %vm1146, %v898, %v1470
      %v1472 = vrot.slane %v899, 7
      %v1473 = vsel %vm1149, %v1472, %v1471
      %v1474 = vrot.slane %v900, 6
      %v1475 = vsel %vm1152, %v1474, %v1473
      %v1476 = vrot.slane %v901, 5
      %v1477 = vsel %vm1155, %v1476, %v1475
      %v1478 = vrot.slane %v902, 4
      %v1479 = vsel %vm1158, %v1478, %v1477
      %v1480 = vrot.slane %v903, 3
      %v1481 = vsel %vm1161, %v1480, %v1479
      %v1482 = vrot.slane %v904, 2
      %v1483 = vsel %vm1164, %v1482, %v1481
      %v1484 = vrot.slane %v905, 1
      %v1485 = vsel %vm1146, %v906, %v1484
      %v1486 = vrot.slane %v907, 7
      %v1487 = vsel %vm1149, %v1486, %v1485
      %v1488 = vrot.slane %v908, 6
      %v1489 = vsel %vm1152, %v1488, %v1487
      %v1490 = vrot.slane %v909, 5
      %v1491 = vsel %vm1155, %v1490, %v1489
      %v1492 = vrot.slane %v910, 4
      %v1493 = vsel %vm1158, %v1492, %v1491
      %v1494 = vrot.slane %v911, 3
      %v1495 = vsel %vm1161, %v1494, %v1493
      %v1496 = vrot.slane %v912, 2
      %v1497 = vsel %vm1164, %v1496, %v1495
      %v1498 = vrot.slane %v913, 1
      %v1499 = vsel %vm1146, %v914, %v1498
      %v1500 = vrot.slane %v915, 7
      %v1501 = vsel %vm1149, %v1500, %v1499
      %v1502 = vrot.slane %v916, 6
      %v1503 = vsel %vm1152, %v1502, %v1501
      %v1504 = vrot.slane %v917, 5
      %v1505 = vsel %vm1155, %v1504, %v1503
      %v1506 = vrot.slane %v918, 4
      %v1507 = vsel %vm1158, %v1506, %v1505
      %v1508 = vrot.slane %v919, 3
      %v1509 = vsel %vm1161, %v1508, %v1507
      %v1510 = vrot.slane %v920, 2
      %v1511 = vsel %vm1164, %v1510, %v1509
      %v1512 = vrot.slane %v921, 1
      %v1513 = vsel %vm1146, %v922, %v1512
      %v1514 = vrot.slane %v923, 7
      %v1515 = vsel %vm1149, %v1514, %v1513
      %v1516 = vrot.slane %v924, 6
      %v1517 = vsel %vm1152, %v1516, %v1515
      %v1518 = vrot.slane %v925, 5
      %v1519 = vsel %vm1155, %v1518, %v1517
      %v1520 = vrot.slane %v926, 4
      %v1521 = vsel %vm1158, %v1520, %v1519
      %v1522 = vrot.slane %v927, 3
      %v1523 = vsel %vm1161, %v1522, %v1521
      %v1524 = vrot.slane %v928, 2
      %v1525 = vsel %vm1164, %v1524, %v1523
      %v1526 = vrot.slane %v929, 1
      %v1527 = vsel %vm1146, %v930, %v1526
      %v1528 = vrot.slane %v931, 7
      %v1529 = vsel %vm1149, %v1528, %v1527
      %v1530 = vrot.slane %v932, 6
      %v1531 = vsel %vm1152, %v1530, %v1529
      %v1532 = vrot.slane %v933, 5
      %v1533 = vsel %vm1155, %v1532, %v1531
      %v1534 = vrot.slane %v934, 4
      %v1535 = vsel %vm1158, %v1534, %v1533
      %v1536 = vrot.slane %v935, 3
      %v1537 = vsel %vm1161, %v1536, %v1535
      %v1538 = vrot.slane %v936, 2
      %v1539 = vsel %vm1164, %v1538, %v1537
      %v1540 = vrot.slane %v937, 1
      %v1541 = vsel %vm1146, %v938, %v1540
      %v1542 = vrot.slane %v939, 7
      %v1543 = vsel %vm1149, %v1542, %v1541
      %v1544 = vrot.slane %v940, 6
      %v1545 = vsel %vm1152, %v1544, %v1543
      %v1546 = vrot.slane %v941, 5
      %v1547 = vsel %vm1155, %v1546, %v1545
      %v1548 = vrot.slane %v942, 4
      %v1549 = vsel %vm1158, %v1548, %v1547
      %v1550 = vrot.slane %v943, 3
      %v1551 = vsel %vm1161, %v1550, %v1549
      %v1552 = vrot.slane %v944, 2
      %v1553 = vsel %vm1164, %v1552, %v1551
      %v1554 = vrot.slane %v945, 1
      %v1555 = vsel %vm1146, %v946, %v1554
      %v1556 = vrot.slane %v947, 7
      %v1557 = vsel %vm1149, %v1556, %v1555
      %v1558 = vrot.slane %v948, 6
      %v1559 = vsel %vm1152, %v1558, %v1557
      %v1560 = vrot.slane %v949, 5
      %v1561 = vsel %vm1155, %v1560, %v1559
      %v1562 = vrot.slane %v950, 4
      %v1563 = vsel %vm1158, %v1562, %v1561
      %v1564 = vrot.slane %v951, 3
      %v1565 = vsel %vm1161, %v1564, %v1563
      %v1566 = vrot.slane %v952, 2
      %v1567 = vsel %vm1164, %v1566, %v1565
      %v1568 = vrot.slane %v953, 1
      %v1569 = vsel %vm1146, %v954, %v1568
      %v1570 = vrot.slane %v955, 7
      %v1571 = vsel %vm1149, %v1570, %v1569
      %v1572 = vrot.slane %v956, 6
      %v1573 = vsel %vm1152, %v1572, %v1571
      %v1574 = vrot.slane %v957, 5
      %v1575 = vsel %vm1155, %v1574, %v1573
      %v1576 = vrot.slane %v958, 4
      %v1577 = vsel %vm1158, %v1576, %v1575
      %v1578 = vrot.slane %v959, 3
      %v1579 = vsel %vm1161, %v1578, %v1577
      %v1580 = vrot.slane %v960, 2
      %v1581 = vsel %vm1164, %v1580, %v1579
      %v1582 = vrot.slane %v961, 1
      %v1583 = vsel %vm1146, %v962, %v1582
      %v1584 = vrot.slane %v963, 7
      %v1585 = vsel %vm1149, %v1584, %v1583
      %v1586 = vrot.slane %v964, 6
      %v1587 = vsel %vm1152, %v1586, %v1585
      %v1588 = vrot.slane %v965, 5
      %v1589 = vsel %vm1155, %v1588, %v1587
      %v1590 = vrot.slane %v966, 4
      %v1591 = vsel %vm1158, %v1590, %v1589
      %v1592 = vrot.slane %v967, 3
      %v1593 = vsel %vm1161, %v1592, %v1591
      %v1594 = vrot.slane %v968, 2
      %v1595 = vsel %vm1164, %v1594, %v1593
      %v1596 = vrot.slane %v969, 1
      %v1597 = vsel %vm1146, %v970, %v1596
      %v1598 = vrot.slane %v971, 7
      %v1599 = vsel %vm1149, %v1598, %v1597
      %v1600 = vrot.slane %v972, 6
      %v1601 = vsel %vm1152, %v1600, %v1599
      %v1602 = vrot.slane %v973, 5
      %v1603 = vsel %vm1155, %v1602, %v1601
      %v1604 = vrot.slane %v974, 4
      %v1605 = vsel %vm1158, %v1604, %v1603
      %v1606 = vrot.slane %v975, 3
      %v1607 = vsel %vm1161, %v1606, %v1605
      %v1608 = vrot.slane %v976, 2
      %v1609 = vsel %vm1164, %v1608, %v1607
      %v1610 = vrot.slane %v977, 1
      %v1611 = vsel %vm1146, %v978, %v1610
      %v1612 = vrot.slane %v979, 7
      %v1613 = vsel %vm1149, %v1612, %v1611
      %v1614 = vrot.slane %v980, 6
      %v1615 = vsel %vm1152, %v1614, %v1613
      %v1616 = vrot.slane %v981, 5
      %v1617 = vsel %vm1155, %v1616, %v1615
      %v1618 = vrot.slane %v982, 4
      %v1619 = vsel %vm1158, %v1618, %v1617
      %v1620 = vrot.slane %v983, 3
      %v1621 = vsel %vm1161, %v1620, %v1619
      %v1622 = vrot.slane %v984, 2
      %v1623 = vsel %vm1164, %v1622, %v1621
      %v1624 = vrot.slane %v985, 1
      %v1625 = vsel %vm1146, %v986, %v1624
      %v1626 = vrot.slane %v987, 7
      %v1627 = vsel %vm1149, %v1626, %v1625
      %v1628 = vrot.slane %v988, 6
      %v1629 = vsel %vm1152, %v1628, %v1627
      %v1630 = vrot.slane %v989, 5
      %v1631 = vsel %vm1155, %v1630, %v1629
      %v1632 = vrot.slane %v990, 4
      %v1633 = vsel %vm1158, %v1632, %v1631
      %v1634 = vrot.slane %v991, 3
      %v1635 = vsel %vm1161, %v1634, %v1633
      %v1636 = vrot.slane %v992, 2
      %v1637 = vsel %vm1164, %v1636, %v1635
      %v1638 = vrot.slane %v993, 1
      %v1639 = vsel %vm1146, %v994, %v1638
      %v1640 = vrot.slane %v995, 7
      %v1641 = vsel %vm1149, %v1640, %v1639
      %v1642 = vrot.slane %v996, 6
      %v1643 = vsel %vm1152, %v1642, %v1641
      %v1644 = vrot.slane %v997, 5
      %v1645 = vsel %vm1155, %v1644, %v1643
      %v1646 = vrot.slane %v998, 4
      %v1647 = vsel %vm1158, %v1646, %v1645
      %v1648 = vrot.slane %v999, 3
      %v1649 = vsel %vm1161, %v1648, %v1647
      %v1650 = vrot.slane %v1000, 2
      %v1651 = vsel %vm1164, %v1650, %v1649
      %v1652 = vrot.slane %v1001, 1
      %v1653 = vsel %vm1146, %v1002, %v1652
      %v1654 = vrot.slane %v1003, 7
      %v1655 = vsel %vm1149, %v1654, %v1653
      %v1656 = vrot.slane %v1004, 6
      %v1657 = vsel %vm1152, %v1656, %v1655
      %v1658 = vrot.slane %v1005, 5
      %v1659 = vsel %vm1155, %v1658, %v1657
      %v1660 = vrot.slane %v1006, 4
      %v1661 = vsel %vm1158, %v1660, %v1659
      %v1662 = vrot.slane %v1007, 3
      %v1663 = vsel %vm1161, %v1662, %v1661
      %v1664 = vrot.slane %v1008, 2
      %v1665 = vsel %vm1164, %v1664, %v1663
      %v1666 = vrot.slane %v1009, 1
      %v1667 = vsel %vm1146, %v1010, %v1666
      %v1668 = vrot.slane %v1011, 7
      %v1669 = vsel %vm1149, %v1668, %v1667
      %v1670 = vrot.slane %v1012, 6
      %v1671 = vsel %vm1152, %v1670, %v1669
      %v1672 = vrot.slane %v1013, 5
      %v1673 = vsel %vm1155, %v1672, %v1671
      %v1674 = vrot.slane %v1014, 4
      %v1675 = vsel %vm1158, %v1674, %v1673
      %v1676 = vrot.slane %v1015, 3
      %v1677 = vsel %vm1161, %v1676, %v1675
      %v1678 = vrot.slane %v1016, 2
      %v1679 = vsel %vm1164, %v1678, %v1677
      %v1696 = vmul.f32 %v745, %v1469
      %v1697 = vmul.f32 %v746, %v1483
      %v1698 = vmul.f32 %v747, %v1497
      %v1699 = vmul.f32 %v748, %v1511
      %v1700 = vmul.f32 %v749, %v1525
      %v1701 = vmul.f32 %v750, %v1539
      %v1702 = vmul.f32 %v751, %v1553
      %v1703 = vmul.f32 %v752, %v1567
      %v1704 = vmul.f32 %v753, %v1581
      %v1705 = vmul.f32 %v754, %v1595
      %v1706 = vmul.f32 %v755, %v1609
      %v1707 = vmul.f32 %v756, %v1623
      %v1708 = vmul.f32 %v757, %v1637
      %v1709 = vmul.f32 %v758, %v1651
      %v1710 = vmul.f32 %v759, %v1665
      %v1711 = vmul.f32 %v760, %v1679
      %v1712 = vsel %vm667, %v1696, 0.0
      %1713 = vadd.xlane.f32.xlu0 %v1712
      %v1714 = vpop.xlane.xlu0 %1713
      %v1715 = vsel %vm667, %v1697, 0.0
      %1716 = vadd.xlane.f32.xlu0 %v1715
      %v1717 = vpop.xlane.xlu0 %1716
      %v1718 = vsel %vm667, %v1698, 0.0
      %1719 = vadd.xlane.f32.xlu0 %v1718
      %v1720 = vpop.xlane.xlu0 %1719
      %v1721 = vsel %vm667, %v1699, 0.0
      %1722 = vadd.xlane.f32.xlu0 %v1721
      %v1723 = vpop.xlane.xlu0 %1722
      %v1724 = vsel %vm667, %v1700, 0.0
      %1725 = vadd.xlane.f32.xlu0 %v1724
      %v1726 = vpop.xlane.xlu0 %1725
      %v1727 = vsel %vm667, %v1701, 0.0
      %1728 = vadd.xlane.f32.xlu0 %v1727
      %v1729 = vpop.xlane.xlu0 %1728
      %v1730 = vsel %vm667, %v1702, 0.0
      %1731 = vadd.xlane.f32.xlu0 %v1730
      %v1732 = vpop.xlane.xlu0 %1731
      %v1733 = vsel %vm667, %v1703, 0.0
      %1734 = vadd.xlane.f32.xlu0 %v1733
      %v1735 = vpop.xlane.xlu0 %1734
      %v1736 = vsel %vm667, %v1704, 0.0
      %1737 = vadd.xlane.f32.xlu0 %v1736
      %v1738 = vpop.xlane.xlu0 %1737
      %v1739 = vsel %vm667, %v1705, 0.0
      %1740 = vadd.xlane.f32.xlu0 %v1739
      %v1741 = vpop.xlane.xlu0 %1740
      %v1742 = vsel %vm667, %v1706, 0.0
      %1743 = vadd.xlane.f32.xlu0 %v1742
      %v1744 = vpop.xlane.xlu0 %1743
      %v1745 = vsel %vm667, %v1707, 0.0
      %1746 = vadd.xlane.f32.xlu0 %v1745
      %v1747 = vpop.xlane.xlu0 %1746
      %v1748 = vsel %vm667, %v1708, 0.0
      %1749 = vadd.xlane.f32.xlu0 %v1748
      %v1750 = vpop.xlane.xlu0 %1749
      %v1751 = vsel %vm667, %v1709, 0.0
      %1752 = vadd.xlane.f32.xlu0 %v1751
      %v1753 = vpop.xlane.xlu0 %1752
      %v1754 = vsel %vm667, %v1710, 0.0
      %1755 = vadd.xlane.f32.xlu0 %v1754
      %v1756 = vpop.xlane.xlu0 %1755
      %v1757 = vsel %vm667, %v1711, 0.0
      %1758 = vadd.xlane.f32.xlu0 %v1757
      %v1759 = vpop.xlane.xlu0 %1758
      %v1760 = vld [vmem:[%s448] sm:$0x2]
      %v1761 = vld [vmem:[%s448 + $0x4] sm:$0x2]
      %v1762 = vld [vmem:[%s448 + $0x8] sm:$0x2]
      %v1763 = vld [vmem:[%s448 + $0xc] sm:$0x2]
      %v1764 = vld [vmem:[%s448 + $0x10] sm:$0x2]
      %v1765 = vld [vmem:[%s448 + $0x14] sm:$0x2]
      %v1766 = vld [vmem:[%s448 + $0x18] sm:$0x2]
      %v1767 = vld [vmem:[%s448 + $0x1c] sm:$0x2]
      %v1768 = vld [vmem:[%s448 + $0x20] sm:$0x2]
      %v1769 = vld [vmem:[%s448 + $0x24] sm:$0x2]
      %v1770 = vld [vmem:[%s448 + $0x28] sm:$0x2]
      %v1771 = vld [vmem:[%s448 + $0x2c] sm:$0x2]
      %v1772 = vld [vmem:[%s448 + $0x30] sm:$0x2]
      %v1773 = vld [vmem:[%s448 + $0x34] sm:$0x2]
      %v1774 = vld [vmem:[%s448 + $0x38] sm:$0x2]
      %v1775 = vld [vmem:[%s448 + $0x3c] sm:$0x2]
      %v1776 = vld [vmem:[%s448 + $0x40] sm:$0x2]
      %v1777 = vld [vmem:[%s448 + $0x44] sm:$0x2]
      %v1778 = vld [vmem:[%s448 + $0x48] sm:$0x2]
      %v1779 = vld [vmem:[%s448 + $0x4c] sm:$0x2]
      %v1780 = vld [vmem:[%s448 + $0x50] sm:$0x2]
      %v1781 = vld [vmem:[%s448 + $0x54] sm:$0x2]
      %v1782 = vld [vmem:[%s448 + $0x58] sm:$0x2]
      %v1783 = vld [vmem:[%s448 + $0x5c] sm:$0x2]
      %v1784 = vld [vmem:[%s448 + $0x60] sm:$0x2]
      %v1785 = vld [vmem:[%s448 + $0x64] sm:$0x2]
      %v1786 = vld [vmem:[%s448 + $0x68] sm:$0x2]
      %v1787 = vld [vmem:[%s448 + $0x6c] sm:$0x2]
      %v1788 = vld [vmem:[%s448 + $0x70] sm:$0x2]
      %v1789 = vld [vmem:[%s448 + $0x74] sm:$0x2]
      %v1790 = vld [vmem:[%s448 + $0x78] sm:$0x2]
      %v1791 = vld [vmem:[%s448 + $0x7c] sm:$0x2]
      %v1792 = vld [vmem:[%s448 + $0x80] sm:$0x2]
      %v1793 = vld [vmem:[%s448 + $0x84] sm:$0x2]
      %v1794 = vld [vmem:[%s448 + $0x88] sm:$0x2]
      %v1795 = vld [vmem:[%s448 + $0x8c] sm:$0x2]
      %v1796 = vld [vmem:[%s448 + $0x90] sm:$0x2]
      %v1797 = vld [vmem:[%s448 + $0x94] sm:$0x2]
      %v1798 = vld [vmem:[%s448 + $0x98] sm:$0x2]
      %v1799 = vld [vmem:[%s448 + $0x9c] sm:$0x2]
      %v1800 = vld [vmem:[%s448 + $0xa0] sm:$0x2]
      %v1801 = vld [vmem:[%s448 + $0xa4] sm:$0x2]
      %v1802 = vld [vmem:[%s448 + $0xa8] sm:$0x2]
      %v1803 = vld [vmem:[%s448 + $0xac] sm:$0x2]
      %v1804 = vld [vmem:[%s448 + $0xb0] sm:$0x2]
      %v1805 = vld [vmem:[%s448 + $0xb4] sm:$0x2]
      %v1806 = vld [vmem:[%s448 + $0xb8] sm:$0x2]
      %v1807 = vld [vmem:[%s448 + $0xbc] sm:$0x2]
      %v1808 = vld [vmem:[%s448 + $0xc0] sm:$0x2]
      %v1809 = vld [vmem:[%s448 + $0xc4] sm:$0x2]
      %v1810 = vld [vmem:[%s448 + $0xc8] sm:$0x2]
      %v1811 = vld [vmem:[%s448 + $0xcc] sm:$0x2]
      %v1812 = vld [vmem:[%s448 + $0xd0] sm:$0x2]
      %v1813 = vld [vmem:[%s448 + $0xd4] sm:$0x2]
      %v1814 = vld [vmem:[%s448 + $0xd8] sm:$0x2]
      %v1815 = vld [vmem:[%s448 + $0xdc] sm:$0x2]
      %v1816 = vld [vmem:[%s448 + $0xe0] sm:$0x2]
      %v1817 = vld [vmem:[%s448 + $0xe4] sm:$0x2]
      %v1818 = vld [vmem:[%s448 + $0xe8] sm:$0x2]
      %v1819 = vld [vmem:[%s448 + $0xec] sm:$0x2]
      %v1820 = vld [vmem:[%s448 + $0xf0] sm:$0x2]
      %v1821 = vld [vmem:[%s448 + $0xf4] sm:$0x2]
      %v1822 = vld [vmem:[%s448 + $0xf8] sm:$0x2]
      %v1823 = vld [vmem:[%s448 + $0xfc] sm:$0x2]
      %v1824 = vld [vmem:[%s448 + $0x100] sm:$0x2]
      %v1825 = vld [vmem:[%s448 + $0x104] sm:$0x2]
      %v1826 = vld [vmem:[%s448 + $0x108] sm:$0x2]
      %v1827 = vld [vmem:[%s448 + $0x10c] sm:$0x2]
      %v1828 = vld [vmem:[%s448 + $0x110] sm:$0x2]
      %v1829 = vld [vmem:[%s448 + $0x114] sm:$0x2]
      %v1830 = vld [vmem:[%s448 + $0x118] sm:$0x2]
      %v1831 = vld [vmem:[%s448 + $0x11c] sm:$0x2]
      %v1832 = vld [vmem:[%s448 + $0x120] sm:$0x2]
      %v1833 = vld [vmem:[%s448 + $0x124] sm:$0x2]
      %v1834 = vld [vmem:[%s448 + $0x128] sm:$0x2]
      %v1835 = vld [vmem:[%s448 + $0x12c] sm:$0x2]
      %v1836 = vld [vmem:[%s448 + $0x130] sm:$0x2]
      %v1837 = vld [vmem:[%s448 + $0x134] sm:$0x2]
      %v1838 = vld [vmem:[%s448 + $0x138] sm:$0x2]
      %v1839 = vld [vmem:[%s448 + $0x13c] sm:$0x2]
      %v1840 = vld [vmem:[%s448 + $0x140] sm:$0x2]
      %v1841 = vld [vmem:[%s448 + $0x144] sm:$0x2]
      %v1842 = vld [vmem:[%s448 + $0x148] sm:$0x2]
      %v1843 = vld [vmem:[%s448 + $0x14c] sm:$0x2]
      %v1844 = vld [vmem:[%s448 + $0x150] sm:$0x2]
      %v1845 = vld [vmem:[%s448 + $0x154] sm:$0x2]
      %v1846 = vld [vmem:[%s448 + $0x158] sm:$0x2]
      %v1847 = vld [vmem:[%s448 + $0x15c] sm:$0x2]
      %v1848 = vld [vmem:[%s448 + $0x160] sm:$0x2]
      %v1849 = vld [vmem:[%s448 + $0x164] sm:$0x2]
      %v1850 = vld [vmem:[%s448 + $0x168] sm:$0x2]
      %v1851 = vld [vmem:[%s448 + $0x16c] sm:$0x2]
      %v1852 = vld [vmem:[%s448 + $0x170] sm:$0x2]
      %v1853 = vld [vmem:[%s448 + $0x174] sm:$0x2]
      %v1854 = vld [vmem:[%s448 + $0x178] sm:$0x2]
      %v1855 = vld [vmem:[%s448 + $0x17c] sm:$0x2]
      %v1856 = vld [vmem:[%s448 + $0x180] sm:$0x2]
      %v1857 = vld [vmem:[%s448 + $0x184] sm:$0x2]
      %v1858 = vld [vmem:[%s448 + $0x188] sm:$0x2]
      %v1859 = vld [vmem:[%s448 + $0x18c] sm:$0x2]
      %v1860 = vld [vmem:[%s448 + $0x190] sm:$0x2]
      %v1861 = vld [vmem:[%s448 + $0x194] sm:$0x2]
      %v1862 = vld [vmem:[%s448 + $0x198] sm:$0x2]
      %v1863 = vld [vmem:[%s448 + $0x19c] sm:$0x2]
      %v1864 = vld [vmem:[%s448 + $0x1a0] sm:$0x2]
      %v1865 = vld [vmem:[%s448 + $0x1a4] sm:$0x2]
      %v1866 = vld [vmem:[%s448 + $0x1a8] sm:$0x2]
      %v1867 = vld [vmem:[%s448 + $0x1ac] sm:$0x2]
      %v1868 = vld [vmem:[%s448 + $0x1b0] sm:$0x2]
      %v1869 = vld [vmem:[%s448 + $0x1b4] sm:$0x2]
      %v1870 = vld [vmem:[%s448 + $0x1b8] sm:$0x2]
      %v1871 = vld [vmem:[%s448 + $0x1bc] sm:$0x2]
      %v1872 = vld [vmem:[%s448 + $0x1c0] sm:$0x2]
      %v1873 = vld [vmem:[%s448 + $0x1c4] sm:$0x2]
      %v1874 = vld [vmem:[%s448 + $0x1c8] sm:$0x2]
      %v1875 = vld [vmem:[%s448 + $0x1cc] sm:$0x2]
      %v1876 = vld [vmem:[%s448 + $0x1d0] sm:$0x2]
      %v1877 = vld [vmem:[%s448 + $0x1d4] sm:$0x2]
      %v1878 = vld [vmem:[%s448 + $0x1d8] sm:$0x2]
      %v1879 = vld [vmem:[%s448 + $0x1dc] sm:$0x2]
      %v1880 = vld [vmem:[%s448 + $0x1e0] sm:$0x2]
      %v1881 = vld [vmem:[%s448 + $0x1e4] sm:$0x2]
      %v1882 = vld [vmem:[%s448 + $0x1e8] sm:$0x2]
      %v1883 = vld [vmem:[%s448 + $0x1ec] sm:$0x2]
      %v1884 = vld [vmem:[%s448 + $0x1f0] sm:$0x2]
      %v1885 = vld [vmem:[%s448 + $0x1f4] sm:$0x2]
      %v1886 = vld [vmem:[%s448 + $0x1f8] sm:$0x2]
      %v1887 = vld [vmem:[%s448 + $0x1fc] sm:$0x2]
      %v1888 = vunpack.c.l.bf16 %v1760
      %v1889 = vunpack.c.l.bf16 %v1761
      %v1890 = vunpack.c.l.bf16 %v1762
      %v1891 = vunpack.c.l.bf16 %v1763
      %v1892 = vunpack.c.l.bf16 %v1764
      %v1893 = vunpack.c.l.bf16 %v1765
      %v1894 = vunpack.c.l.bf16 %v1766
      %v1895 = vunpack.c.l.bf16 %v1767
      %v1896 = vunpack.c.l.bf16 %v1768
      %v1897 = vunpack.c.l.bf16 %v1769
      %v1898 = vunpack.c.l.bf16 %v1770
      %v1899 = vunpack.c.l.bf16 %v1771
      %v1900 = vunpack.c.l.bf16 %v1772
      %v1901 = vunpack.c.l.bf16 %v1773
      %v1902 = vunpack.c.l.bf16 %v1774
      %v1903 = vunpack.c.l.bf16 %v1775
      %v1904 = vunpack.c.l.bf16 %v1776
      %v1905 = vunpack.c.l.bf16 %v1777
      %v1906 = vunpack.c.l.bf16 %v1778
      %v1907 = vunpack.c.l.bf16 %v1779
      %v1908 = vunpack.c.l.bf16 %v1780
      %v1909 = vunpack.c.l.bf16 %v1781
      %v1910 = vunpack.c.l.bf16 %v1782
      %v1911 = vunpack.c.l.bf16 %v1783
      %v1912 = vunpack.c.l.bf16 %v1784
      %v1913 = vunpack.c.l.bf16 %v1785
      %v1914 = vunpack.c.l.bf16 %v1786
      %v1915 = vunpack.c.l.bf16 %v1787
      %v1916 = vunpack.c.l.bf16 %v1788
      %v1917 = vunpack.c.l.bf16 %v1789
      %v1918 = vunpack.c.l.bf16 %v1790
      %v1919 = vunpack.c.l.bf16 %v1791
      %v1920 = vunpack.c.l.bf16 %v1792
      %v1921 = vunpack.c.l.bf16 %v1793
      %v1922 = vunpack.c.l.bf16 %v1794
      %v1923 = vunpack.c.l.bf16 %v1795
      %v1924 = vunpack.c.l.bf16 %v1796
      %v1925 = vunpack.c.l.bf16 %v1797
      %v1926 = vunpack.c.l.bf16 %v1798
      %v1927 = vunpack.c.l.bf16 %v1799
      %v1928 = vunpack.c.l.bf16 %v1800
      %v1929 = vunpack.c.l.bf16 %v1801
      %v1930 = vunpack.c.l.bf16 %v1802
      %v1931 = vunpack.c.l.bf16 %v1803
      %v1932 = vunpack.c.l.bf16 %v1804
      %v1933 = vunpack.c.l.bf16 %v1805
      %v1934 = vunpack.c.l.bf16 %v1806
      %v1935 = vunpack.c.l.bf16 %v1807
      %v1936 = vunpack.c.l.bf16 %v1808
      %v1937 = vunpack.c.l.bf16 %v1809
      %v1938 = vunpack.c.l.bf16 %v1810
      %v1939 = vunpack.c.l.bf16 %v1811
      %v1940 = vunpack.c.l.bf16 %v1812
      %v1941 = vunpack.c.l.bf16 %v1813
      %v1942 = vunpack.c.l.bf16 %v1814
      %v1943 = vunpack.c.l.bf16 %v1815
      %v1944 = vunpack.c.l.bf16 %v1816
      %v1945 = vunpack.c.l.bf16 %v1817
      %v1946 = vunpack.c.l.bf16 %v1818
      %v1947 = vunpack.c.l.bf16 %v1819
      %v1948 = vunpack.c.l.bf16 %v1820
      %v1949 = vunpack.c.l.bf16 %v1821
      %v1950 = vunpack.c.l.bf16 %v1822
      %v1951 = vunpack.c.l.bf16 %v1823
      %v1952 = vunpack.c.l.bf16 %v1824
      %v1953 = vunpack.c.l.bf16 %v1825
      %v1954 = vunpack.c.l.bf16 %v1826
      %v1955 = vunpack.c.l.bf16 %v1827
      %v1956 = vunpack.c.l.bf16 %v1828
      %v1957 = vunpack.c.l.bf16 %v1829
      %v1958 = vunpack.c.l.bf16 %v1830
      %v1959 = vunpack.c.l.bf16 %v1831
      %v1960 = vunpack.c.l.bf16 %v1832
      %v1961 = vunpack.c.l.bf16 %v1833
      %v1962 = vunpack.c.l.bf16 %v1834
      %v1963 = vunpack.c.l.bf16 %v1835
      %v1964 = vunpack.c.l.bf16 %v1836
      %v1965 = vunpack.c.l.bf16 %v1837
      %v1966 = vunpack.c.l.bf16 %v1838
      %v1967 = vunpack.c.l.bf16 %v1839
      %v1968 = vunpack.c.l.bf16 %v1840
      %v1969 = vunpack.c.l.bf16 %v1841
      %v1970 = vunpack.c.l.bf16 %v1842
      %v1971 = vunpack.c.l.bf16 %v1843
      %v1972 = vunpack.c.l.bf16 %v1844
      %v1973 = vunpack.c.l.bf16 %v1845
      %v1974 = vunpack.c.l.bf16 %v1846
      %v1975 = vunpack.c.l.bf16 %v1847
      %v1976 = vunpack.c.l.bf16 %v1848
      %v1977 = vunpack.c.l.bf16 %v1849
      %v1978 = vunpack.c.l.bf16 %v1850
      %v1979 = vunpack.c.l.bf16 %v1851
      %v1980 = vunpack.c.l.bf16 %v1852
      %v1981 = vunpack.c.l.bf16 %v1853
      %v1982 = vunpack.c.l.bf16 %v1854
      %v1983 = vunpack.c.l.bf16 %v1855
      %v1984 = vunpack.c.l.bf16 %v1856
      %v1985 = vunpack.c.l.bf16 %v1857
      %v1986 = vunpack.c.l.bf16 %v1858
      %v1987 = vunpack.c.l.bf16 %v1859
      %v1988 = vunpack.c.l.bf16 %v1860
      %v1989 = vunpack.c.l.bf16 %v1861
      %v1990 = vunpack.c.l.bf16 %v1862
      %v1991 = vunpack.c.l.bf16 %v1863
      %v1992 = vunpack.c.l.bf16 %v1864
      %v1993 = vunpack.c.l.bf16 %v1865
      %v1994 = vunpack.c.l.bf16 %v1866
      %v1995 = vunpack.c.l.bf16 %v1867
      %v1996 = vunpack.c.l.bf16 %v1868
      %v1997 = vunpack.c.l.bf16 %v1869
      %v1998 = vunpack.c.l.bf16 %v1870
      %v1999 = vunpack.c.l.bf16 %v1871
      %v2000 = vunpack.c.l.bf16 %v1872
      %v2001 = vunpack.c.l.bf16 %v1873
      %v2002 = vunpack.c.l.bf16 %v1874
      %v2003 = vunpack.c.l.bf16 %v1875
      %v2004 = vunpack.c.l.bf16 %v1876
      %v2005 = vunpack.c.l.bf16 %v1877
      %v2006 = vunpack.c.l.bf16 %v1878
      %v2007 = vunpack.c.l.bf16 %v1879
      %v2008 = vunpack.c.l.bf16 %v1880
      %v2009 = vunpack.c.l.bf16 %v1881
      %v2010 = vunpack.c.l.bf16 %v1882
      %v2011 = vunpack.c.l.bf16 %v1883
      %v2012 = vunpack.c.l.bf16 %v1884
      %v2013 = vunpack.c.l.bf16 %v1885
      %v2014 = vunpack.c.l.bf16 %v1886
      %v2015 = vunpack.c.l.bf16 %v1887
      %v2144 = vrot.slane %v1888, 2
      %v2145 = vrot.slane %v1889, 1
      %v2146 = vsel %vm1146, %v2145, %v2144
      %v2147 = vsel %vm1149, %v1890, %v2146
      %v2148 = vrot.slane %v1891, 7
      %v2149 = vsel %vm1152, %v2148, %v2147
      %v2150 = vrot.slane %v1892, 6
      %v2151 = vsel %vm1155, %v2150, %v2149
      %v2152 = vrot.slane %v1893, 5
      %v2153 = vsel %vm1158, %v2152, %v2151
      %v2154 = vrot.slane %v1894, 4
      %v2155 = vsel %vm1161, %v2154, %v2153
      %v2156 = vrot.slane %v1895, 3
      %v2157 = vsel %vm1164, %v2156, %v2155
      %v2158 = vrot.slane %v1896, 2
      %v2159 = vrot.slane %v1897, 1
      %v2160 = vsel %vm1146, %v2159, %v2158
      %v2161 = vsel %vm1149, %v1898, %v2160
      %v2162 = vrot.slane %v1899, 7
      %v2163 = vsel %vm1152, %v2162, %v2161
      %v2164 = vrot.slane %v1900, 6
      %v2165 = vsel %vm1155, %v2164, %v2163
      %v2166 = vrot.slane %v1901, 5
      %v2167 = vsel %vm1158, %v2166, %v2165
      %v2168 = vrot.slane %v1902, 4
      %v2169 = vsel %vm1161, %v2168, %v2167
      %v2170 = vrot.slane %v1903, 3
      %v2171 = vsel %vm1164, %v2170, %v2169
      %v2172 = vrot.slane %v1904, 2
      %v2173 = vrot.slane %v1905, 1
      %v2174 = vsel %vm1146, %v2173, %v2172
      %v2175 = vsel %vm1149, %v1906, %v2174
      %v2176 = vrot.slane %v1907, 7
      %v2177 = vsel %vm1152, %v2176, %v2175
      %v2178 = vrot.slane %v1908, 6
      %v2179 = vsel %vm1155, %v2178, %v2177
      %v2180 = vrot.slane %v1909, 5
      %v2181 = vsel %vm1158, %v2180, %v2179
      %v2182 = vrot.slane %v1910, 4
      %v2183 = vsel %vm1161, %v2182, %v2181
      %v2184 = vrot.slane %v1911, 3
      %v2185 = vsel %vm1164, %v2184, %v2183
      %v2186 = vrot.slane %v1912, 2
      %v2187 = vrot.slane %v1913, 1
      %v2188 = vsel %vm1146, %v2187, %v2186
      %v2189 = vsel %vm1149, %v1914, %v2188
      %v2190 = vrot.slane %v1915, 7
      %v2191 = vsel %vm1152, %v2190, %v2189
      %v2192 = vrot.slane %v1916, 6
      %v2193 = vsel %vm1155, %v2192, %v2191
      %v2194 = vrot.slane %v1917, 5
      %v2195 = vsel %vm1158, %v2194, %v2193
      %v2196 = vrot.slane %v1918, 4
      %v2197 = vsel %vm1161, %v2196, %v2195
      %v2198 = vrot.slane %v1919, 3
      %v2199 = vsel %vm1164, %v2198, %v2197
      %v2200 = vrot.slane %v1920, 2
      %v2201 = vrot.slane %v1921, 1
      %v2202 = vsel %vm1146, %v2201, %v2200
      %v2203 = vsel %vm1149, %v1922, %v2202
      %v2204 = vrot.slane %v1923, 7
      %v2205 = vsel %vm1152, %v2204, %v2203
      %v2206 = vrot.slane %v1924, 6
      %v2207 = vsel %vm1155, %v2206, %v2205
      %v2208 = vrot.slane %v1925, 5
      %v2209 = vsel %vm1158, %v2208, %v2207
      %v2210 = vrot.slane %v1926, 4
      %v2211 = vsel %vm1161, %v2210, %v2209
      %v2212 = vrot.slane %v1927, 3
      %v2213 = vsel %vm1164, %v2212, %v2211
      %v2214 = vrot.slane %v1928, 2
      %v2215 = vrot.slane %v1929, 1
      %v2216 = vsel %vm1146, %v2215, %v2214
      %v2217 = vsel %vm1149, %v1930, %v2216
      %v2218 = vrot.slane %v1931, 7
      %v2219 = vsel %vm1152, %v2218, %v2217
      %v2220 = vrot.slane %v1932, 6
      %v2221 = vsel %vm1155, %v2220, %v2219
      %v2222 = vrot.slane %v1933, 5
      %v2223 = vsel %vm1158, %v2222, %v2221
      %v2224 = vrot.slane %v1934, 4
      %v2225 = vsel %vm1161, %v2224, %v2223
      %v2226 = vrot.slane %v1935, 3
      %v2227 = vsel %vm1164, %v2226, %v2225
      %v2228 = vrot.slane %v1936, 2
      %v2229 = vrot.slane %v1937, 1
      %v2230 = vsel %vm1146, %v2229, %v2228
      %v2231 = vsel %vm1149, %v1938, %v2230
      %v2232 = vrot.slane %v1939, 7
      %v2233 = vsel %vm1152, %v2232, %v2231
      %v2234 = vrot.slane %v1940, 6
      %v2235 = vsel %vm1155, %v2234, %v2233
      %v2236 = vrot.slane %v1941, 5
      %v2237 = vsel %vm1158, %v2236, %v2235
      %v2238 = vrot.slane %v1942, 4
      %v2239 = vsel %vm1161, %v2238, %v2237
      %v2240 = vrot.slane %v1943, 3
      %v2241 = vsel %vm1164, %v2240, %v2239
      %v2242 = vrot.slane %v1944, 2
      %v2243 = vrot.slane %v1945, 1
      %v2244 = vsel %vm1146, %v2243, %v2242
      %v2245 = vsel %vm1149, %v1946, %v2244
      %v2246 = vrot.slane %v1947, 7
      %v2247 = vsel %vm1152, %v2246, %v2245
      %v2248 = vrot.slane %v1948, 6
      %v2249 = vsel %vm1155, %v2248, %v2247
      %v2250 = vrot.slane %v1949, 5
      %v2251 = vsel %vm1158, %v2250, %v2249
      %v2252 = vrot.slane %v1950, 4
      %v2253 = vsel %vm1161, %v2252, %v2251
      %v2254 = vrot.slane %v1951, 3
      %v2255 = vsel %vm1164, %v2254, %v2253
      %v2256 = vrot.slane %v1952, 2
      %v2257 = vrot.slane %v1953, 1
      %v2258 = vsel %vm1146, %v2257, %v2256
      %v2259 = vsel %vm1149, %v1954, %v2258
      %v2260 = vrot.slane %v1955, 7
      %v2261 = vsel %vm1152, %v2260, %v2259
      %v2262 = vrot.slane %v1956, 6
      %v2263 = vsel %vm1155, %v2262, %v2261
      %v2264 = vrot.slane %v1957, 5
      %v2265 = vsel %vm1158, %v2264, %v2263
      %v2266 = vrot.slane %v1958, 4
      %v2267 = vsel %vm1161, %v2266, %v2265
      %v2268 = vrot.slane %v1959, 3
      %v2269 = vsel %vm1164, %v2268, %v2267
      %v2270 = vrot.slane %v1960, 2
      %v2271 = vrot.slane %v1961, 1
      %v2272 = vsel %vm1146, %v2271, %v2270
      %v2273 = vsel %vm1149, %v1962, %v2272
      %v2274 = vrot.slane %v1963, 7
      %v2275 = vsel %vm1152, %v2274, %v2273
      %v2276 = vrot.slane %v1964, 6
      %v2277 = vsel %vm1155, %v2276, %v2275
      %v2278 = vrot.slane %v1965, 5
      %v2279 = vsel %vm1158, %v2278, %v2277
      %v2280 = vrot.slane %v1966, 4
      %v2281 = vsel %vm1161, %v2280, %v2279
      %v2282 = vrot.slane %v1967, 3
      %v2283 = vsel %vm1164, %v2282, %v2281
      %v2284 = vrot.slane %v1968, 2
      %v2285 = vrot.slane %v1969, 1
      %v2286 = vsel %vm1146, %v2285, %v2284
      %v2287 = vsel %vm1149, %v1970, %v2286
      %v2288 = vrot.slane %v1971, 7
      %v2289 = vsel %vm1152, %v2288, %v2287
      %v2290 = vrot.slane %v1972, 6
      %v2291 = vsel %vm1155, %v2290, %v2289
      %v2292 = vrot.slane %v1973, 5
      %v2293 = vsel %vm1158, %v2292, %v2291
      %v2294 = vrot.slane %v1974, 4
      %v2295 = vsel %vm1161, %v2294, %v2293
      %v2296 = vrot.slane %v1975, 3
      %v2297 = vsel %vm1164, %v2296, %v2295
      %v2298 = vrot.slane %v1976, 2
      %v2299 = vrot.slane %v1977, 1
      %v2300 = vsel %vm1146, %v2299, %v2298
      %v2301 = vsel %vm1149, %v1978, %v2300
      %v2302 = vrot.slane %v1979, 7
      %v2303 = vsel %vm1152, %v2302, %v2301
      %v2304 = vrot.slane %v1980, 6
      %v2305 = vsel %vm1155, %v2304, %v2303
      %v2306 = vrot.slane %v1981, 5
      %v2307 = vsel %vm1158, %v2306, %v2305
      %v2308 = vrot.slane %v1982, 4
      %v2309 = vsel %vm1161, %v2308, %v2307
      %v2310 = vrot.slane %v1983, 3
      %v2311 = vsel %vm1164, %v2310, %v2309
      %v2312 = vrot.slane %v1984, 2
      %v2313 = vrot.slane %v1985, 1
      %v2314 = vsel %vm1146, %v2313, %v2312
      %v2315 = vsel %vm1149, %v1986, %v2314
      %v2316 = vrot.slane %v1987, 7
      %v2317 = vsel %vm1152, %v2316, %v2315
      %v2318 = vrot.slane %v1988, 6
      %v2319 = vsel %vm1155, %v2318, %v2317
      %v2320 = vrot.slane %v1989, 5
      %v2321 = vsel %vm1158, %v2320, %v2319
      %v2322 = vrot.slane %v1990, 4
      %v2323 = vsel %vm1161, %v2322, %v2321
      %v2324 = vrot.slane %v1991, 3
      %v2325 = vsel %vm1164, %v2324, %v2323
      %v2326 = vrot.slane %v1992, 2
      %v2327 = vrot.slane %v1993, 1
      %v2328 = vsel %vm1146, %v2327, %v2326
      %v2329 = vsel %vm1149, %v1994, %v2328
      %v2330 = vrot.slane %v1995, 7
      %v2331 = vsel %vm1152, %v2330, %v2329
      %v2332 = vrot.slane %v1996, 6
      %v2333 = vsel %vm1155, %v2332, %v2331
      %v2334 = vrot.slane %v1997, 5
      %v2335 = vsel %vm1158, %v2334, %v2333
      %v2336 = vrot.slane %v1998, 4
      %v2337 = vsel %vm1161, %v2336, %v2335
      %v2338 = vrot.slane %v1999, 3
      %v2339 = vsel %vm1164, %v2338, %v2337
      %v2340 = vrot.slane %v2000, 2
      %v2341 = vrot.slane %v2001, 1
      %v2342 = vsel %vm1146, %v2341, %v2340
      %v2343 = vsel %vm1149, %v2002, %v2342
      %v2344 = vrot.slane %v2003, 7
      %v2345 = vsel %vm1152, %v2344, %v2343
      %v2346 = vrot.slane %v2004, 6
      %v2347 = vsel %vm1155, %v2346, %v2345
      %v2348 = vrot.slane %v2005, 5
      %v2349 = vsel %vm1158, %v2348, %v2347
      %v2350 = vrot.slane %v2006, 4
      %v2351 = vsel %vm1161, %v2350, %v2349
      %v2352 = vrot.slane %v2007, 3
      %v2353 = vsel %vm1164, %v2352, %v2351
      %v2354 = vrot.slane %v2008, 2
      %v2355 = vrot.slane %v2009, 1
      %v2356 = vsel %vm1146, %v2355, %v2354
      %v2357 = vsel %vm1149, %v2010, %v2356
      %v2358 = vrot.slane %v2011, 7
      %v2359 = vsel %vm1152, %v2358, %v2357
      %v2360 = vrot.slane %v2012, 6
      %v2361 = vsel %vm1155, %v2360, %v2359
      %v2362 = vrot.slane %v2013, 5
      %v2363 = vsel %vm1158, %v2362, %v2361
      %v2364 = vrot.slane %v2014, 4
      %v2365 = vsel %vm1161, %v2364, %v2363
      %v2366 = vrot.slane %v2015, 3
      %v2367 = vsel %vm1164, %v2366, %v2365
      %v2384 = vmul.f32 %v745, %v2157
      %v2385 = vmul.f32 %v746, %v2171
      %v2386 = vmul.f32 %v747, %v2185
      %v2387 = vmul.f32 %v748, %v2199
      %v2388 = vmul.f32 %v749, %v2213
      %v2389 = vmul.f32 %v750, %v2227
      %v2390 = vmul.f32 %v751, %v2241
      %v2391 = vmul.f32 %v752, %v2255
      %v2392 = vmul.f32 %v753, %v2269
      %v2393 = vmul.f32 %v754, %v2283
      %v2394 = vmul.f32 %v755, %v2297
      %v2395 = vmul.f32 %v756, %v2311
      %v2396 = vmul.f32 %v757, %v2325
      %v2397 = vmul.f32 %v758, %v2339
      %v2398 = vmul.f32 %v759, %v2353
      %v2399 = vmul.f32 %v760, %v2367
      %v2400 = vsel %vm667, %v2384, 0.0
      %2401 = vadd.xlane.f32.xlu0 %v2400
      %v2402 = vpop.xlane.xlu0 %2401
      %v2403 = vsel %vm667, %v2385, 0.0
      %2404 = vadd.xlane.f32.xlu0 %v2403
      %v2405 = vpop.xlane.xlu0 %2404
      %v2406 = vsel %vm667, %v2386, 0.0
      %2407 = vadd.xlane.f32.xlu0 %v2406
      %v2408 = vpop.xlane.xlu0 %2407
      %v2409 = vsel %vm667, %v2387, 0.0
      %2410 = vadd.xlane.f32.xlu0 %v2409
      %v2411 = vpop.xlane.xlu0 %2410
      %v2412 = vsel %vm667, %v2388, 0.0
      %2413 = vadd.xlane.f32.xlu0 %v2412
      %v2414 = vpop.xlane.xlu0 %2413
      %v2415 = vsel %vm667, %v2389, 0.0
      %2416 = vadd.xlane.f32.xlu0 %v2415
      %v2417 = vpop.xlane.xlu0 %2416
      %v2418 = vsel %vm667, %v2390, 0.0
      %2419 = vadd.xlane.f32.xlu0 %v2418
      %v2420 = vpop.xlane.xlu0 %2419
      %v2421 = vsel %vm667, %v2391, 0.0
      %2422 = vadd.xlane.f32.xlu0 %v2421
      %v2423 = vpop.xlane.xlu0 %2422
      %v2424 = vsel %vm667, %v2392, 0.0
      %2425 = vadd.xlane.f32.xlu0 %v2424
      %v2426 = vpop.xlane.xlu0 %2425
      %v2427 = vsel %vm667, %v2393, 0.0
      %2428 = vadd.xlane.f32.xlu0 %v2427
      %v2429 = vpop.xlane.xlu0 %2428
      %v2430 = vsel %vm667, %v2394, 0.0
      %2431 = vadd.xlane.f32.xlu0 %v2430
      %v2432 = vpop.xlane.xlu0 %2431
      %v2433 = vsel %vm667, %v2395, 0.0
      %2434 = vadd.xlane.f32.xlu0 %v2433
      %v2435 = vpop.xlane.xlu0 %2434
      %v2436 = vsel %vm667, %v2396, 0.0
      %2437 = vadd.xlane.f32.xlu0 %v2436
      %v2438 = vpop.xlane.xlu0 %2437
      %v2439 = vsel %vm667, %v2397, 0.0
      %2440 = vadd.xlane.f32.xlu0 %v2439
      %v2441 = vpop.xlane.xlu0 %2440
      %v2442 = vsel %vm667, %v2398, 0.0
      %2443 = vadd.xlane.f32.xlu0 %v2442
      %v2444 = vpop.xlane.xlu0 %2443
      %v2445 = vsel %vm667, %v2399, 0.0
      %2446 = vadd.xlane.f32.xlu0 %v2445
      %v2447 = vpop.xlane.xlu0 %2446
      %v2448 = vrot.slane %v1888, 3
      %v2449 = vrot.slane %v1889, 2
      %v2450 = vsel %vm1146, %v2449, %v2448
      %v2451 = vrot.slane %v1890, 1
      %v2452 = vsel %vm1149, %v2451, %v2450
      %v2453 = vsel %vm1152, %v1891, %v2452
      %v2454 = vrot.slane %v1892, 7
      %v2455 = vsel %vm1155, %v2454, %v2453
      %v2456 = vrot.slane %v1893, 6
      %v2457 = vsel %vm1158, %v2456, %v2455
      %v2458 = vrot.slane %v1894, 5
      %v2459 = vsel %vm1161, %v2458, %v2457
      %v2460 = vrot.slane %v1895, 4
      %v2461 = vsel %vm1164, %v2460, %v2459
      %v2462 = vrot.slane %v1896, 3
      %v2463 = vrot.slane %v1897, 2
      %v2464 = vsel %vm1146, %v2463, %v2462
      %v2465 = vrot.slane %v1898, 1
      %v2466 = vsel %vm1149, %v2465, %v2464
      %v2467 = vsel %vm1152, %v1899, %v2466
      %v2468 = vrot.slane %v1900, 7
      %v2469 = vsel %vm1155, %v2468, %v2467
      %v2470 = vrot.slane %v1901, 6
      %v2471 = vsel %vm1158, %v2470, %v2469
      %v2472 = vrot.slane %v1902, 5
      %v2473 = vsel %vm1161, %v2472, %v2471
      %v2474 = vrot.slane %v1903, 4
      %v2475 = vsel %vm1164, %v2474, %v2473
      %v2476 = vrot.slane %v1904, 3
      %v2477 = vrot.slane %v1905, 2
      %v2478 = vsel %vm1146, %v2477, %v2476
      %v2479 = vrot.slane %v1906, 1
      %v2480 = vsel %vm1149, %v2479, %v2478
      %v2481 = vsel %vm1152, %v1907, %v2480
      %v2482 = vrot.slane %v1908, 7
      %v2483 = vsel %vm1155, %v2482, %v2481
      %v2484 = vrot.slane %v1909, 6
      %v2485 = vsel %vm1158, %v2484, %v2483
      %v2486 = vrot.slane %v1910, 5
      %v2487 = vsel %vm1161, %v2486, %v2485
      %v2488 = vrot.slane %v1911, 4
      %v2489 = vsel %vm1164, %v2488, %v2487
      %v2490 = vrot.slane %v1912, 3
      %v2491 = vrot.slane %v1913, 2
      %v2492 = vsel %vm1146, %v2491, %v2490
      %v2493 = vrot.slane %v1914, 1
      %v2494 = vsel %vm1149, %v2493, %v2492
      %v2495 = vsel %vm1152, %v1915, %v2494
      %v2496 = vrot.slane %v1916, 7
      %v2497 = vsel %vm1155, %v2496, %v2495
      %v2498 = vrot.slane %v1917, 6
      %v2499 = vsel %vm1158, %v2498, %v2497
      %v2500 = vrot.slane %v1918, 5
      %v2501 = vsel %vm1161, %v2500, %v2499
      %v2502 = vrot.slane %v1919, 4
      %v2503 = vsel %vm1164, %v2502, %v2501
      %v2504 = vrot.slane %v1920, 3
      %v2505 = vrot.slane %v1921, 2
      %v2506 = vsel %vm1146, %v2505, %v2504
      %v2507 = vrot.slane %v1922, 1
      %v2508 = vsel %vm1149, %v2507, %v2506
      %v2509 = vsel %vm1152, %v1923, %v2508
      %v2510 = vrot.slane %v1924, 7
      %v2511 = vsel %vm1155, %v2510, %v2509
      %v2512 = vrot.slane %v1925, 6
      %v2513 = vsel %vm1158, %v2512, %v2511
      %v2514 = vrot.slane %v1926, 5
      %v2515 = vsel %vm1161, %v2514, %v2513
      %v2516 = vrot.slane %v1927, 4
      %v2517 = vsel %vm1164, %v2516, %v2515
      %v2518 = vrot.slane %v1928, 3
      %v2519 = vrot.slane %v1929, 2
      %v2520 = vsel %vm1146, %v2519, %v2518
      %v2521 = vrot.slane %v1930, 1
      %v2522 = vsel %vm1149, %v2521, %v2520
      %v2523 = vsel %vm1152, %v1931, %v2522
      %v2524 = vrot.slane %v1932, 7
      %v2525 = vsel %vm1155, %v2524, %v2523
      %v2526 = vrot.slane %v1933, 6
      %v2527 = vsel %vm1158, %v2526, %v2525
      %v2528 = vrot.slane %v1934, 5
      %v2529 = vsel %vm1161, %v2528, %v2527
      %v2530 = vrot.slane %v1935, 4
      %v2531 = vsel %vm1164, %v2530, %v2529
      %v2532 = vrot.slane %v1936, 3
      %v2533 = vrot.slane %v1937, 2
      %v2534 = vsel %vm1146, %v2533, %v2532
      %v2535 = vrot.slane %v1938, 1
      %v2536 = vsel %vm1149, %v2535, %v2534
      %v2537 = vsel %vm1152, %v1939, %v2536
      %v2538 = vrot.slane %v1940, 7
      %v2539 = vsel %vm1155, %v2538, %v2537
      %v2540 = vrot.slane %v1941, 6
      %v2541 = vsel %vm1158, %v2540, %v2539
      %v2542 = vrot.slane %v1942, 5
      %v2543 = vsel %vm1161, %v2542, %v2541
      %v2544 = vrot.slane %v1943, 4
      %v2545 = vsel %vm1164, %v2544, %v2543
      %v2546 = vrot.slane %v1944, 3
      %v2547 = vrot.slane %v1945, 2
      %v2548 = vsel %vm1146, %v2547, %v2546
      %v2549 = vrot.slane %v1946, 1
      %v2550 = vsel %vm1149, %v2549, %v2548
      %v2551 = vsel %vm1152, %v1947, %v2550
      %v2552 = vrot.slane %v1948, 7
      %v2553 = vsel %vm1155, %v2552, %v2551
      %v2554 = vrot.slane %v1949, 6
      %v2555 = vsel %vm1158, %v2554, %v2553
      %v2556 = vrot.slane %v1950, 5
      %v2557 = vsel %vm1161, %v2556, %v2555
      %v2558 = vrot.slane %v1951, 4
      %v2559 = vsel %vm1164, %v2558, %v2557
      %v2560 = vrot.slane %v1952, 3
      %v2561 = vrot.slane %v1953, 2
      %v2562 = vsel %vm1146, %v2561, %v2560
      %v2563 = vrot.slane %v1954, 1
      %v2564 = vsel %vm1149, %v2563, %v2562
      %v2565 = vsel %vm1152, %v1955, %v2564
      %v2566 = vrot.slane %v1956, 7
      %v2567 = vsel %vm1155, %v2566, %v2565
      %v2568 = vrot.slane %v1957, 6
      %v2569 = vsel %vm1158, %v2568, %v2567
      %v2570 = vrot.slane %v1958, 5
      %v2571 = vsel %vm1161, %v2570, %v2569
      %v2572 = vrot.slane %v1959, 4
      %v2573 = vsel %vm1164, %v2572, %v2571
      %v2574 = vrot.slane %v1960, 3
      %v2575 = vrot.slane %v1961, 2
      %v2576 = vsel %vm1146, %v2575, %v2574
      %v2577 = vrot.slane %v1962, 1
      %v2578 = vsel %vm1149, %v2577, %v2576
      %v2579 = vsel %vm1152, %v1963, %v2578
      %v2580 = vrot.slane %v1964, 7
      %v2581 = vsel %vm1155, %v2580, %v2579
      %v2582 = vrot.slane %v1965, 6
      %v2583 = vsel %vm1158, %v2582, %v2581
      %v2584 = vrot.slane %v1966, 5
      %v2585 = vsel %vm1161, %v2584, %v2583
      %v2586 = vrot.slane %v1967, 4
      %v2587 = vsel %vm1164, %v2586, %v2585
      %v2588 = vrot.slane %v1968, 3
      %v2589 = vrot.slane %v1969, 2
      %v2590 = vsel %vm1146, %v2589, %v2588
      %v2591 = vrot.slane %v1970, 1
      %v2592 = vsel %vm1149, %v2591, %v2590
      %v2593 = vsel %vm1152, %v1971, %v2592
      %v2594 = vrot.slane %v1972, 7
      %v2595 = vsel %vm1155, %v2594, %v2593
      %v2596 = vrot.slane %v1973, 6
      %v2597 = vsel %vm1158, %v2596, %v2595
      %v2598 = vrot.slane %v1974, 5
      %v2599 = vsel %vm1161, %v2598, %v2597
      %v2600 = vrot.slane %v1975, 4
      %v2601 = vsel %vm1164, %v2600, %v2599
      %v2602 = vrot.slane %v1976, 3
      %v2603 = vrot.slane %v1977, 2
      %v2604 = vsel %vm1146, %v2603, %v2602
      %v2605 = vrot.slane %v1978, 1
      %v2606 = vsel %vm1149, %v2605, %v2604
      %v2607 = vsel %vm1152, %v1979, %v2606
      %v2608 = vrot.slane %v1980, 7
      %v2609 = vsel %vm1155, %v2608, %v2607
      %v2610 = vrot.slane %v1981, 6
      %v2611 = vsel %vm1158, %v2610, %v2609
      %v2612 = vrot.slane %v1982, 5
      %v2613 = vsel %vm1161, %v2612, %v2611
      %v2614 = vrot.slane %v1983, 4
      %v2615 = vsel %vm1164, %v2614, %v2613
      %v2616 = vrot.slane %v1984, 3
      %v2617 = vrot.slane %v1985, 2
      %v2618 = vsel %vm1146, %v2617, %v2616
      %v2619 = vrot.slane %v1986, 1
      %v2620 = vsel %vm1149, %v2619, %v2618
      %v2621 = vsel %vm1152, %v1987, %v2620
      %v2622 = vrot.slane %v1988, 7
      %v2623 = vsel %vm1155, %v2622, %v2621
      %v2624 = vrot.slane %v1989, 6
      %v2625 = vsel %vm1158, %v2624, %v2623
      %v2626 = vrot.slane %v1990, 5
      %v2627 = vsel %vm1161, %v2626, %v2625
      %v2628 = vrot.slane %v1991, 4
      %v2629 = vsel %vm1164, %v2628, %v2627
      %v2630 = vrot.slane %v1992, 3
      %v2631 = vrot.slane %v1993, 2
      %v2632 = vsel %vm1146, %v2631, %v2630
      %v2633 = vrot.slane %v1994, 1
      %v2634 = vsel %vm1149, %v2633, %v2632
      %v2635 = vsel %vm1152, %v1995, %v2634
      %v2636 = vrot.slane %v1996, 7
      %v2637 = vsel %vm1155, %v2636, %v2635
      %v2638 = vrot.slane %v1997, 6
      %v2639 = vsel %vm1158, %v2638, %v2637
      %v2640 = vrot.slane %v1998, 5
      %v2641 = vsel %vm1161, %v2640, %v2639
      %v2642 = vrot.slane %v1999, 4
      %v2643 = vsel %vm1164, %v2642, %v2641
      %v2644 = vrot.slane %v2000, 3
      %v2645 = vrot.slane %v2001, 2
      %v2646 = vsel %vm1146, %v2645, %v2644
      %v2647 = vrot.slane %v2002, 1
      %v2648 = vsel %vm1149, %v2647, %v2646
      %v2649 = vsel %vm1152, %v2003, %v2648
      %v2650 = vrot.slane %v2004, 7
      %v2651 = vsel %vm1155, %v2650, %v2649
      %v2652 = vrot.slane %v2005, 6
      %v2653 = vsel %vm1158, %v2652, %v2651
      %v2654 = vrot.slane %v2006, 5
      %v2655 = vsel %vm1161, %v2654, %v2653
      %v2656 = vrot.slane %v2007, 4
      %v2657 = vsel %vm1164, %v2656, %v2655
      %v2658 = vrot.slane %v2008, 3
      %v2659 = vrot.slane %v2009, 2
      %v2660 = vsel %vm1146, %v2659, %v2658
      %v2661 = vrot.slane %v2010, 1
      %v2662 = vsel %vm1149, %v2661, %v2660
      %v2663 = vsel %vm1152, %v2011, %v2662
      %v2664 = vrot.slane %v2012, 7
      %v2665 = vsel %vm1155, %v2664, %v2663
      %v2666 = vrot.slane %v2013, 6
      %v2667 = vsel %vm1158, %v2666, %v2665
      %v2668 = vrot.slane %v2014, 5
      %v2669 = vsel %vm1161, %v2668, %v2667
      %v2670 = vrot.slane %v2015, 4
      %v2671 = vsel %vm1164, %v2670, %v2669
      %v2688 = vmul.f32 %v745, %v2461
      %v2689 = vmul.f32 %v746, %v2475
      %v2690 = vmul.f32 %v747, %v2489
      %v2691 = vmul.f32 %v748, %v2503
      %v2692 = vmul.f32 %v749, %v2517
      %v2693 = vmul.f32 %v750, %v2531
      %v2694 = vmul.f32 %v751, %v2545
      %v2695 = vmul.f32 %v752, %v2559
      %v2696 = vmul.f32 %v753, %v2573
      %v2697 = vmul.f32 %v754, %v2587
      %v2698 = vmul.f32 %v755, %v2601
      %v2699 = vmul.f32 %v756, %v2615
      %v2700 = vmul.f32 %v757, %v2629
      %v2701 = vmul.f32 %v758, %v2643
      %v2702 = vmul.f32 %v759, %v2657
      %v2703 = vmul.f32 %v760, %v2671
      %v2704 = vsel %vm667, %v2688, 0.0
      %2705 = vadd.xlane.f32.xlu0 %v2704
      %v2706 = vpop.xlane.xlu0 %2705
      %v2707 = vsel %vm667, %v2689, 0.0
      %2708 = vadd.xlane.f32.xlu0 %v2707
      %v2709 = vpop.xlane.xlu0 %2708
      %v2710 = vsel %vm667, %v2690, 0.0
      %2711 = vadd.xlane.f32.xlu0 %v2710
      %v2712 = vpop.xlane.xlu0 %2711
      %v2713 = vsel %vm667, %v2691, 0.0
      %2714 = vadd.xlane.f32.xlu0 %v2713
      %v2715 = vpop.xlane.xlu0 %2714
      %v2716 = vsel %vm667, %v2692, 0.0
      %2717 = vadd.xlane.f32.xlu0 %v2716
      %v2718 = vpop.xlane.xlu0 %2717
      %v2719 = vsel %vm667, %v2693, 0.0
      %2720 = vadd.xlane.f32.xlu0 %v2719
      %v2721 = vpop.xlane.xlu0 %2720
      %v2722 = vsel %vm667, %v2694, 0.0
      %2723 = vadd.xlane.f32.xlu0 %v2722
      %v2724 = vpop.xlane.xlu0 %2723
      %v2725 = vsel %vm667, %v2695, 0.0
      %2726 = vadd.xlane.f32.xlu0 %v2725
      %v2727 = vpop.xlane.xlu0 %2726
      %v2728 = vsel %vm667, %v2696, 0.0
      %2729 = vadd.xlane.f32.xlu0 %v2728
      %v2730 = vpop.xlane.xlu0 %2729
      %v2731 = vsel %vm667, %v2697, 0.0
      %2732 = vadd.xlane.f32.xlu0 %v2731
      %v2733 = vpop.xlane.xlu0 %2732
      %v2734 = vsel %vm667, %v2698, 0.0
      %2735 = vadd.xlane.f32.xlu0 %v2734
      %v2736 = vpop.xlane.xlu0 %2735
      %v2737 = vsel %vm667, %v2699, 0.0
      %2738 = vadd.xlane.f32.xlu0 %v2737
      %v2739 = vpop.xlane.xlu0 %2738
      %v2740 = vsel %vm667, %v2700, 0.0
      %2741 = vadd.xlane.f32.xlu0 %v2740
      %v2742 = vpop.xlane.xlu0 %2741
      %v2743 = vsel %vm667, %v2701, 0.0
      %2744 = vadd.xlane.f32.xlu0 %v2743
      %v2745 = vpop.xlane.xlu0 %2744
      %v2746 = vsel %vm667, %v2702, 0.0
      %2747 = vadd.xlane.f32.xlu0 %v2746
      %v2748 = vpop.xlane.xlu0 %2747
      %v2749 = vsel %vm667, %v2703, 0.0
      %2750 = vadd.xlane.f32.xlu0 %v2749
      %v2751 = vpop.xlane.xlu0 %2750
      %v2752 = vld [vmem:[%s448] sm:$0x4]
      %v2753 = vld [vmem:[%s448 + $0x4] sm:$0x4]
      %v2754 = vld [vmem:[%s448 + $0x8] sm:$0x4]
      %v2755 = vld [vmem:[%s448 + $0xc] sm:$0x4]
      %v2756 = vld [vmem:[%s448 + $0x10] sm:$0x4]
      %v2757 = vld [vmem:[%s448 + $0x14] sm:$0x4]
      %v2758 = vld [vmem:[%s448 + $0x18] sm:$0x4]
      %v2759 = vld [vmem:[%s448 + $0x1c] sm:$0x4]
      %v2760 = vld [vmem:[%s448 + $0x20] sm:$0x4]
      %v2761 = vld [vmem:[%s448 + $0x24] sm:$0x4]
      %v2762 = vld [vmem:[%s448 + $0x28] sm:$0x4]
      %v2763 = vld [vmem:[%s448 + $0x2c] sm:$0x4]
      %v2764 = vld [vmem:[%s448 + $0x30] sm:$0x4]
      %v2765 = vld [vmem:[%s448 + $0x34] sm:$0x4]
      %v2766 = vld [vmem:[%s448 + $0x38] sm:$0x4]
      %v2767 = vld [vmem:[%s448 + $0x3c] sm:$0x4]
      %v2768 = vld [vmem:[%s448 + $0x40] sm:$0x4]
      %v2769 = vld [vmem:[%s448 + $0x44] sm:$0x4]
      %v2770 = vld [vmem:[%s448 + $0x48] sm:$0x4]
      %v2771 = vld [vmem:[%s448 + $0x4c] sm:$0x4]
      %v2772 = vld [vmem:[%s448 + $0x50] sm:$0x4]
      %v2773 = vld [vmem:[%s448 + $0x54] sm:$0x4]
      %v2774 = vld [vmem:[%s448 + $0x58] sm:$0x4]
      %v2775 = vld [vmem:[%s448 + $0x5c] sm:$0x4]
      %v2776 = vld [vmem:[%s448 + $0x60] sm:$0x4]
      %v2777 = vld [vmem:[%s448 + $0x64] sm:$0x4]
      %v2778 = vld [vmem:[%s448 + $0x68] sm:$0x4]
      %v2779 = vld [vmem:[%s448 + $0x6c] sm:$0x4]
      %v2780 = vld [vmem:[%s448 + $0x70] sm:$0x4]
      %v2781 = vld [vmem:[%s448 + $0x74] sm:$0x4]
      %v2782 = vld [vmem:[%s448 + $0x78] sm:$0x4]
      %v2783 = vld [vmem:[%s448 + $0x7c] sm:$0x4]
      %v2784 = vld [vmem:[%s448 + $0x80] sm:$0x4]
      %v2785 = vld [vmem:[%s448 + $0x84] sm:$0x4]
      %v2786 = vld [vmem:[%s448 + $0x88] sm:$0x4]
      %v2787 = vld [vmem:[%s448 + $0x8c] sm:$0x4]
      %v2788 = vld [vmem:[%s448 + $0x90] sm:$0x4]
      %v2789 = vld [vmem:[%s448 + $0x94] sm:$0x4]
      %v2790 = vld [vmem:[%s448 + $0x98] sm:$0x4]
      %v2791 = vld [vmem:[%s448 + $0x9c] sm:$0x4]
      %v2792 = vld [vmem:[%s448 + $0xa0] sm:$0x4]
      %v2793 = vld [vmem:[%s448 + $0xa4] sm:$0x4]
      %v2794 = vld [vmem:[%s448 + $0xa8] sm:$0x4]
      %v2795 = vld [vmem:[%s448 + $0xac] sm:$0x4]
      %v2796 = vld [vmem:[%s448 + $0xb0] sm:$0x4]
      %v2797 = vld [vmem:[%s448 + $0xb4] sm:$0x4]
      %v2798 = vld [vmem:[%s448 + $0xb8] sm:$0x4]
      %v2799 = vld [vmem:[%s448 + $0xbc] sm:$0x4]
      %v2800 = vld [vmem:[%s448 + $0xc0] sm:$0x4]
      %v2801 = vld [vmem:[%s448 + $0xc4] sm:$0x4]
      %v2802 = vld [vmem:[%s448 + $0xc8] sm:$0x4]
      %v2803 = vld [vmem:[%s448 + $0xcc] sm:$0x4]
      %v2804 = vld [vmem:[%s448 + $0xd0] sm:$0x4]
      %v2805 = vld [vmem:[%s448 + $0xd4] sm:$0x4]
      %v2806 = vld [vmem:[%s448 + $0xd8] sm:$0x4]
      %v2807 = vld [vmem:[%s448 + $0xdc] sm:$0x4]
      %v2808 = vld [vmem:[%s448 + $0xe0] sm:$0x4]
      %v2809 = vld [vmem:[%s448 + $0xe4] sm:$0x4]
      %v2810 = vld [vmem:[%s448 + $0xe8] sm:$0x4]
      %v2811 = vld [vmem:[%s448 + $0xec] sm:$0x4]
      %v2812 = vld [vmem:[%s448 + $0xf0] sm:$0x4]
      %v2813 = vld [vmem:[%s448 + $0xf4] sm:$0x4]
      %v2814 = vld [vmem:[%s448 + $0xf8] sm:$0x4]
      %v2815 = vld [vmem:[%s448 + $0xfc] sm:$0x4]
      %v2816 = vld [vmem:[%s448 + $0x100] sm:$0x4]
      %v2817 = vld [vmem:[%s448 + $0x104] sm:$0x4]
      %v2818 = vld [vmem:[%s448 + $0x108] sm:$0x4]
      %v2819 = vld [vmem:[%s448 + $0x10c] sm:$0x4]
      %v2820 = vld [vmem:[%s448 + $0x110] sm:$0x4]
      %v2821 = vld [vmem:[%s448 + $0x114] sm:$0x4]
      %v2822 = vld [vmem:[%s448 + $0x118] sm:$0x4]
      %v2823 = vld [vmem:[%s448 + $0x11c] sm:$0x4]
      %v2824 = vld [vmem:[%s448 + $0x120] sm:$0x4]
      %v2825 = vld [vmem:[%s448 + $0x124] sm:$0x4]
      %v2826 = vld [vmem:[%s448 + $0x128] sm:$0x4]
      %v2827 = vld [vmem:[%s448 + $0x12c] sm:$0x4]
      %v2828 = vld [vmem:[%s448 + $0x130] sm:$0x4]
      %v2829 = vld [vmem:[%s448 + $0x134] sm:$0x4]
      %v2830 = vld [vmem:[%s448 + $0x138] sm:$0x4]
      %v2831 = vld [vmem:[%s448 + $0x13c] sm:$0x4]
      %v2832 = vld [vmem:[%s448 + $0x140] sm:$0x4]
      %v2833 = vld [vmem:[%s448 + $0x144] sm:$0x4]
      %v2834 = vld [vmem:[%s448 + $0x148] sm:$0x4]
      %v2835 = vld [vmem:[%s448 + $0x14c] sm:$0x4]
      %v2836 = vld [vmem:[%s448 + $0x150] sm:$0x4]
      %v2837 = vld [vmem:[%s448 + $0x154] sm:$0x4]
      %v2838 = vld [vmem:[%s448 + $0x158] sm:$0x4]
      %v2839 = vld [vmem:[%s448 + $0x15c] sm:$0x4]
      %v2840 = vld [vmem:[%s448 + $0x160] sm:$0x4]
      %v2841 = vld [vmem:[%s448 + $0x164] sm:$0x4]
      %v2842 = vld [vmem:[%s448 + $0x168] sm:$0x4]
      %v2843 = vld [vmem:[%s448 + $0x16c] sm:$0x4]
      %v2844 = vld [vmem:[%s448 + $0x170] sm:$0x4]
      %v2845 = vld [vmem:[%s448 + $0x174] sm:$0x4]
      %v2846 = vld [vmem:[%s448 + $0x178] sm:$0x4]
      %v2847 = vld [vmem:[%s448 + $0x17c] sm:$0x4]
      %v2848 = vld [vmem:[%s448 + $0x180] sm:$0x4]
      %v2849 = vld [vmem:[%s448 + $0x184] sm:$0x4]
      %v2850 = vld [vmem:[%s448 + $0x188] sm:$0x4]
      %v2851 = vld [vmem:[%s448 + $0x18c] sm:$0x4]
      %v2852 = vld [vmem:[%s448 + $0x190] sm:$0x4]
      %v2853 = vld [vmem:[%s448 + $0x194] sm:$0x4]
      %v2854 = vld [vmem:[%s448 + $0x198] sm:$0x4]
      %v2855 = vld [vmem:[%s448 + $0x19c] sm:$0x4]
      %v2856 = vld [vmem:[%s448 + $0x1a0] sm:$0x4]
      %v2857 = vld [vmem:[%s448 + $0x1a4] sm:$0x4]
      %v2858 = vld [vmem:[%s448 + $0x1a8] sm:$0x4]
      %v2859 = vld [vmem:[%s448 + $0x1ac] sm:$0x4]
      %v2860 = vld [vmem:[%s448 + $0x1b0] sm:$0x4]
      %v2861 = vld [vmem:[%s448 + $0x1b4] sm:$0x4]
      %v2862 = vld [vmem:[%s448 + $0x1b8] sm:$0x4]
      %v2863 = vld [vmem:[%s448 + $0x1bc] sm:$0x4]
      %v2864 = vld [vmem:[%s448 + $0x1c0] sm:$0x4]
      %v2865 = vld [vmem:[%s448 + $0x1c4] sm:$0x4]
      %v2866 = vld [vmem:[%s448 + $0x1c8] sm:$0x4]
      %v2867 = vld [vmem:[%s448 + $0x1cc] sm:$0x4]
      %v2868 = vld [vmem:[%s448 + $0x1d0] sm:$0x4]
      %v2869 = vld [vmem:[%s448 + $0x1d4] sm:$0x4]
      %v2870 = vld [vmem:[%s448 + $0x1d8] sm:$0x4]
      %v2871 = vld [vmem:[%s448 + $0x1dc] sm:$0x4]
      %v2872 = vld [vmem:[%s448 + $0x1e0] sm:$0x4]
      %v2873 = vld [vmem:[%s448 + $0x1e4] sm:$0x4]
      %v2874 = vld [vmem:[%s448 + $0x1e8] sm:$0x4]
      %v2875 = vld [vmem:[%s448 + $0x1ec] sm:$0x4]
      %v2876 = vld [vmem:[%s448 + $0x1f0] sm:$0x4]
      %v2877 = vld [vmem:[%s448 + $0x1f4] sm:$0x4]
      %v2878 = vld [vmem:[%s448 + $0x1f8] sm:$0x4]
      %v2879 = vld [vmem:[%s448 + $0x1fc] sm:$0x4]
      %v2880 = vunpack.c.l.bf16 %v2752
      %v2881 = vunpack.c.l.bf16 %v2753
      %v2882 = vunpack.c.l.bf16 %v2754
      %v2883 = vunpack.c.l.bf16 %v2755
      %v2884 = vunpack.c.l.bf16 %v2756
      %v2885 = vunpack.c.l.bf16 %v2757
      %v2886 = vunpack.c.l.bf16 %v2758
      %v2887 = vunpack.c.l.bf16 %v2759
      %v2888 = vunpack.c.l.bf16 %v2760
      %v2889 = vunpack.c.l.bf16 %v2761
      %v2890 = vunpack.c.l.bf16 %v2762
      %v2891 = vunpack.c.l.bf16 %v2763
      %v2892 = vunpack.c.l.bf16 %v2764
      %v2893 = vunpack.c.l.bf16 %v2765
      %v2894 = vunpack.c.l.bf16 %v2766
      %v2895 = vunpack.c.l.bf16 %v2767
      %v2896 = vunpack.c.l.bf16 %v2768
      %v2897 = vunpack.c.l.bf16 %v2769
      %v2898 = vunpack.c.l.bf16 %v2770
      %v2899 = vunpack.c.l.bf16 %v2771
      %v2900 = vunpack.c.l.bf16 %v2772
      %v2901 = vunpack.c.l.bf16 %v2773
      %v2902 = vunpack.c.l.bf16 %v2774
      %v2903 = vunpack.c.l.bf16 %v2775
      %v2904 = vunpack.c.l.bf16 %v2776
      %v2905 = vunpack.c.l.bf16 %v2777
      %v2906 = vunpack.c.l.bf16 %v2778
      %v2907 = vunpack.c.l.bf16 %v2779
      %v2908 = vunpack.c.l.bf16 %v2780
      %v2909 = vunpack.c.l.bf16 %v2781
      %v2910 = vunpack.c.l.bf16 %v2782
      %v2911 = vunpack.c.l.bf16 %v2783
      %v2912 = vunpack.c.l.bf16 %v2784
      %v2913 = vunpack.c.l.bf16 %v2785
      %v2914 = vunpack.c.l.bf16 %v2786
      %v2915 = vunpack.c.l.bf16 %v2787
      %v2916 = vunpack.c.l.bf16 %v2788
      %v2917 = vunpack.c.l.bf16 %v2789
      %v2918 = vunpack.c.l.bf16 %v2790
      %v2919 = vunpack.c.l.bf16 %v2791
      %v2920 = vunpack.c.l.bf16 %v2792
      %v2921 = vunpack.c.l.bf16 %v2793
      %v2922 = vunpack.c.l.bf16 %v2794
      %v2923 = vunpack.c.l.bf16 %v2795
      %v2924 = vunpack.c.l.bf16 %v2796
      %v2925 = vunpack.c.l.bf16 %v2797
      %v2926 = vunpack.c.l.bf16 %v2798
      %v2927 = vunpack.c.l.bf16 %v2799
      %v2928 = vunpack.c.l.bf16 %v2800
      %v2929 = vunpack.c.l.bf16 %v2801
      %v2930 = vunpack.c.l.bf16 %v2802
      %v2931 = vunpack.c.l.bf16 %v2803
      %v2932 = vunpack.c.l.bf16 %v2804
      %v2933 = vunpack.c.l.bf16 %v2805
      %v2934 = vunpack.c.l.bf16 %v2806
      %v2935 = vunpack.c.l.bf16 %v2807
      %v2936 = vunpack.c.l.bf16 %v2808
      %v2937 = vunpack.c.l.bf16 %v2809
      %v2938 = vunpack.c.l.bf16 %v2810
      %v2939 = vunpack.c.l.bf16 %v2811
      %v2940 = vunpack.c.l.bf16 %v2812
      %v2941 = vunpack.c.l.bf16 %v2813
      %v2942 = vunpack.c.l.bf16 %v2814
      %v2943 = vunpack.c.l.bf16 %v2815
      %v2944 = vunpack.c.l.bf16 %v2816
      %v2945 = vunpack.c.l.bf16 %v2817
      %v2946 = vunpack.c.l.bf16 %v2818
      %v2947 = vunpack.c.l.bf16 %v2819
      %v2948 = vunpack.c.l.bf16 %v2820
      %v2949 = vunpack.c.l.bf16 %v2821
      %v2950 = vunpack.c.l.bf16 %v2822
      %v2951 = vunpack.c.l.bf16 %v2823
      %v2952 = vunpack.c.l.bf16 %v2824
      %v2953 = vunpack.c.l.bf16 %v2825
      %v2954 = vunpack.c.l.bf16 %v2826
      %v2955 = vunpack.c.l.bf16 %v2827
      %v2956 = vunpack.c.l.bf16 %v2828
      %v2957 = vunpack.c.l.bf16 %v2829
      %v2958 = vunpack.c.l.bf16 %v2830
      %v2959 = vunpack.c.l.bf16 %v2831
      %v2960 = vunpack.c.l.bf16 %v2832
      %v2961 = vunpack.c.l.bf16 %v2833
      %v2962 = vunpack.c.l.bf16 %v2834
      %v2963 = vunpack.c.l.bf16 %v2835
      %v2964 = vunpack.c.l.bf16 %v2836
      %v2965 = vunpack.c.l.bf16 %v2837
      %v2966 = vunpack.c.l.bf16 %v2838
      %v2967 = vunpack.c.l.bf16 %v2839
      %v2968 = vunpack.c.l.bf16 %v2840
      %v2969 = vunpack.c.l.bf16 %v2841
      %v2970 = vunpack.c.l.bf16 %v2842
      %v2971 = vunpack.c.l.bf16 %v2843
      %v2972 = vunpack.c.l.bf16 %v2844
      %v2973 = vunpack.c.l.bf16 %v2845
      %v2974 = vunpack.c.l.bf16 %v2846
      %v2975 = vunpack.c.l.bf16 %v2847
      %v2976 = vunpack.c.l.bf16 %v2848
      %v2977 = vunpack.c.l.bf16 %v2849
      %v2978 = vunpack.c.l.bf16 %v2850
      %v2979 = vunpack.c.l.bf16 %v2851
      %v2980 = vunpack.c.l.bf16 %v2852
      %v2981 = vunpack.c.l.bf16 %v2853
      %v2982 = vunpack.c.l.bf16 %v2854
      %v2983 = vunpack.c.l.bf16 %v2855
      %v2984 = vunpack.c.l.bf16 %v2856
      %v2985 = vunpack.c.l.bf16 %v2857
      %v2986 = vunpack.c.l.bf16 %v2858
      %v2987 = vunpack.c.l.bf16 %v2859
      %v2988 = vunpack.c.l.bf16 %v2860
      %v2989 = vunpack.c.l.bf16 %v2861
      %v2990 = vunpack.c.l.bf16 %v2862
      %v2991 = vunpack.c.l.bf16 %v2863
      %v2992 = vunpack.c.l.bf16 %v2864
      %v2993 = vunpack.c.l.bf16 %v2865
      %v2994 = vunpack.c.l.bf16 %v2866
      %v2995 = vunpack.c.l.bf16 %v2867
      %v2996 = vunpack.c.l.bf16 %v2868
      %v2997 = vunpack.c.l.bf16 %v2869
      %v2998 = vunpack.c.l.bf16 %v2870
      %v2999 = vunpack.c.l.bf16 %v2871
      %v3000 = vunpack.c.l.bf16 %v2872
      %v3001 = vunpack.c.l.bf16 %v2873
      %v3002 = vunpack.c.l.bf16 %v2874
      %v3003 = vunpack.c.l.bf16 %v2875
      %v3004 = vunpack.c.l.bf16 %v2876
      %v3005 = vunpack.c.l.bf16 %v2877
      %v3006 = vunpack.c.l.bf16 %v2878
      %v3007 = vunpack.c.l.bf16 %v2879
      %v3136 = vrot.slane %v2880, 4
      %v3137 = vrot.slane %v2881, 3
      %v3138 = vsel %vm1146, %v3137, %v3136
      %v3139 = vrot.slane %v2882, 2
      %v3140 = vsel %vm1149, %v3139, %v3138
      %v3141 = vrot.slane %v2883, 1
      %v3142 = vsel %vm1152, %v3141, %v3140
      %v3143 = vsel %vm1155, %v2884, %v3142
      %v3144 = vrot.slane %v2885, 7
      %v3145 = vsel %vm1158, %v3144, %v3143
      %v3146 = vrot.slane %v2886, 6
      %v3147 = vsel %vm1161, %v3146, %v3145
      %v3148 = vrot.slane %v2887, 5
      %v3149 = vsel %vm1164, %v3148, %v3147
      %v3150 = vrot.slane %v2888, 4
      %v3151 = vrot.slane %v2889, 3
      %v3152 = vsel %vm1146, %v3151, %v3150
      %v3153 = vrot.slane %v2890, 2
      %v3154 = vsel %vm1149, %v3153, %v3152
      %v3155 = vrot.slane %v2891, 1
      %v3156 = vsel %vm1152, %v3155, %v3154
      %v3157 = vsel %vm1155, %v2892, %v3156
      %v3158 = vrot.slane %v2893, 7
      %v3159 = vsel %vm1158, %v3158, %v3157
      %v3160 = vrot.slane %v2894, 6
      %v3161 = vsel %vm1161, %v3160, %v3159
      %v3162 = vrot.slane %v2895, 5
      %v3163 = vsel %vm1164, %v3162, %v3161
      %v3164 = vrot.slane %v2896, 4
      %v3165 = vrot.slane %v2897, 3
      %v3166 = vsel %vm1146, %v3165, %v3164
      %v3167 = vrot.slane %v2898, 2
      %v3168 = vsel %vm1149, %v3167, %v3166
      %v3169 = vrot.slane %v2899, 1
      %v3170 = vsel %vm1152, %v3169, %v3168
      %v3171 = vsel %vm1155, %v2900, %v3170
      %v3172 = vrot.slane %v2901, 7
      %v3173 = vsel %vm1158, %v3172, %v3171
      %v3174 = vrot.slane %v2902, 6
      %v3175 = vsel %vm1161, %v3174, %v3173
      %v3176 = vrot.slane %v2903, 5
      %v3177 = vsel %vm1164, %v3176, %v3175
      %v3178 = vrot.slane %v2904, 4
      %v3179 = vrot.slane %v2905, 3
      %v3180 = vsel %vm1146, %v3179, %v3178
      %v3181 = vrot.slane %v2906, 2
      %v3182 = vsel %vm1149, %v3181, %v3180
      %v3183 = vrot.slane %v2907, 1
      %v3184 = vsel %vm1152, %v3183, %v3182
      %v3185 = vsel %vm1155, %v2908, %v3184
      %v3186 = vrot.slane %v2909, 7
      %v3187 = vsel %vm1158, %v3186, %v3185
      %v3188 = vrot.slane %v2910, 6
      %v3189 = vsel %vm1161, %v3188, %v3187
      %v3190 = vrot.slane %v2911, 5
      %v3191 = vsel %vm1164, %v3190, %v3189
      %v3192 = vrot.slane %v2912, 4
      %v3193 = vrot.slane %v2913, 3
      %v3194 = vsel %vm1146, %v3193, %v3192
      %v3195 = vrot.slane %v2914, 2
      %v3196 = vsel %vm1149, %v3195, %v3194
      %v3197 = vrot.slane %v2915, 1
      %v3198 = vsel %vm1152, %v3197, %v3196
      %v3199 = vsel %vm1155, %v2916, %v3198
      %v3200 = vrot.slane %v2917, 7
      %v3201 = vsel %vm1158, %v3200, %v3199
      %v3202 = vrot.slane %v2918, 6
      %v3203 = vsel %vm1161, %v3202, %v3201
      %v3204 = vrot.slane %v2919, 5
      %v3205 = vsel %vm1164, %v3204, %v3203
      %v3206 = vrot.slane %v2920, 4
      %v3207 = vrot.slane %v2921, 3
      %v3208 = vsel %vm1146, %v3207, %v3206
      %v3209 = vrot.slane %v2922, 2
      %v3210 = vsel %vm1149, %v3209, %v3208
      %v3211 = vrot.slane %v2923, 1
      %v3212 = vsel %vm1152, %v3211, %v3210
      %v3213 = vsel %vm1155, %v2924, %v3212
      %v3214 = vrot.slane %v2925, 7
      %v3215 = vsel %vm1158, %v3214, %v3213
      %v3216 = vrot.slane %v2926, 6
      %v3217 = vsel %vm1161, %v3216, %v3215
      %v3218 = vrot.slane %v2927, 5
      %v3219 = vsel %vm1164, %v3218, %v3217
      %v3220 = vrot.slane %v2928, 4
      %v3221 = vrot.slane %v2929, 3
      %v3222 = vsel %vm1146, %v3221, %v3220
      %v3223 = vrot.slane %v2930, 2
      %v3224 = vsel %vm1149, %v3223, %v3222
      %v3225 = vrot.slane %v2931, 1
      %v3226 = vsel %vm1152, %v3225, %v3224
      %v3227 = vsel %vm1155, %v2932, %v3226
      %v3228 = vrot.slane %v2933, 7
      %v3229 = vsel %vm1158, %v3228, %v3227
      %v3230 = vrot.slane %v2934, 6
      %v3231 = vsel %vm1161, %v3230, %v3229
      %v3232 = vrot.slane %v2935, 5
      %v3233 = vsel %vm1164, %v3232, %v3231
      %v3234 = vrot.slane %v2936, 4
      %v3235 = vrot.slane %v2937, 3
      %v3236 = vsel %vm1146, %v3235, %v3234
      %v3237 = vrot.slane %v2938, 2
      %v3238 = vsel %vm1149, %v3237, %v3236
      %v3239 = vrot.slane %v2939, 1
      %v3240 = vsel %vm1152, %v3239, %v3238
      %v3241 = vsel %vm1155, %v2940, %v3240
      %v3242 = vrot.slane %v2941, 7
      %v3243 = vsel %vm1158, %v3242, %v3241
      %v3244 = vrot.slane %v2942, 6
      %v3245 = vsel %vm1161, %v3244, %v3243
      %v3246 = vrot.slane %v2943, 5
      %v3247 = vsel %vm1164, %v3246, %v3245
      %v3248 = vrot.slane %v2944, 4
      %v3249 = vrot.slane %v2945, 3
      %v3250 = vsel %vm1146, %v3249, %v3248
      %v3251 = vrot.slane %v2946, 2
      %v3252 = vsel %vm1149, %v3251, %v3250
      %v3253 = vrot.slane %v2947, 1
      %v3254 = vsel %vm1152, %v3253, %v3252
      %v3255 = vsel %vm1155, %v2948, %v3254
      %v3256 = vrot.slane %v2949, 7
      %v3257 = vsel %vm1158, %v3256, %v3255
      %v3258 = vrot.slane %v2950, 6
      %v3259 = vsel %vm1161, %v3258, %v3257
      %v3260 = vrot.slane %v2951, 5
      %v3261 = vsel %vm1164, %v3260, %v3259
      %v3262 = vrot.slane %v2952, 4
      %v3263 = vrot.slane %v2953, 3
      %v3264 = vsel %vm1146, %v3263, %v3262
      %v3265 = vrot.slane %v2954, 2
      %v3266 = vsel %vm1149, %v3265, %v3264
      %v3267 = vrot.slane %v2955, 1
      %v3268 = vsel %vm1152, %v3267, %v3266
      %v3269 = vsel %vm1155, %v2956, %v3268
      %v3270 = vrot.slane %v2957, 7
      %v3271 = vsel %vm1158, %v3270, %v3269
      %v3272 = vrot.slane %v2958, 6
      %v3273 = vsel %vm1161, %v3272, %v3271
      %v3274 = vrot.slane %v2959, 5
      %v3275 = vsel %vm1164, %v3274, %v3273
      %v3276 = vrot.slane %v2960, 4
      %v3277 = vrot.slane %v2961, 3
      %v3278 = vsel %vm1146, %v3277, %v3276
      %v3279 = vrot.slane %v2962, 2
      %v3280 = vsel %vm1149, %v3279, %v3278
      %v3281 = vrot.slane %v2963, 1
      %v3282 = vsel %vm1152, %v3281, %v3280
      %v3283 = vsel %vm1155, %v2964, %v3282
      %v3284 = vrot.slane %v2965, 7
      %v3285 = vsel %vm1158, %v3284, %v3283
      %v3286 = vrot.slane %v2966, 6
      %v3287 = vsel %vm1161, %v3286, %v3285
      %v3288 = vrot.slane %v2967, 5
      %v3289 = vsel %vm1164, %v3288, %v3287
      %v3290 = vrot.slane %v2968, 4
      %v3291 = vrot.slane %v2969, 3
      %v3292 = vsel %vm1146, %v3291, %v3290
      %v3293 = vrot.slane %v2970, 2
      %v3294 = vsel %vm1149, %v3293, %v3292
      %v3295 = vrot.slane %v2971, 1
      %v3296 = vsel %vm1152, %v3295, %v3294
      %v3297 = vsel %vm1155, %v2972, %v3296
      %v3298 = vrot.slane %v2973, 7
      %v3299 = vsel %vm1158, %v3298, %v3297
      %v3300 = vrot.slane %v2974, 6
      %v3301 = vsel %vm1161, %v3300, %v3299
      %v3302 = vrot.slane %v2975, 5
      %v3303 = vsel %vm1164, %v3302, %v3301
      %v3304 = vrot.slane %v2976, 4
      %v3305 = vrot.slane %v2977, 3
      %v3306 = vsel %vm1146, %v3305, %v3304
      %v3307 = vrot.slane %v2978, 2
      %v3308 = vsel %vm1149, %v3307, %v3306
      %v3309 = vrot.slane %v2979, 1
      %v3310 = vsel %vm1152, %v3309, %v3308
      %v3311 = vsel %vm1155, %v2980, %v3310
      %v3312 = vrot.slane %v2981, 7
      %v3313 = vsel %vm1158, %v3312, %v3311
      %v3314 = vrot.slane %v2982, 6
      %v3315 = vsel %vm1161, %v3314, %v3313
      %v3316 = vrot.slane %v2983, 5
      %v3317 = vsel %vm1164, %v3316, %v3315
      %v3318 = vrot.slane %v2984, 4
      %v3319 = vrot.slane %v2985, 3
      %v3320 = vsel %vm1146, %v3319, %v3318
      %v3321 = vrot.slane %v2986, 2
      %v3322 = vsel %vm1149, %v3321, %v3320
      %v3323 = vrot.slane %v2987, 1
      %v3324 = vsel %vm1152, %v3323, %v3322
      %v3325 = vsel %vm1155, %v2988, %v3324
      %v3326 = vrot.slane %v2989, 7
      %v3327 = vsel %vm1158, %v3326, %v3325
      %v3328 = vrot.slane %v2990, 6
      %v3329 = vsel %vm1161, %v3328, %v3327
      %v3330 = vrot.slane %v2991, 5
      %v3331 = vsel %vm1164, %v3330, %v3329
      %v3332 = vrot.slane %v2992, 4
      %v3333 = vrot.slane %v2993, 3
      %v3334 = vsel %vm1146, %v3333, %v3332
      %v3335 = vrot.slane %v2994, 2
      %v3336 = vsel %vm1149, %v3335, %v3334
      %v3337 = vrot.slane %v2995, 1
      %v3338 = vsel %vm1152, %v3337, %v3336
      %v3339 = vsel %vm1155, %v2996, %v3338
      %v3340 = vrot.slane %v2997, 7
      %v3341 = vsel %vm1158, %v3340, %v3339
      %v3342 = vrot.slane %v2998, 6
      %v3343 = vsel %vm1161, %v3342, %v3341
      %v3344 = vrot.slane %v2999, 5
      %v3345 = vsel %vm1164, %v3344, %v3343
      %v3346 = vrot.slane %v3000, 4
      %v3347 = vrot.slane %v3001, 3
      %v3348 = vsel %vm1146, %v3347, %v3346
      %v3349 = vrot.slane %v3002, 2
      %v3350 = vsel %vm1149, %v3349, %v3348
      %v3351 = vrot.slane %v3003, 1
      %v3352 = vsel %vm1152, %v3351, %v3350
      %v3353 = vsel %vm1155, %v3004, %v3352
      %v3354 = vrot.slane %v3005, 7
      %v3355 = vsel %vm1158, %v3354, %v3353
      %v3356 = vrot.slane %v3006, 6
      %v3357 = vsel %vm1161, %v3356, %v3355
      %v3358 = vrot.slane %v3007, 5
      %v3359 = vsel %vm1164, %v3358, %v3357
      %v3376 = vmul.f32 %v745, %v3149
      %v3377 = vmul.f32 %v746, %v3163
      %v3378 = vmul.f32 %v747, %v3177
      %v3379 = vmul.f32 %v748, %v3191
      %v3380 = vmul.f32 %v749, %v3205
      %v3381 = vmul.f32 %v750, %v3219
      %v3382 = vmul.f32 %v751, %v3233
      %v3383 = vmul.f32 %v752, %v3247
      %v3384 = vmul.f32 %v753, %v3261
      %v3385 = vmul.f32 %v754, %v3275
      %v3386 = vmul.f32 %v755, %v3289
      %v3387 = vmul.f32 %v756, %v3303
      %v3388 = vmul.f32 %v757, %v3317
      %v3389 = vmul.f32 %v758, %v3331
      %v3390 = vmul.f32 %v759, %v3345
      %v3391 = vmul.f32 %v760, %v3359
      %v3392 = vsel %vm667, %v3376, 0.0
      %3393 = vadd.xlane.f32.xlu0 %v3392
      %v3394 = vpop.xlane.xlu0 %3393
      %v3395 = vsel %vm667, %v3377, 0.0
      %3396 = vadd.xlane.f32.xlu0 %v3395
      %v3397 = vpop.xlane.xlu0 %3396
      %v3398 = vsel %vm667, %v3378, 0.0
      %3399 = vadd.xlane.f32.xlu0 %v3398
      %v3400 = vpop.xlane.xlu0 %3399
      %v3401 = vsel %vm667, %v3379, 0.0
      %3402 = vadd.xlane.f32.xlu0 %v3401
      %v3403 = vpop.xlane.xlu0 %3402
      %v3404 = vsel %vm667, %v3380, 0.0
      %3405 = vadd.xlane.f32.xlu0 %v3404
      %v3406 = vpop.xlane.xlu0 %3405
      %v3407 = vsel %vm667, %v3381, 0.0
      %3408 = vadd.xlane.f32.xlu0 %v3407
      %v3409 = vpop.xlane.xlu0 %3408
      %v3410 = vsel %vm667, %v3382, 0.0
      %3411 = vadd.xlane.f32.xlu0 %v3410
      %v3412 = vpop.xlane.xlu0 %3411
      %v3413 = vsel %vm667, %v3383, 0.0
      %3414 = vadd.xlane.f32.xlu0 %v3413
      %v3415 = vpop.xlane.xlu0 %3414
      %v3416 = vsel %vm667, %v3384, 0.0
      %3417 = vadd.xlane.f32.xlu0 %v3416
      %v3418 = vpop.xlane.xlu0 %3417
      %v3419 = vsel %vm667, %v3385, 0.0
      %3420 = vadd.xlane.f32.xlu0 %v3419
      %v3421 = vpop.xlane.xlu0 %3420
      %v3422 = vsel %vm667, %v3386, 0.0
      %3423 = vadd.xlane.f32.xlu0 %v3422
      %v3424 = vpop.xlane.xlu0 %3423
      %v3425 = vsel %vm667, %v3387, 0.0
      %3426 = vadd.xlane.f32.xlu0 %v3425
      %v3427 = vpop.xlane.xlu0 %3426
      %v3428 = vsel %vm667, %v3388, 0.0
      %3429 = vadd.xlane.f32.xlu0 %v3428
      %v3430 = vpop.xlane.xlu0 %3429
      %v3431 = vsel %vm667, %v3389, 0.0
      %3432 = vadd.xlane.f32.xlu0 %v3431
      %v3433 = vpop.xlane.xlu0 %3432
      %v3434 = vsel %vm667, %v3390, 0.0
      %3435 = vadd.xlane.f32.xlu0 %v3434
      %v3436 = vpop.xlane.xlu0 %3435
      %v3437 = vsel %vm667, %v3391, 0.0
      %3438 = vadd.xlane.f32.xlu0 %v3437
      %v3439 = vpop.xlane.xlu0 %3438
      %v3440 = vrot.slane %v2880, 5
      %v3441 = vrot.slane %v2881, 4
      %v3442 = vsel %vm1146, %v3441, %v3440
      %v3443 = vrot.slane %v2882, 3
      %v3444 = vsel %vm1149, %v3443, %v3442
      %v3445 = vrot.slane %v2883, 2
      %v3446 = vsel %vm1152, %v3445, %v3444
      %v3447 = vrot.slane %v2884, 1
      %v3448 = vsel %vm1155, %v3447, %v3446
      %v3449 = vsel %vm1158, %v2885, %v3448
      %v3450 = vrot.slane %v2886, 7
      %v3451 = vsel %vm1161, %v3450, %v3449
      %v3452 = vrot.slane %v2887, 6
      %v3453 = vsel %vm1164, %v3452, %v3451
      %v3454 = vrot.slane %v2888, 5
      %v3455 = vrot.slane %v2889, 4
      %v3456 = vsel %vm1146, %v3455, %v3454
      %v3457 = vrot.slane %v2890, 3
      %v3458 = vsel %vm1149, %v3457, %v3456
      %v3459 = vrot.slane %v2891, 2
      %v3460 = vsel %vm1152, %v3459, %v3458
      %v3461 = vrot.slane %v2892, 1
      %v3462 = vsel %vm1155, %v3461, %v3460
      %v3463 = vsel %vm1158, %v2893, %v3462
      %v3464 = vrot.slane %v2894, 7
      %v3465 = vsel %vm1161, %v3464, %v3463
      %v3466 = vrot.slane %v2895, 6
      %v3467 = vsel %vm1164, %v3466, %v3465
      %v3468 = vrot.slane %v2896, 5
      %v3469 = vrot.slane %v2897, 4
      %v3470 = vsel %vm1146, %v3469, %v3468
      %v3471 = vrot.slane %v2898, 3
      %v3472 = vsel %vm1149, %v3471, %v3470
      %v3473 = vrot.slane %v2899, 2
      %v3474 = vsel %vm1152, %v3473, %v3472
      %v3475 = vrot.slane %v2900, 1
      %v3476 = vsel %vm1155, %v3475, %v3474
      %v3477 = vsel %vm1158, %v2901, %v3476
      %v3478 = vrot.slane %v2902, 7
      %v3479 = vsel %vm1161, %v3478, %v3477
      %v3480 = vrot.slane %v2903, 6
      %v3481 = vsel %vm1164, %v3480, %v3479
      %v3482 = vrot.slane %v2904, 5
      %v3483 = vrot.slane %v2905, 4
      %v3484 = vsel %vm1146, %v3483, %v3482
      %v3485 = vrot.slane %v2906, 3
      %v3486 = vsel %vm1149, %v3485, %v3484
      %v3487 = vrot.slane %v2907, 2
      %v3488 = vsel %vm1152, %v3487, %v3486
      %v3489 = vrot.slane %v2908, 1
      %v3490 = vsel %vm1155, %v3489, %v3488
      %v3491 = vsel %vm1158, %v2909, %v3490
      %v3492 = vrot.slane %v2910, 7
      %v3493 = vsel %vm1161, %v3492, %v3491
      %v3494 = vrot.slane %v2911, 6
      %v3495 = vsel %vm1164, %v3494, %v3493
      %v3496 = vrot.slane %v2912, 5
      %v3497 = vrot.slane %v2913, 4
      %v3498 = vsel %vm1146, %v3497, %v3496
      %v3499 = vrot.slane %v2914, 3
      %v3500 = vsel %vm1149, %v3499, %v3498
      %v3501 = vrot.slane %v2915, 2
      %v3502 = vsel %vm1152, %v3501, %v3500
      %v3503 = vrot.slane %v2916, 1
      %v3504 = vsel %vm1155, %v3503, %v3502
      %v3505 = vsel %vm1158, %v2917, %v3504
      %v3506 = vrot.slane %v2918, 7
      %v3507 = vsel %vm1161, %v3506, %v3505
      %v3508 = vrot.slane %v2919, 6
      %v3509 = vsel %vm1164, %v3508, %v3507
      %v3510 = vrot.slane %v2920, 5
      %v3511 = vrot.slane %v2921, 4
      %v3512 = vsel %vm1146, %v3511, %v3510
      %v3513 = vrot.slane %v2922, 3
      %v3514 = vsel %vm1149, %v3513, %v3512
      %v3515 = vrot.slane %v2923, 2
      %v3516 = vsel %vm1152, %v3515, %v3514
      %v3517 = vrot.slane %v2924, 1
      %v3518 = vsel %vm1155, %v3517, %v3516
      %v3519 = vsel %vm1158, %v2925, %v3518
      %v3520 = vrot.slane %v2926, 7
      %v3521 = vsel %vm1161, %v3520, %v3519
      %v3522 = vrot.slane %v2927, 6
      %v3523 = vsel %vm1164, %v3522, %v3521
      %v3524 = vrot.slane %v2928, 5
      %v3525 = vrot.slane %v2929, 4
      %v3526 = vsel %vm1146, %v3525, %v3524
      %v3527 = vrot.slane %v2930, 3
      %v3528 = vsel %vm1149, %v3527, %v3526
      %v3529 = vrot.slane %v2931, 2
      %v3530 = vsel %vm1152, %v3529, %v3528
      %v3531 = vrot.slane %v2932, 1
      %v3532 = vsel %vm1155, %v3531, %v3530
      %v3533 = vsel %vm1158, %v2933, %v3532
      %v3534 = vrot.slane %v2934, 7
      %v3535 = vsel %vm1161, %v3534, %v3533
      %v3536 = vrot.slane %v2935, 6
      %v3537 = vsel %vm1164, %v3536, %v3535
      %v3538 = vrot.slane %v2936, 5
      %v3539 = vrot.slane %v2937, 4
      %v3540 = vsel %vm1146, %v3539, %v3538
      %v3541 = vrot.slane %v2938, 3
      %v3542 = vsel %vm1149, %v3541, %v3540
      %v3543 = vrot.slane %v2939, 2
      %v3544 = vsel %vm1152, %v3543, %v3542
      %v3545 = vrot.slane %v2940, 1
      %v3546 = vsel %vm1155, %v3545, %v3544
      %v3547 = vsel %vm1158, %v2941, %v3546
      %v3548 = vrot.slane %v2942, 7
      %v3549 = vsel %vm1161, %v3548, %v3547
      %v3550 = vrot.slane %v2943, 6
      %v3551 = vsel %vm1164, %v3550, %v3549
      %v3552 = vrot.slane %v2944, 5
      %v3553 = vrot.slane %v2945, 4
      %v3554 = vsel %vm1146, %v3553, %v3552
      %v3555 = vrot.slane %v2946, 3
      %v3556 = vsel %vm1149, %v3555, %v3554
      %v3557 = vrot.slane %v2947, 2
      %v3558 = vsel %vm1152, %v3557, %v3556
      %v3559 = vrot.slane %v2948, 1
      %v3560 = vsel %vm1155, %v3559, %v3558
      %v3561 = vsel %vm1158, %v2949, %v3560
      %v3562 = vrot.slane %v2950, 7
      %v3563 = vsel %vm1161, %v3562, %v3561
      %v3564 = vrot.slane %v2951, 6
      %v3565 = vsel %vm1164, %v3564, %v3563
      %v3566 = vrot.slane %v2952, 5
      %v3567 = vrot.slane %v2953, 4
      %v3568 = vsel %vm1146, %v3567, %v3566
      %v3569 = vrot.slane %v2954, 3
      %v3570 = vsel %vm1149, %v3569, %v3568
      %v3571 = vrot.slane %v2955, 2
      %v3572 = vsel %vm1152, %v3571, %v3570
      %v3573 = vrot.slane %v2956, 1
      %v3574 = vsel %vm1155, %v3573, %v3572
      %v3575 = vsel %vm1158, %v2957, %v3574
      %v3576 = vrot.slane %v2958, 7
      %v3577 = vsel %vm1161, %v3576, %v3575
      %v3578 = vrot.slane %v2959, 6
      %v3579 = vsel %vm1164, %v3578, %v3577
      %v3580 = vrot.slane %v2960, 5
      %v3581 = vrot.slane %v2961, 4
      %v3582 = vsel %vm1146, %v3581, %v3580
      %v3583 = vrot.slane %v2962, 3
      %v3584 = vsel %vm1149, %v3583, %v3582
      %v3585 = vrot.slane %v2963, 2
      %v3586 = vsel %vm1152, %v3585, %v3584
      %v3587 = vrot.slane %v2964, 1
      %v3588 = vsel %vm1155, %v3587, %v3586
      %v3589 = vsel %vm1158, %v2965, %v3588
      %v3590 = vrot.slane %v2966, 7
      %v3591 = vsel %vm1161, %v3590, %v3589
      %v3592 = vrot.slane %v2967, 6
      %v3593 = vsel %vm1164, %v3592, %v3591
      %v3594 = vrot.slane %v2968, 5
      %v3595 = vrot.slane %v2969, 4
      %v3596 = vsel %vm1146, %v3595, %v3594
      %v3597 = vrot.slane %v2970, 3
      %v3598 = vsel %vm1149, %v3597, %v3596
      %v3599 = vrot.slane %v2971, 2
      %v3600 = vsel %vm1152, %v3599, %v3598
      %v3601 = vrot.slane %v2972, 1
      %v3602 = vsel %vm1155, %v3601, %v3600
      %v3603 = vsel %vm1158, %v2973, %v3602
      %v3604 = vrot.slane %v2974, 7
      %v3605 = vsel %vm1161, %v3604, %v3603
      %v3606 = vrot.slane %v2975, 6
      %v3607 = vsel %vm1164, %v3606, %v3605
      %v3608 = vrot.slane %v2976, 5
      %v3609 = vrot.slane %v2977, 4
      %v3610 = vsel %vm1146, %v3609, %v3608
      %v3611 = vrot.slane %v2978, 3
      %v3612 = vsel %vm1149, %v3611, %v3610
      %v3613 = vrot.slane %v2979, 2
      %v3614 = vsel %vm1152, %v3613, %v3612
      %v3615 = vrot.slane %v2980, 1
      %v3616 = vsel %vm1155, %v3615, %v3614
      %v3617 = vsel %vm1158, %v2981, %v3616
      %v3618 = vrot.slane %v2982, 7
      %v3619 = vsel %vm1161, %v3618, %v3617
      %v3620 = vrot.slane %v2983, 6
      %v3621 = vsel %vm1164, %v3620, %v3619
      %v3622 = vrot.slane %v2984, 5
      %v3623 = vrot.slane %v2985, 4
      %v3624 = vsel %vm1146, %v3623, %v3622
      %v3625 = vrot.slane %v2986, 3
      %v3626 = vsel %vm1149, %v3625, %v3624
      %v3627 = vrot.slane %v2987, 2
      %v3628 = vsel %vm1152, %v3627, %v3626
      %v3629 = vrot.slane %v2988, 1
      %v3630 = vsel %vm1155, %v3629, %v3628
      %v3631 = vsel %vm1158, %v2989, %v3630
      %v3632 = vrot.slane %v2990, 7
      %v3633 = vsel %vm1161, %v3632, %v3631
      %v3634 = vrot.slane %v2991, 6
      %v3635 = vsel %vm1164, %v3634, %v3633
      %v3636 = vrot.slane %v2992, 5
      %v3637 = vrot.slane %v2993, 4
      %v3638 = vsel %vm1146, %v3637, %v3636
      %v3639 = vrot.slane %v2994, 3
      %v3640 = vsel %vm1149, %v3639, %v3638
      %v3641 = vrot.slane %v2995, 2
      %v3642 = vsel %vm1152, %v3641, %v3640
      %v3643 = vrot.slane %v2996, 1
      %v3644 = vsel %vm1155, %v3643, %v3642
      %v3645 = vsel %vm1158, %v2997, %v3644
      %v3646 = vrot.slane %v2998, 7
      %v3647 = vsel %vm1161, %v3646, %v3645
      %v3648 = vrot.slane %v2999, 6
      %v3649 = vsel %vm1164, %v3648, %v3647
      %v3650 = vrot.slane %v3000, 5
      %v3651 = vrot.slane %v3001, 4
      %v3652 = vsel %vm1146, %v3651, %v3650
      %v3653 = vrot.slane %v3002, 3
      %v3654 = vsel %vm1149, %v3653, %v3652
      %v3655 = vrot.slane %v3003, 2
      %v3656 = vsel %vm1152, %v3655, %v3654
      %v3657 = vrot.slane %v3004, 1
      %v3658 = vsel %vm1155, %v3657, %v3656
      %v3659 = vsel %vm1158, %v3005, %v3658
      %v3660 = vrot.slane %v3006, 7
      %v3661 = vsel %vm1161, %v3660, %v3659
      %v3662 = vrot.slane %v3007, 6
      %v3663 = vsel %vm1164, %v3662, %v3661
      %v3680 = vmul.f32 %v745, %v3453
      %v3681 = vmul.f32 %v746, %v3467
      %v3682 = vmul.f32 %v747, %v3481
      %v3683 = vmul.f32 %v748, %v3495
      %v3684 = vmul.f32 %v749, %v3509
      %v3685 = vmul.f32 %v750, %v3523
      %v3686 = vmul.f32 %v751, %v3537
      %v3687 = vmul.f32 %v752, %v3551
      %v3688 = vmul.f32 %v753, %v3565
      %v3689 = vmul.f32 %v754, %v3579
      %v3690 = vmul.f32 %v755, %v3593
      %v3691 = vmul.f32 %v756, %v3607
      %v3692 = vmul.f32 %v757, %v3621
      %v3693 = vmul.f32 %v758, %v3635
      %v3694 = vmul.f32 %v759, %v3649
      %v3695 = vmul.f32 %v760, %v3663
      %v3696 = vsel %vm667, %v3680, 0.0
      %3697 = vadd.xlane.f32.xlu0 %v3696
      %v3698 = vpop.xlane.xlu0 %3697
      %v3699 = vsel %vm667, %v3681, 0.0
      %3700 = vadd.xlane.f32.xlu0 %v3699
      %v3701 = vpop.xlane.xlu0 %3700
      %v3702 = vsel %vm667, %v3682, 0.0
      %3703 = vadd.xlane.f32.xlu0 %v3702
      %v3704 = vpop.xlane.xlu0 %3703
      %v3705 = vsel %vm667, %v3683, 0.0
      %3706 = vadd.xlane.f32.xlu0 %v3705
      %v3707 = vpop.xlane.xlu0 %3706
      %v3708 = vsel %vm667, %v3684, 0.0
      %3709 = vadd.xlane.f32.xlu0 %v3708
      %v3710 = vpop.xlane.xlu0 %3709
      %v3711 = vsel %vm667, %v3685, 0.0
      %3712 = vadd.xlane.f32.xlu0 %v3711
      %v3713 = vpop.xlane.xlu0 %3712
      %v3714 = vsel %vm667, %v3686, 0.0
      %3715 = vadd.xlane.f32.xlu0 %v3714
      %v3716 = vpop.xlane.xlu0 %3715
      %v3717 = vsel %vm667, %v3687, 0.0
      %3718 = vadd.xlane.f32.xlu0 %v3717
      %v3719 = vpop.xlane.xlu0 %3718
      %v3720 = vsel %vm667, %v3688, 0.0
      %3721 = vadd.xlane.f32.xlu0 %v3720
      %v3722 = vpop.xlane.xlu0 %3721
      %v3723 = vsel %vm667, %v3689, 0.0
      %3724 = vadd.xlane.f32.xlu0 %v3723
      %v3725 = vpop.xlane.xlu0 %3724
      %v3726 = vsel %vm667, %v3690, 0.0
      %3727 = vadd.xlane.f32.xlu0 %v3726
      %v3728 = vpop.xlane.xlu0 %3727
      %v3729 = vsel %vm667, %v3691, 0.0
      %3730 = vadd.xlane.f32.xlu0 %v3729
      %v3731 = vpop.xlane.xlu0 %3730
      %v3732 = vsel %vm667, %v3692, 0.0
      %3733 = vadd.xlane.f32.xlu0 %v3732
      %v3734 = vpop.xlane.xlu0 %3733
      %v3735 = vsel %vm667, %v3693, 0.0
      %3736 = vadd.xlane.f32.xlu0 %v3735
      %v3737 = vpop.xlane.xlu0 %3736
      %v3738 = vsel %vm667, %v3694, 0.0
      %3739 = vadd.xlane.f32.xlu0 %v3738
      %v3740 = vpop.xlane.xlu0 %3739
      %v3741 = vsel %vm667, %v3695, 0.0
      %3742 = vadd.xlane.f32.xlu0 %v3741
      %v3743 = vpop.xlane.xlu0 %3742
      %v3744 = vld [vmem:[%s448] sm:$0x8]
      %v3745 = vld [vmem:[%s448 + $0x4] sm:$0x8]
      %v3746 = vld [vmem:[%s448 + $0x8] sm:$0x8]
      %v3747 = vld [vmem:[%s448 + $0xc] sm:$0x8]
      %v3748 = vld [vmem:[%s448 + $0x10] sm:$0x8]
      %v3749 = vld [vmem:[%s448 + $0x14] sm:$0x8]
      %v3750 = vld [vmem:[%s448 + $0x18] sm:$0x8]
      %v3751 = vld [vmem:[%s448 + $0x1c] sm:$0x8]
      %v3752 = vld [vmem:[%s448 + $0x20] sm:$0x8]
      %v3753 = vld [vmem:[%s448 + $0x24] sm:$0x8]
      %v3754 = vld [vmem:[%s448 + $0x28] sm:$0x8]
      %v3755 = vld [vmem:[%s448 + $0x2c] sm:$0x8]
      %v3756 = vld [vmem:[%s448 + $0x30] sm:$0x8]
      %v3757 = vld [vmem:[%s448 + $0x34] sm:$0x8]
      %v3758 = vld [vmem:[%s448 + $0x38] sm:$0x8]
      %v3759 = vld [vmem:[%s448 + $0x3c] sm:$0x8]
      %v3760 = vld [vmem:[%s448 + $0x40] sm:$0x8]
      %v3761 = vld [vmem:[%s448 + $0x44] sm:$0x8]
      %v3762 = vld [vmem:[%s448 + $0x48] sm:$0x8]
      %v3763 = vld [vmem:[%s448 + $0x4c] sm:$0x8]
      %v3764 = vld [vmem:[%s448 + $0x50] sm:$0x8]
      %v3765 = vld [vmem:[%s448 + $0x54] sm:$0x8]
      %v3766 = vld [vmem:[%s448 + $0x58] sm:$0x8]
      %v3767 = vld [vmem:[%s448 + $0x5c] sm:$0x8]
      %v3768 = vld [vmem:[%s448 + $0x60] sm:$0x8]
      %v3769 = vld [vmem:[%s448 + $0x64] sm:$0x8]
      %v3770 = vld [vmem:[%s448 + $0x68] sm:$0x8]
      %v3771 = vld [vmem:[%s448 + $0x6c] sm:$0x8]
      %v3772 = vld [vmem:[%s448 + $0x70] sm:$0x8]
      %v3773 = vld [vmem:[%s448 + $0x74] sm:$0x8]
      %v3774 = vld [vmem:[%s448 + $0x78] sm:$0x8]
      %v3775 = vld [vmem:[%s448 + $0x7c] sm:$0x8]
      %v3776 = vld [vmem:[%s448 + $0x80] sm:$0x8]
      %v3777 = vld [vmem:[%s448 + $0x84] sm:$0x8]
      %v3778 = vld [vmem:[%s448 + $0x88] sm:$0x8]
      %v3779 = vld [vmem:[%s448 + $0x8c] sm:$0x8]
      %v3780 = vld [vmem:[%s448 + $0x90] sm:$0x8]
      %v3781 = vld [vmem:[%s448 + $0x94] sm:$0x8]
      %v3782 = vld [vmem:[%s448 + $0x98] sm:$0x8]
      %v3783 = vld [vmem:[%s448 + $0x9c] sm:$0x8]
      %v3784 = vld [vmem:[%s448 + $0xa0] sm:$0x8]
      %v3785 = vld [vmem:[%s448 + $0xa4] sm:$0x8]
      %v3786 = vld [vmem:[%s448 + $0xa8] sm:$0x8]
      %v3787 = vld [vmem:[%s448 + $0xac] sm:$0x8]
      %v3788 = vld [vmem:[%s448 + $0xb0] sm:$0x8]
      %v3789 = vld [vmem:[%s448 + $0xb4] sm:$0x8]
      %v3790 = vld [vmem:[%s448 + $0xb8] sm:$0x8]
      %v3791 = vld [vmem:[%s448 + $0xbc] sm:$0x8]
      %v3792 = vld [vmem:[%s448 + $0xc0] sm:$0x8]
      %v3793 = vld [vmem:[%s448 + $0xc4] sm:$0x8]
      %v3794 = vld [vmem:[%s448 + $0xc8] sm:$0x8]
      %v3795 = vld [vmem:[%s448 + $0xcc] sm:$0x8]
      %v3796 = vld [vmem:[%s448 + $0xd0] sm:$0x8]
      %v3797 = vld [vmem:[%s448 + $0xd4] sm:$0x8]
      %v3798 = vld [vmem:[%s448 + $0xd8] sm:$0x8]
      %v3799 = vld [vmem:[%s448 + $0xdc] sm:$0x8]
      %v3800 = vld [vmem:[%s448 + $0xe0] sm:$0x8]
      %v3801 = vld [vmem:[%s448 + $0xe4] sm:$0x8]
      %v3802 = vld [vmem:[%s448 + $0xe8] sm:$0x8]
      %v3803 = vld [vmem:[%s448 + $0xec] sm:$0x8]
      %v3804 = vld [vmem:[%s448 + $0xf0] sm:$0x8]
      %v3805 = vld [vmem:[%s448 + $0xf4] sm:$0x8]
      %v3806 = vld [vmem:[%s448 + $0xf8] sm:$0x8]
      %v3807 = vld [vmem:[%s448 + $0xfc] sm:$0x8]
      %v3808 = vld [vmem:[%s448 + $0x100] sm:$0x8]
      %v3809 = vld [vmem:[%s448 + $0x104] sm:$0x8]
      %v3810 = vld [vmem:[%s448 + $0x108] sm:$0x8]
      %v3811 = vld [vmem:[%s448 + $0x10c] sm:$0x8]
      %v3812 = vld [vmem:[%s448 + $0x110] sm:$0x8]
      %v3813 = vld [vmem:[%s448 + $0x114] sm:$0x8]
      %v3814 = vld [vmem:[%s448 + $0x118] sm:$0x8]
      %v3815 = vld [vmem:[%s448 + $0x11c] sm:$0x8]
      %v3816 = vld [vmem:[%s448 + $0x120] sm:$0x8]
      %v3817 = vld [vmem:[%s448 + $0x124] sm:$0x8]
      %v3818 = vld [vmem:[%s448 + $0x128] sm:$0x8]
      %v3819 = vld [vmem:[%s448 + $0x12c] sm:$0x8]
      %v3820 = vld [vmem:[%s448 + $0x130] sm:$0x8]
      %v3821 = vld [vmem:[%s448 + $0x134] sm:$0x8]
      %v3822 = vld [vmem:[%s448 + $0x138] sm:$0x8]
      %v3823 = vld [vmem:[%s448 + $0x13c] sm:$0x8]
      %v3824 = vld [vmem:[%s448 + $0x140] sm:$0x8]
      %v3825 = vld [vmem:[%s448 + $0x144] sm:$0x8]
      %v3826 = vld [vmem:[%s448 + $0x148] sm:$0x8]
      %v3827 = vld [vmem:[%s448 + $0x14c] sm:$0x8]
      %v3828 = vld [vmem:[%s448 + $0x150] sm:$0x8]
      %v3829 = vld [vmem:[%s448 + $0x154] sm:$0x8]
      %v3830 = vld [vmem:[%s448 + $0x158] sm:$0x8]
      %v3831 = vld [vmem:[%s448 + $0x15c] sm:$0x8]
      %v3832 = vld [vmem:[%s448 + $0x160] sm:$0x8]
      %v3833 = vld [vmem:[%s448 + $0x164] sm:$0x8]
      %v3834 = vld [vmem:[%s448 + $0x168] sm:$0x8]
      %v3835 = vld [vmem:[%s448 + $0x16c] sm:$0x8]
      %v3836 = vld [vmem:[%s448 + $0x170] sm:$0x8]
      %v3837 = vld [vmem:[%s448 + $0x174] sm:$0x8]
      %v3838 = vld [vmem:[%s448 + $0x178] sm:$0x8]
      %v3839 = vld [vmem:[%s448 + $0x17c] sm:$0x8]
      %v3840 = vld [vmem:[%s448 + $0x180] sm:$0x8]
      %v3841 = vld [vmem:[%s448 + $0x184] sm:$0x8]
      %v3842 = vld [vmem:[%s448 + $0x188] sm:$0x8]
      %v3843 = vld [vmem:[%s448 + $0x18c] sm:$0x8]
      %v3844 = vld [vmem:[%s448 + $0x190] sm:$0x8]
      %v3845 = vld [vmem:[%s448 + $0x194] sm:$0x8]
      %v3846 = vld [vmem:[%s448 + $0x198] sm:$0x8]
      %v3847 = vld [vmem:[%s448 + $0x19c] sm:$0x8]
      %v3848 = vld [vmem:[%s448 + $0x1a0] sm:$0x8]
      %v3849 = vld [vmem:[%s448 + $0x1a4] sm:$0x8]
      %v3850 = vld [vmem:[%s448 + $0x1a8] sm:$0x8]
      %v3851 = vld [vmem:[%s448 + $0x1ac] sm:$0x8]
      %v3852 = vld [vmem:[%s448 + $0x1b0] sm:$0x8]
      %v3853 = vld [vmem:[%s448 + $0x1b4] sm:$0x8]
      %v3854 = vld [vmem:[%s448 + $0x1b8] sm:$0x8]
      %v3855 = vld [vmem:[%s448 + $0x1bc] sm:$0x8]
      %v3856 = vld [vmem:[%s448 + $0x1c0] sm:$0x8]
      %v3857 = vld [vmem:[%s448 + $0x1c4] sm:$0x8]
      %v3858 = vld [vmem:[%s448 + $0x1c8] sm:$0x8]
      %v3859 = vld [vmem:[%s448 + $0x1cc] sm:$0x8]
      %v3860 = vld [vmem:[%s448 + $0x1d0] sm:$0x8]
      %v3861 = vld [vmem:[%s448 + $0x1d4] sm:$0x8]
      %v3862 = vld [vmem:[%s448 + $0x1d8] sm:$0x8]
      %v3863 = vld [vmem:[%s448 + $0x1dc] sm:$0x8]
      %v3864 = vld [vmem:[%s448 + $0x1e0] sm:$0x8]
      %v3865 = vld [vmem:[%s448 + $0x1e4] sm:$0x8]
      %v3866 = vld [vmem:[%s448 + $0x1e8] sm:$0x8]
      %v3867 = vld [vmem:[%s448 + $0x1ec] sm:$0x8]
      %v3868 = vld [vmem:[%s448 + $0x1f0] sm:$0x8]
      %v3869 = vld [vmem:[%s448 + $0x1f4] sm:$0x8]
      %v3870 = vld [vmem:[%s448 + $0x1f8] sm:$0x8]
      %v3871 = vld [vmem:[%s448 + $0x1fc] sm:$0x8]
      %v3872 = vunpack.c.l.bf16 %v3744
      %v3873 = vunpack.c.l.bf16 %v3745
      %v3874 = vunpack.c.l.bf16 %v3746
      %v3875 = vunpack.c.l.bf16 %v3747
      %v3876 = vunpack.c.l.bf16 %v3748
      %v3877 = vunpack.c.l.bf16 %v3749
      %v3878 = vunpack.c.l.bf16 %v3750
      %v3879 = vunpack.c.l.bf16 %v3751
      %v3880 = vunpack.c.l.bf16 %v3752
      %v3881 = vunpack.c.l.bf16 %v3753
      %v3882 = vunpack.c.l.bf16 %v3754
      %v3883 = vunpack.c.l.bf16 %v3755
      %v3884 = vunpack.c.l.bf16 %v3756
      %v3885 = vunpack.c.l.bf16 %v3757
      %v3886 = vunpack.c.l.bf16 %v3758
      %v3887 = vunpack.c.l.bf16 %v3759
      %v3888 = vunpack.c.l.bf16 %v3760
      %v3889 = vunpack.c.l.bf16 %v3761
      %v3890 = vunpack.c.l.bf16 %v3762
      %v3891 = vunpack.c.l.bf16 %v3763
      %v3892 = vunpack.c.l.bf16 %v3764
      %v3893 = vunpack.c.l.bf16 %v3765
      %v3894 = vunpack.c.l.bf16 %v3766
      %v3895 = vunpack.c.l.bf16 %v3767
      %v3896 = vunpack.c.l.bf16 %v3768
      %v3897 = vunpack.c.l.bf16 %v3769
      %v3898 = vunpack.c.l.bf16 %v3770
      %v3899 = vunpack.c.l.bf16 %v3771
      %v3900 = vunpack.c.l.bf16 %v3772
      %v3901 = vunpack.c.l.bf16 %v3773
      %v3902 = vunpack.c.l.bf16 %v3774
      %v3903 = vunpack.c.l.bf16 %v3775
      %v3904 = vunpack.c.l.bf16 %v3776
      %v3905 = vunpack.c.l.bf16 %v3777
      %v3906 = vunpack.c.l.bf16 %v3778
      %v3907 = vunpack.c.l.bf16 %v3779
      %v3908 = vunpack.c.l.bf16 %v3780
      %v3909 = vunpack.c.l.bf16 %v3781
      %v3910 = vunpack.c.l.bf16 %v3782
      %v3911 = vunpack.c.l.bf16 %v3783
      %v3912 = vunpack.c.l.bf16 %v3784
      %v3913 = vunpack.c.l.bf16 %v3785
      %v3914 = vunpack.c.l.bf16 %v3786
      %v3915 = vunpack.c.l.bf16 %v3787
      %v3916 = vunpack.c.l.bf16 %v3788
      %v3917 = vunpack.c.l.bf16 %v3789
      %v3918 = vunpack.c.l.bf16 %v3790
      %v3919 = vunpack.c.l.bf16 %v3791
      %v3920 = vunpack.c.l.bf16 %v3792
      %v3921 = vunpack.c.l.bf16 %v3793
      %v3922 = vunpack.c.l.bf16 %v3794
      %v3923 = vunpack.c.l.bf16 %v3795
      %v3924 = vunpack.c.l.bf16 %v3796
      %v3925 = vunpack.c.l.bf16 %v3797
      %v3926 = vunpack.c.l.bf16 %v3798
      %v3927 = vunpack.c.l.bf16 %v3799
      %v3928 = vunpack.c.l.bf16 %v3800
      %v3929 = vunpack.c.l.bf16 %v3801
      %v3930 = vunpack.c.l.bf16 %v3802
      %v3931 = vunpack.c.l.bf16 %v3803
      %v3932 = vunpack.c.l.bf16 %v3804
      %v3933 = vunpack.c.l.bf16 %v3805
      %v3934 = vunpack.c.l.bf16 %v3806
      %v3935 = vunpack.c.l.bf16 %v3807
      %v3936 = vunpack.c.l.bf16 %v3808
      %v3937 = vunpack.c.l.bf16 %v3809
      %v3938 = vunpack.c.l.bf16 %v3810
      %v3939 = vunpack.c.l.bf16 %v3811
      %v3940 = vunpack.c.l.bf16 %v3812
      %v3941 = vunpack.c.l.bf16 %v3813
      %v3942 = vunpack.c.l.bf16 %v3814
      %v3943 = vunpack.c.l.bf16 %v3815
      %v3944 = vunpack.c.l.bf16 %v3816
      %v3945 = vunpack.c.l.bf16 %v3817
      %v3946 = vunpack.c.l.bf16 %v3818
      %v3947 = vunpack.c.l.bf16 %v3819
      %v3948 = vunpack.c.l.bf16 %v3820
      %v3949 = vunpack.c.l.bf16 %v3821
      %v3950 = vunpack.c.l.bf16 %v3822
      %v3951 = vunpack.c.l.bf16 %v3823
      %v3952 = vunpack.c.l.bf16 %v3824
      %v3953 = vunpack.c.l.bf16 %v3825
      %v3954 = vunpack.c.l.bf16 %v3826
      %v3955 = vunpack.c.l.bf16 %v3827
      %v3956 = vunpack.c.l.bf16 %v3828
      %v3957 = vunpack.c.l.bf16 %v3829
      %v3958 = vunpack.c.l.bf16 %v3830
      %v3959 = vunpack.c.l.bf16 %v3831
      %v3960 = vunpack.c.l.bf16 %v3832
      %v3961 = vunpack.c.l.bf16 %v3833
      %v3962 = vunpack.c.l.bf16 %v3834
      %v3963 = vunpack.c.l.bf16 %v3835
      %v3964 = vunpack.c.l.bf16 %v3836
      %v3965 = vunpack.c.l.bf16 %v3837
      %v3966 = vunpack.c.l.bf16 %v3838
      %v3967 = vunpack.c.l.bf16 %v3839
      %v3968 = vunpack.c.l.bf16 %v3840
      %v3969 = vunpack.c.l.bf16 %v3841
      %v3970 = vunpack.c.l.bf16 %v3842
      %v3971 = vunpack.c.l.bf16 %v3843
      %v3972 = vunpack.c.l.bf16 %v3844
      %v3973 = vunpack.c.l.bf16 %v3845
      %v3974 = vunpack.c.l.bf16 %v3846
      %v3975 = vunpack.c.l.bf16 %v3847
      %v3976 = vunpack.c.l.bf16 %v3848
      %v3977 = vunpack.c.l.bf16 %v3849
      %v3978 = vunpack.c.l.bf16 %v3850
      %v3979 = vunpack.c.l.bf16 %v3851
      %v3980 = vunpack.c.l.bf16 %v3852
      %v3981 = vunpack.c.l.bf16 %v3853
      %v3982 = vunpack.c.l.bf16 %v3854
      %v3983 = vunpack.c.l.bf16 %v3855
      %v3984 = vunpack.c.l.bf16 %v3856
      %v3985 = vunpack.c.l.bf16 %v3857
      %v3986 = vunpack.c.l.bf16 %v3858
      %v3987 = vunpack.c.l.bf16 %v3859
      %v3988 = vunpack.c.l.bf16 %v3860
      %v3989 = vunpack.c.l.bf16 %v3861
      %v3990 = vunpack.c.l.bf16 %v3862
      %v3991 = vunpack.c.l.bf16 %v3863
      %v3992 = vunpack.c.l.bf16 %v3864
      %v3993 = vunpack.c.l.bf16 %v3865
      %v3994 = vunpack.c.l.bf16 %v3866
      %v3995 = vunpack.c.l.bf16 %v3867
      %v3996 = vunpack.c.l.bf16 %v3868
      %v3997 = vunpack.c.l.bf16 %v3869
      %v3998 = vunpack.c.l.bf16 %v3870
      %v3999 = vunpack.c.l.bf16 %v3871
      %v4128 = vrot.slane %v3872, 6
      %v4129 = vrot.slane %v3873, 5
      %v4130 = vsel %vm1146, %v4129, %v4128
      %v4131 = vrot.slane %v3874, 4
      %v4132 = vsel %vm1149, %v4131, %v4130
      %v4133 = vrot.slane %v3875, 3
      %v4134 = vsel %vm1152, %v4133, %v4132
      %v4135 = vrot.slane %v3876, 2
      %v4136 = vsel %vm1155, %v4135, %v4134
      %v4137 = vrot.slane %v3877, 1
      %v4138 = vsel %vm1158, %v4137, %v4136
      %v4139 = vsel %vm1161, %v3878, %v4138
      %v4140 = vrot.slane %v3879, 7
      %v4141 = vsel %vm1164, %v4140, %v4139
      %v4142 = vrot.slane %v3880, 6
      %v4143 = vrot.slane %v3881, 5
      %v4144 = vsel %vm1146, %v4143, %v4142
      %v4145 = vrot.slane %v3882, 4
      %v4146 = vsel %vm1149, %v4145, %v4144
      %v4147 = vrot.slane %v3883, 3
      %v4148 = vsel %vm1152, %v4147, %v4146
      %v4149 = vrot.slane %v3884, 2
      %v4150 = vsel %vm1155, %v4149, %v4148
      %v4151 = vrot.slane %v3885, 1
      %v4152 = vsel %vm1158, %v4151, %v4150
      %v4153 = vsel %vm1161, %v3886, %v4152
      %v4154 = vrot.slane %v3887, 7
      %v4155 = vsel %vm1164, %v4154, %v4153
      %v4156 = vrot.slane %v3888, 6
      %v4157 = vrot.slane %v3889, 5
      %v4158 = vsel %vm1146, %v4157, %v4156
      %v4159 = vrot.slane %v3890, 4
      %v4160 = vsel %vm1149, %v4159, %v4158
      %v4161 = vrot.slane %v3891, 3
      %v4162 = vsel %vm1152, %v4161, %v4160
      %v4163 = vrot.slane %v3892, 2
      %v4164 = vsel %vm1155, %v4163, %v4162
      %v4165 = vrot.slane %v3893, 1
      %v4166 = vsel %vm1158, %v4165, %v4164
      %v4167 = vsel %vm1161, %v3894, %v4166
      %v4168 = vrot.slane %v3895, 7
      %v4169 = vsel %vm1164, %v4168, %v4167
      %v4170 = vrot.slane %v3896, 6
      %v4171 = vrot.slane %v3897, 5
      %v4172 = vsel %vm1146, %v4171, %v4170
      %v4173 = vrot.slane %v3898, 4
      %v4174 = vsel %vm1149, %v4173, %v4172
      %v4175 = vrot.slane %v3899, 3
      %v4176 = vsel %vm1152, %v4175, %v4174
      %v4177 = vrot.slane %v3900, 2
      %v4178 = vsel %vm1155, %v4177, %v4176
      %v4179 = vrot.slane %v3901, 1
      %v4180 = vsel %vm1158, %v4179, %v4178
      %v4181 = vsel %vm1161, %v3902, %v4180
      %v4182 = vrot.slane %v3903, 7
      %v4183 = vsel %vm1164, %v4182, %v4181
      %v4184 = vrot.slane %v3904, 6
      %v4185 = vrot.slane %v3905, 5
      %v4186 = vsel %vm1146, %v4185, %v4184
      %v4187 = vrot.slane %v3906, 4
      %v4188 = vsel %vm1149, %v4187, %v4186
      %v4189 = vrot.slane %v3907, 3
      %v4190 = vsel %vm1152, %v4189, %v4188
      %v4191 = vrot.slane %v3908, 2
      %v4192 = vsel %vm1155, %v4191, %v4190
      %v4193 = vrot.slane %v3909, 1
      %v4194 = vsel %vm1158, %v4193, %v4192
      %v4195 = vsel %vm1161, %v3910, %v4194
      %v4196 = vrot.slane %v3911, 7
      %v4197 = vsel %vm1164, %v4196, %v4195
      %v4198 = vrot.slane %v3912, 6
      %v4199 = vrot.slane %v3913, 5
      %v4200 = vsel %vm1146, %v4199, %v4198
      %v4201 = vrot.slane %v3914, 4
      %v4202 = vsel %vm1149, %v4201, %v4200
      %v4203 = vrot.slane %v3915, 3
      %v4204 = vsel %vm1152, %v4203, %v4202
      %v4205 = vrot.slane %v3916, 2
      %v4206 = vsel %vm1155, %v4205, %v4204
      %v4207 = vrot.slane %v3917, 1
      %v4208 = vsel %vm1158, %v4207, %v4206
      %v4209 = vsel %vm1161, %v3918, %v4208
      %v4210 = vrot.slane %v3919, 7
      %v4211 = vsel %vm1164, %v4210, %v4209
      %v4212 = vrot.slane %v3920, 6
      %v4213 = vrot.slane %v3921, 5
      %v4214 = vsel %vm1146, %v4213, %v4212
      %v4215 = vrot.slane %v3922, 4
      %v4216 = vsel %vm1149, %v4215, %v4214
      %v4217 = vrot.slane %v3923, 3
      %v4218 = vsel %vm1152, %v4217, %v4216
      %v4219 = vrot.slane %v3924, 2
      %v4220 = vsel %vm1155, %v4219, %v4218
      %v4221 = vrot.slane %v3925, 1
      %v4222 = vsel %vm1158, %v4221, %v4220
      %v4223 = vsel %vm1161, %v3926, %v4222
      %v4224 = vrot.slane %v3927, 7
      %v4225 = vsel %vm1164, %v4224, %v4223
      %v4226 = vrot.slane %v3928, 6
      %v4227 = vrot.slane %v3929, 5
      %v4228 = vsel %vm1146, %v4227, %v4226
      %v4229 = vrot.slane %v3930, 4
      %v4230 = vsel %vm1149, %v4229, %v4228
      %v4231 = vrot.slane %v3931, 3
      %v4232 = vsel %vm1152, %v4231, %v4230
      %v4233 = vrot.slane %v3932, 2
      %v4234 = vsel %vm1155, %v4233, %v4232
      %v4235 = vrot.slane %v3933, 1
      %v4236 = vsel %vm1158, %v4235, %v4234
      %v4237 = vsel %vm1161, %v3934, %v4236
      %v4238 = vrot.slane %v3935, 7
      %v4239 = vsel %vm1164, %v4238, %v4237
      %v4240 = vrot.slane %v3936, 6
      %v4241 = vrot.slane %v3937, 5
      %v4242 = vsel %vm1146, %v4241, %v4240
      %v4243 = vrot.slane %v3938, 4
      %v4244 = vsel %vm1149, %v4243, %v4242
      %v4245 = vrot.slane %v3939, 3
      %v4246 = vsel %vm1152, %v4245, %v4244
      %v4247 = vrot.slane %v3940, 2
      %v4248 = vsel %vm1155, %v4247, %v4246
      %v4249 = vrot.slane %v3941, 1
      %v4250 = vsel %vm1158, %v4249, %v4248
      %v4251 = vsel %vm1161, %v3942, %v4250
      %v4252 = vrot.slane %v3943, 7
      %v4253 = vsel %vm1164, %v4252, %v4251
      %v4254 = vrot.slane %v3944, 6
      %v4255 = vrot.slane %v3945, 5
      %v4256 = vsel %vm1146, %v4255, %v4254
      %v4257 = vrot.slane %v3946, 4
      %v4258 = vsel %vm1149, %v4257, %v4256
      %v4259 = vrot.slane %v3947, 3
      %v4260 = vsel %vm1152, %v4259, %v4258
      %v4261 = vrot.slane %v3948, 2
      %v4262 = vsel %vm1155, %v4261, %v4260
      %v4263 = vrot.slane %v3949, 1
      %v4264 = vsel %vm1158, %v4263, %v4262
      %v4265 = vsel %vm1161, %v3950, %v4264
      %v4266 = vrot.slane %v3951, 7
      %v4267 = vsel %vm1164, %v4266, %v4265
      %v4268 = vrot.slane %v3952, 6
      %v4269 = vrot.slane %v3953, 5
      %v4270 = vsel %vm1146, %v4269, %v4268
      %v4271 = vrot.slane %v3954, 4
      %v4272 = vsel %vm1149, %v4271, %v4270
      %v4273 = vrot.slane %v3955, 3
      %v4274 = vsel %vm1152, %v4273, %v4272
      %v4275 = vrot.slane %v3956, 2
      %v4276 = vsel %vm1155, %v4275, %v4274
      %v4277 = vrot.slane %v3957, 1
      %v4278 = vsel %vm1158, %v4277, %v4276
      %v4279 = vsel %vm1161, %v3958, %v4278
      %v4280 = vrot.slane %v3959, 7
      %v4281 = vsel %vm1164, %v4280, %v4279
      %v4282 = vrot.slane %v3960, 6
      %v4283 = vrot.slane %v3961, 5
      %v4284 = vsel %vm1146, %v4283, %v4282
      %v4285 = vrot.slane %v3962, 4
      %v4286 = vsel %vm1149, %v4285, %v4284
      %v4287 = vrot.slane %v3963, 3
      %v4288 = vsel %vm1152, %v4287, %v4286
      %v4289 = vrot.slane %v3964, 2
      %v4290 = vsel %vm1155, %v4289, %v4288
      %v4291 = vrot.slane %v3965, 1
      %v4292 = vsel %vm1158, %v4291, %v4290
      %v4293 = vsel %vm1161, %v3966, %v4292
      %v4294 = vrot.slane %v3967, 7
      %v4295 = vsel %vm1164, %v4294, %v4293
      %v4296 = vrot.slane %v3968, 6
      %v4297 = vrot.slane %v3969, 5
      %v4298 = vsel %vm1146, %v4297, %v4296
      %v4299 = vrot.slane %v3970, 4
      %v4300 = vsel %vm1149, %v4299, %v4298
      %v4301 = vrot.slane %v3971, 3
      %v4302 = vsel %vm1152, %v4301, %v4300
      %v4303 = vrot.slane %v3972, 2
      %v4304 = vsel %vm1155, %v4303, %v4302
      %v4305 = vrot.slane %v3973, 1
      %v4306 = vsel %vm1158, %v4305, %v4304
      %v4307 = vsel %vm1161, %v3974, %v4306
      %v4308 = vrot.slane %v3975, 7
      %v4309 = vsel %vm1164, %v4308, %v4307
      %v4310 = vrot.slane %v3976, 6
      %v4311 = vrot.slane %v3977, 5
      %v4312 = vsel %vm1146, %v4311, %v4310
      %v4313 = vrot.slane %v3978, 4
      %v4314 = vsel %vm1149, %v4313, %v4312
      %v4315 = vrot.slane %v3979, 3
      %v4316 = vsel %vm1152, %v4315, %v4314
      %v4317 = vrot.slane %v3980, 2
      %v4318 = vsel %vm1155, %v4317, %v4316
      %v4319 = vrot.slane %v3981, 1
      %v4320 = vsel %vm1158, %v4319, %v4318
      %v4321 = vsel %vm1161, %v3982, %v4320
      %v4322 = vrot.slane %v3983, 7
      %v4323 = vsel %vm1164, %v4322, %v4321
      %v4324 = vrot.slane %v3984, 6
      %v4325 = vrot.slane %v3985, 5
      %v4326 = vsel %vm1146, %v4325, %v4324
      %v4327 = vrot.slane %v3986, 4
      %v4328 = vsel %vm1149, %v4327, %v4326
      %v4329 = vrot.slane %v3987, 3
      %v4330 = vsel %vm1152, %v4329, %v4328
      %v4331 = vrot.slane %v3988, 2
      %v4332 = vsel %vm1155, %v4331, %v4330
      %v4333 = vrot.slane %v3989, 1
      %v4334 = vsel %vm1158, %v4333, %v4332
      %v4335 = vsel %vm1161, %v3990, %v4334
      %v4336 = vrot.slane %v3991, 7
      %v4337 = vsel %vm1164, %v4336, %v4335
      %v4338 = vrot.slane %v3992, 6
      %v4339 = vrot.slane %v3993, 5
      %v4340 = vsel %vm1146, %v4339, %v4338
      %v4341 = vrot.slane %v3994, 4
      %v4342 = vsel %vm1149, %v4341, %v4340
      %v4343 = vrot.slane %v3995, 3
      %v4344 = vsel %vm1152, %v4343, %v4342
      %v4345 = vrot.slane %v3996, 2
      %v4346 = vsel %vm1155, %v4345, %v4344
      %v4347 = vrot.slane %v3997, 1
      %v4348 = vsel %vm1158, %v4347, %v4346
      %v4349 = vsel %vm1161, %v3998, %v4348
      %v4350 = vrot.slane %v3999, 7
      %v4351 = vsel %vm1164, %v4350, %v4349
      %v4368 = vmul.f32 %v745, %v4141
      %v4369 = vmul.f32 %v746, %v4155
      %v4370 = vmul.f32 %v747, %v4169
      %v4371 = vmul.f32 %v748, %v4183
      %v4372 = vmul.f32 %v749, %v4197
      %v4373 = vmul.f32 %v750, %v4211
      %v4374 = vmul.f32 %v751, %v4225
      %v4375 = vmul.f32 %v752, %v4239
      %v4376 = vmul.f32 %v753, %v4253
      %v4377 = vmul.f32 %v754, %v4267
      %v4378 = vmul.f32 %v755, %v4281
      %v4379 = vmul.f32 %v756, %v4295
      %v4380 = vmul.f32 %v757, %v4309
      %v4381 = vmul.f32 %v758, %v4323
      %v4382 = vmul.f32 %v759, %v4337
      %v4383 = vmul.f32 %v760, %v4351
      %v4384 = vsel %vm667, %v4368, 0.0
      %4385 = vadd.xlane.f32.xlu0 %v4384
      %v4386 = vpop.xlane.xlu0 %4385
      %v4387 = vsel %vm667, %v4369, 0.0
      %4388 = vadd.xlane.f32.xlu0 %v4387
      %v4389 = vpop.xlane.xlu0 %4388
      %v4390 = vsel %vm667, %v4370, 0.0
      %4391 = vadd.xlane.f32.xlu0 %v4390
      %v4392 = vpop.xlane.xlu0 %4391
      %v4393 = vsel %vm667, %v4371, 0.0
      %4394 = vadd.xlane.f32.xlu0 %v4393
      %v4395 = vpop.xlane.xlu0 %4394
      %v4396 = vsel %vm667, %v4372, 0.0
      %4397 = vadd.xlane.f32.xlu0 %v4396
      %v4398 = vpop.xlane.xlu0 %4397
      %v4399 = vsel %vm667, %v4373, 0.0
      %4400 = vadd.xlane.f32.xlu0 %v4399
      %v4401 = vpop.xlane.xlu0 %4400
      %v4402 = vsel %vm667, %v4374, 0.0
      %4403 = vadd.xlane.f32.xlu0 %v4402
      %v4404 = vpop.xlane.xlu0 %4403
      %v4405 = vsel %vm667, %v4375, 0.0
      %4406 = vadd.xlane.f32.xlu0 %v4405
      %v4407 = vpop.xlane.xlu0 %4406
      %v4408 = vsel %vm667, %v4376, 0.0
      %4409 = vadd.xlane.f32.xlu0 %v4408
      %v4410 = vpop.xlane.xlu0 %4409
      %v4411 = vsel %vm667, %v4377, 0.0
      %4412 = vadd.xlane.f32.xlu0 %v4411
      %v4413 = vpop.xlane.xlu0 %4412
      %v4414 = vsel %vm667, %v4378, 0.0
      %4415 = vadd.xlane.f32.xlu0 %v4414
      %v4416 = vpop.xlane.xlu0 %4415
      %v4417 = vsel %vm667, %v4379, 0.0
      %4418 = vadd.xlane.f32.xlu0 %v4417
      %v4419 = vpop.xlane.xlu0 %4418
      %v4420 = vsel %vm667, %v4380, 0.0
      %4421 = vadd.xlane.f32.xlu0 %v4420
      %v4422 = vpop.xlane.xlu0 %4421
      %v4423 = vsel %vm667, %v4381, 0.0
      %4424 = vadd.xlane.f32.xlu0 %v4423
      %v4425 = vpop.xlane.xlu0 %4424
      %v4426 = vsel %vm667, %v4382, 0.0
      %4427 = vadd.xlane.f32.xlu0 %v4426
      %v4428 = vpop.xlane.xlu0 %4427
      %v4429 = vsel %vm667, %v4383, 0.0
      %4430 = vadd.xlane.f32.xlu0 %v4429
      %v4431 = vpop.xlane.xlu0 %4430
      %v4432 = vrot.slane %v3872, 7
      %v4433 = vrot.slane %v3873, 6
      %v4434 = vsel %vm1146, %v4433, %v4432
      %v4435 = vrot.slane %v3874, 5
      %v4436 = vsel %vm1149, %v4435, %v4434
      %v4437 = vrot.slane %v3875, 4
      %v4438 = vsel %vm1152, %v4437, %v4436
      %v4439 = vrot.slane %v3876, 3
      %v4440 = vsel %vm1155, %v4439, %v4438
      %v4441 = vrot.slane %v3877, 2
      %v4442 = vsel %vm1158, %v4441, %v4440
      %v4443 = vrot.slane %v3878, 1
      %v4444 = vsel %vm1161, %v4443, %v4442
      %v4445 = vsel %vm1164, %v3879, %v4444
      %v4446 = vrot.slane %v3880, 7
      %v4447 = vrot.slane %v3881, 6
      %v4448 = vsel %vm1146, %v4447, %v4446
      %v4449 = vrot.slane %v3882, 5
      %v4450 = vsel %vm1149, %v4449, %v4448
      %v4451 = vrot.slane %v3883, 4
      %v4452 = vsel %vm1152, %v4451, %v4450
      %v4453 = vrot.slane %v3884, 3
      %v4454 = vsel %vm1155, %v4453, %v4452
      %v4455 = vrot.slane %v3885, 2
      %v4456 = vsel %vm1158, %v4455, %v4454
      %v4457 = vrot.slane %v3886, 1
      %v4458 = vsel %vm1161, %v4457, %v4456
      %v4459 = vsel %vm1164, %v3887, %v4458
      %v4460 = vrot.slane %v3888, 7
      %v4461 = vrot.slane %v3889, 6
      %v4462 = vsel %vm1146, %v4461, %v4460
      %v4463 = vrot.slane %v3890, 5
      %v4464 = vsel %vm1149, %v4463, %v4462
      %v4465 = vrot.slane %v3891, 4
      %v4466 = vsel %vm1152, %v4465, %v4464
      %v4467 = vrot.slane %v3892, 3
      %v4468 = vsel %vm1155, %v4467, %v4466
      %v4469 = vrot.slane %v3893, 2
      %v4470 = vsel %vm1158, %v4469, %v4468
      %v4471 = vrot.slane %v3894, 1
      %v4472 = vsel %vm1161, %v4471, %v4470
      %v4473 = vsel %vm1164, %v3895, %v4472
      %v4474 = vrot.slane %v3896, 7
      %v4475 = vrot.slane %v3897, 6
      %v4476 = vsel %vm1146, %v4475, %v4474
      %v4477 = vrot.slane %v3898, 5
      %v4478 = vsel %vm1149, %v4477, %v4476
      %v4479 = vrot.slane %v3899, 4
      %v4480 = vsel %vm1152, %v4479, %v4478
      %v4481 = vrot.slane %v3900, 3
      %v4482 = vsel %vm1155, %v4481, %v4480
      %v4483 = vrot.slane %v3901, 2
      %v4484 = vsel %vm1158, %v4483, %v4482
      %v4485 = vrot.slane %v3902, 1
      %v4486 = vsel %vm1161, %v4485, %v4484
      %v4487 = vsel %vm1164, %v3903, %v4486
      %v4488 = vrot.slane %v3904, 7
      %v4489 = vrot.slane %v3905, 6
      %v4490 = vsel %vm1146, %v4489, %v4488
      %v4491 = vrot.slane %v3906, 5
      %v4492 = vsel %vm1149, %v4491, %v4490
      %v4493 = vrot.slane %v3907, 4
      %v4494 = vsel %vm1152, %v4493, %v4492
      %v4495 = vrot.slane %v3908, 3
      %v4496 = vsel %vm1155, %v4495, %v4494
      %v4497 = vrot.slane %v3909, 2
      %v4498 = vsel %vm1158, %v4497, %v4496
      %v4499 = vrot.slane %v3910, 1
      %v4500 = vsel %vm1161, %v4499, %v4498
      %v4501 = vsel %vm1164, %v3911, %v4500
      %v4502 = vrot.slane %v3912, 7
      %v4503 = vrot.slane %v3913, 6
      %v4504 = vsel %vm1146, %v4503, %v4502
      %v4505 = vrot.slane %v3914, 5
      %v4506 = vsel %vm1149, %v4505, %v4504
      %v4507 = vrot.slane %v3915, 4
      %v4508 = vsel %vm1152, %v4507, %v4506
      %v4509 = vrot.slane %v3916, 3
      %v4510 = vsel %vm1155, %v4509, %v4508
      %v4511 = vrot.slane %v3917, 2
      %v4512 = vsel %vm1158, %v4511, %v4510
      %v4513 = vrot.slane %v3918, 1
      %v4514 = vsel %vm1161, %v4513, %v4512
      %v4515 = vsel %vm1164, %v3919, %v4514
      %v4516 = vrot.slane %v3920, 7
      %v4517 = vrot.slane %v3921, 6
      %v4518 = vsel %vm1146, %v4517, %v4516
      %v4519 = vrot.slane %v3922, 5
      %v4520 = vsel %vm1149, %v4519, %v4518
      %v4521 = vrot.slane %v3923, 4
      %v4522 = vsel %vm1152, %v4521, %v4520
      %v4523 = vrot.slane %v3924, 3
      %v4524 = vsel %vm1155, %v4523, %v4522
      %v4525 = vrot.slane %v3925, 2
      %v4526 = vsel %vm1158, %v4525, %v4524
      %v4527 = vrot.slane %v3926, 1
      %v4528 = vsel %vm1161, %v4527, %v4526
      %v4529 = vsel %vm1164, %v3927, %v4528
      %v4530 = vrot.slane %v3928, 7
      %v4531 = vrot.slane %v3929, 6
      %v4532 = vsel %vm1146, %v4531, %v4530
      %v4533 = vrot.slane %v3930, 5
      %v4534 = vsel %vm1149, %v4533, %v4532
      %v4535 = vrot.slane %v3931, 4
      %v4536 = vsel %vm1152, %v4535, %v4534
      %v4537 = vrot.slane %v3932, 3
      %v4538 = vsel %vm1155, %v4537, %v4536
      %v4539 = vrot.slane %v3933, 2
      %v4540 = vsel %vm1158, %v4539, %v4538
      %v4541 = vrot.slane %v3934, 1
      %v4542 = vsel %vm1161, %v4541, %v4540
      %v4543 = vsel %vm1164, %v3935, %v4542
      %v4544 = vrot.slane %v3936, 7
      %v4545 = vrot.slane %v3937, 6
      %v4546 = vsel %vm1146, %v4545, %v4544
      %v4547 = vrot.slane %v3938, 5
      %v4548 = vsel %vm1149, %v4547, %v4546
      %v4549 = vrot.slane %v3939, 4
      %v4550 = vsel %vm1152, %v4549, %v4548
      %v4551 = vrot.slane %v3940, 3
      %v4552 = vsel %vm1155, %v4551, %v4550
      %v4553 = vrot.slane %v3941, 2
      %v4554 = vsel %vm1158, %v4553, %v4552
      %v4555 = vrot.slane %v3942, 1
      %v4556 = vsel %vm1161, %v4555, %v4554
      %v4557 = vsel %vm1164, %v3943, %v4556
      %v4558 = vrot.slane %v3944, 7
      %v4559 = vrot.slane %v3945, 6
      %v4560 = vsel %vm1146, %v4559, %v4558
      %v4561 = vrot.slane %v3946, 5
      %v4562 = vsel %vm1149, %v4561, %v4560
      %v4563 = vrot.slane %v3947, 4
      %v4564 = vsel %vm1152, %v4563, %v4562
      %v4565 = vrot.slane %v3948, 3
      %v4566 = vsel %vm1155, %v4565, %v4564
      %v4567 = vrot.slane %v3949, 2
      %v4568 = vsel %vm1158, %v4567, %v4566
      %v4569 = vrot.slane %v3950, 1
      %v4570 = vsel %vm1161, %v4569, %v4568
      %v4571 = vsel %vm1164, %v3951, %v4570
      %v4572 = vrot.slane %v3952, 7
      %v4573 = vrot.slane %v3953, 6
      %v4574 = vsel %vm1146, %v4573, %v4572
      %v4575 = vrot.slane %v3954, 5
      %v4576 = vsel %vm1149, %v4575, %v4574
      %v4577 = vrot.slane %v3955, 4
      %v4578 = vsel %vm1152, %v4577, %v4576
      %v4579 = vrot.slane %v3956, 3
      %v4580 = vsel %vm1155, %v4579, %v4578
      %v4581 = vrot.slane %v3957, 2
      %v4582 = vsel %vm1158, %v4581, %v4580
      %v4583 = vrot.slane %v3958, 1
      %v4584 = vsel %vm1161, %v4583, %v4582
      %v4585 = vsel %vm1164, %v3959, %v4584
      %v4586 = vrot.slane %v3960, 7
      %v4587 = vrot.slane %v3961, 6
      %v4588 = vsel %vm1146, %v4587, %v4586
      %v4589 = vrot.slane %v3962, 5
      %v4590 = vsel %vm1149, %v4589, %v4588
      %v4591 = vrot.slane %v3963, 4
      %v4592 = vsel %vm1152, %v4591, %v4590
      %v4593 = vrot.slane %v3964, 3
      %v4594 = vsel %vm1155, %v4593, %v4592
      %v4595 = vrot.slane %v3965, 2
      %v4596 = vsel %vm1158, %v4595, %v4594
      %v4597 = vrot.slane %v3966, 1
      %v4598 = vsel %vm1161, %v4597, %v4596
      %v4599 = vsel %vm1164, %v3967, %v4598
      %v4600 = vrot.slane %v3968, 7
      %v4601 = vrot.slane %v3969, 6
      %v4602 = vsel %vm1146, %v4601, %v4600
      %v4603 = vrot.slane %v3970, 5
      %v4604 = vsel %vm1149, %v4603, %v4602
      %v4605 = vrot.slane %v3971, 4
      %v4606 = vsel %vm1152, %v4605, %v4604
      %v4607 = vrot.slane %v3972, 3
      %v4608 = vsel %vm1155, %v4607, %v4606
      %v4609 = vrot.slane %v3973, 2
      %v4610 = vsel %vm1158, %v4609, %v4608
      %v4611 = vrot.slane %v3974, 1
      %v4612 = vsel %vm1161, %v4611, %v4610
      %v4613 = vsel %vm1164, %v3975, %v4612
      %v4614 = vrot.slane %v3976, 7
      %v4615 = vrot.slane %v3977, 6
      %v4616 = vsel %vm1146, %v4615, %v4614
      %v4617 = vrot.slane %v3978, 5
      %v4618 = vsel %vm1149, %v4617, %v4616
      %v4619 = vrot.slane %v3979, 4
      %v4620 = vsel %vm1152, %v4619, %v4618
      %v4621 = vrot.slane %v3980, 3
      %v4622 = vsel %vm1155, %v4621, %v4620
      %v4623 = vrot.slane %v3981, 2
      %v4624 = vsel %vm1158, %v4623, %v4622
      %v4625 = vrot.slane %v3982, 1
      %v4626 = vsel %vm1161, %v4625, %v4624
      %v4627 = vsel %vm1164, %v3983, %v4626
      %v4628 = vrot.slane %v3984, 7
      %v4629 = vrot.slane %v3985, 6
      %v4630 = vsel %vm1146, %v4629, %v4628
      %v4631 = vrot.slane %v3986, 5
      %v4632 = vsel %vm1149, %v4631, %v4630
      %v4633 = vrot.slane %v3987, 4
      %v4634 = vsel %vm1152, %v4633, %v4632
      %v4635 = vrot.slane %v3988, 3
      %v4636 = vsel %vm1155, %v4635, %v4634
      %v4637 = vrot.slane %v3989, 2
      %v4638 = vsel %vm1158, %v4637, %v4636
      %v4639 = vrot.slane %v3990, 1
      %v4640 = vsel %vm1161, %v4639, %v4638
      %v4641 = vsel %vm1164, %v3991, %v4640
      %v4642 = vrot.slane %v3992, 7
      %v4643 = vrot.slane %v3993, 6
      %v4644 = vsel %vm1146, %v4643, %v4642
      %v4645 = vrot.slane %v3994, 5
      %v4646 = vsel %vm1149, %v4645, %v4644
      %v4647 = vrot.slane %v3995, 4
      %v4648 = vsel %vm1152, %v4647, %v4646
      %v4649 = vrot.slane %v3996, 3
      %v4650 = vsel %vm1155, %v4649, %v4648
      %v4651 = vrot.slane %v3997, 2
      %v4652 = vsel %vm1158, %v4651, %v4650
      %v4653 = vrot.slane %v3998, 1
      %v4654 = vsel %vm1161, %v4653, %v4652
      %v4655 = vsel %vm1164, %v3999, %v4654
      %v4672 = vmul.f32 %v745, %v4445
      %v4673 = vmul.f32 %v746, %v4459
      %v4674 = vmul.f32 %v747, %v4473
      %v4675 = vmul.f32 %v748, %v4487
      %v4676 = vmul.f32 %v749, %v4501
      %v4677 = vmul.f32 %v750, %v4515
      %v4678 = vmul.f32 %v751, %v4529
      %v4679 = vmul.f32 %v752, %v4543
      %v4680 = vmul.f32 %v753, %v4557
      %v4681 = vmul.f32 %v754, %v4571
      %v4682 = vmul.f32 %v755, %v4585
      %v4683 = vmul.f32 %v756, %v4599
      %v4684 = vmul.f32 %v757, %v4613
      %v4685 = vmul.f32 %v758, %v4627
      %v4686 = vmul.f32 %v759, %v4641
      %v4687 = vmul.f32 %v760, %v4655
      %v4688 = vsel %vm667, %v4672, 0.0
      %4689 = vadd.xlane.f32.xlu0 %v4688
      %v4690 = vpop.xlane.xlu0 %4689
      %v4691 = vsel %vm667, %v4673, 0.0
      %4692 = vadd.xlane.f32.xlu0 %v4691
      %v4693 = vpop.xlane.xlu0 %4692
      %v4694 = vsel %vm667, %v4674, 0.0
      %4695 = vadd.xlane.f32.xlu0 %v4694
      %v4696 = vpop.xlane.xlu0 %4695
      %v4697 = vsel %vm667, %v4675, 0.0
      %4698 = vadd.xlane.f32.xlu0 %v4697
      %v4699 = vpop.xlane.xlu0 %4698
      %v4700 = vsel %vm667, %v4676, 0.0
      %4701 = vadd.xlane.f32.xlu0 %v4700
      %v4702 = vpop.xlane.xlu0 %4701
      %v4703 = vsel %vm667, %v4677, 0.0
      %4704 = vadd.xlane.f32.xlu0 %v4703
      %v4705 = vpop.xlane.xlu0 %4704
      %v4706 = vsel %vm667, %v4678, 0.0
      %4707 = vadd.xlane.f32.xlu0 %v4706
      %v4708 = vpop.xlane.xlu0 %4707
      %v4709 = vsel %vm667, %v4679, 0.0
      %4710 = vadd.xlane.f32.xlu0 %v4709
      %v4711 = vpop.xlane.xlu0 %4710
      %v4712 = vsel %vm667, %v4680, 0.0
      %4713 = vadd.xlane.f32.xlu0 %v4712
      %v4714 = vpop.xlane.xlu0 %4713
      %v4715 = vsel %vm667, %v4681, 0.0
      %4716 = vadd.xlane.f32.xlu0 %v4715
      %v4717 = vpop.xlane.xlu0 %4716
      %v4718 = vsel %vm667, %v4682, 0.0
      %4719 = vadd.xlane.f32.xlu0 %v4718
      %v4720 = vpop.xlane.xlu0 %4719
      %v4721 = vsel %vm667, %v4683, 0.0
      %4722 = vadd.xlane.f32.xlu0 %v4721
      %v4723 = vpop.xlane.xlu0 %4722
      %v4724 = vsel %vm667, %v4684, 0.0
      %4725 = vadd.xlane.f32.xlu0 %v4724
      %v4726 = vpop.xlane.xlu0 %4725
      %v4727 = vsel %vm667, %v4685, 0.0
      %4728 = vadd.xlane.f32.xlu0 %v4727
      %v4729 = vpop.xlane.xlu0 %4728
      %v4730 = vsel %vm667, %v4686, 0.0
      %4731 = vadd.xlane.f32.xlu0 %v4730
      %v4732 = vpop.xlane.xlu0 %4731
      %v4733 = vsel %vm667, %v4687, 0.0
      %4734 = vadd.xlane.f32.xlu0 %v4733
      %v4735 = vpop.xlane.xlu0 %4734
      %vm4736 = vcmask 7168
      %v4737 = vsel %vm4736, %v1410, %v1714
      %v4738 = vsel %vm4736, %v1413, %v1717
      %v4739 = vsel %vm4736, %v1416, %v1720
      %v4740 = vsel %vm4736, %v1419, %v1723
      %v4741 = vsel %vm4736, %v1422, %v1726
      %v4742 = vsel %vm4736, %v1425, %v1729
      %v4743 = vsel %vm4736, %v1428, %v1732
      %v4744 = vsel %vm4736, %v1431, %v1735
      %v4745 = vsel %vm4736, %v1434, %v1738
      %v4746 = vsel %vm4736, %v1437, %v1741
      %v4747 = vsel %vm4736, %v1440, %v1744
      %v4748 = vsel %vm4736, %v1443, %v1747
      %v4749 = vsel %vm4736, %v1446, %v1750
      %v4750 = vsel %vm4736, %v1449, %v1753
      %v4751 = vsel %vm4736, %v1452, %v1756
      %v4752 = vsel %vm4736, %v1455, %v1759
      %vm4753 = vcmask 15360
      %v4754 = vsel %vm4753, %v4737, %v2402
      %v4755 = vsel %vm4753, %v4738, %v2405
      %v4756 = vsel %vm4753, %v4739, %v2408
      %v4757 = vsel %vm4753, %v4740, %v2411
      %v4758 = vsel %vm4753, %v4741, %v2414
      %v4759 = vsel %vm4753, %v4742, %v2417
      %v4760 = vsel %vm4753, %v4743, %v2420
      %v4761 = vsel %vm4753, %v4744, %v2423
      %v4762 = vsel %vm4753, %v4745, %v2426
      %v4763 = vsel %vm4753, %v4746, %v2429
      %v4764 = vsel %vm4753, %v4747, %v2432
      %v4765 = vsel %vm4753, %v4748, %v2435
      %v4766 = vsel %vm4753, %v4749, %v2438
      %v4767 = vsel %vm4753, %v4750, %v2441
      %v4768 = vsel %vm4753, %v4751, %v2444
      %v4769 = vsel %vm4753, %v4752, %v2447
      %vm4770 = vcmask 23552
      %v4771 = vsel %vm4770, %v4754, %v2706
      %v4772 = vsel %vm4770, %v4755, %v2709
      %v4773 = vsel %vm4770, %v4756, %v2712
      %v4774 = vsel %vm4770, %v4757, %v2715
      %v4775 = vsel %vm4770, %v4758, %v2718
      %v4776 = vsel %vm4770, %v4759, %v2721
      %v4777 = vsel %vm4770, %v4760, %v2724
      %v4778 = vsel %vm4770, %v4761, %v2727
      %v4779 = vsel %vm4770, %v4762, %v2730
      %v4780 = vsel %vm4770, %v4763, %v2733
      %v4781 = vsel %vm4770, %v4764, %v2736
      %v4782 = vsel %vm4770, %v4765, %v2739
      %v4783 = vsel %vm4770, %v4766, %v2742
      %v4784 = vsel %vm4770, %v4767, %v2745
      %v4785 = vsel %vm4770, %v4768, %v2748
      %v4786 = vsel %vm4770, %v4769, %v2751
      %vm4787 = vcmask 31744
      %v4788 = vsel %vm4787, %v4771, %v3394
      %v4789 = vsel %vm4787, %v4772, %v3397
      %v4790 = vsel %vm4787, %v4773, %v3400
      %v4791 = vsel %vm4787, %v4774, %v3403
      %v4792 = vsel %vm4787, %v4775, %v3406
      %v4793 = vsel %vm4787, %v4776, %v3409
      %v4794 = vsel %vm4787, %v4777, %v3412
      %v4795 = vsel %vm4787, %v4778, %v3415
      %v4796 = vsel %vm4787, %v4779, %v3418
      %v4797 = vsel %vm4787, %v4780, %v3421
      %v4798 = vsel %vm4787, %v4781, %v3424
      %v4799 = vsel %vm4787, %v4782, %v3427
      %v4800 = vsel %vm4787, %v4783, %v3430
      %v4801 = vsel %vm4787, %v4784, %v3433
      %v4802 = vsel %vm4787, %v4785, %v3436
      %v4803 = vsel %vm4787, %v4786, %v3439
      %vm4804 = vcmask 39936
      %v4805 = vsel %vm4804, %v4788, %v3698
      %v4806 = vsel %vm4804, %v4789, %v3701
      %v4807 = vsel %vm4804, %v4790, %v3704
      %v4808 = vsel %vm4804, %v4791, %v3707
      %v4809 = vsel %vm4804, %v4792, %v3710
      %v4810 = vsel %vm4804, %v4793, %v3713
      %v4811 = vsel %vm4804, %v4794, %v3716
      %v4812 = vsel %vm4804, %v4795, %v3719
      %v4813 = vsel %vm4804, %v4796, %v3722
      %v4814 = vsel %vm4804, %v4797, %v3725
      %v4815 = vsel %vm4804, %v4798, %v3728
      %v4816 = vsel %vm4804, %v4799, %v3731
      %v4817 = vsel %vm4804, %v4800, %v3734
      %v4818 = vsel %vm4804, %v4801, %v3737
      %v4819 = vsel %vm4804, %v4802, %v3740
      %v4820 = vsel %vm4804, %v4803, %v3743
      %vm4821 = vcmask 48128
      %v4822 = vsel %vm4821, %v4805, %v4386
      %v4823 = vsel %vm4821, %v4806, %v4389
      %v4824 = vsel %vm4821, %v4807, %v4392
      %v4825 = vsel %vm4821, %v4808, %v4395
      %v4826 = vsel %vm4821, %v4809, %v4398
      %v4827 = vsel %vm4821, %v4810, %v4401
      %v4828 = vsel %vm4821, %v4811, %v4404
      %v4829 = vsel %vm4821, %v4812, %v4407
      %v4830 = vsel %vm4821, %v4813, %v4410
      %v4831 = vsel %vm4821, %v4814, %v4413
      %v4832 = vsel %vm4821, %v4815, %v4416
      %v4833 = vsel %vm4821, %v4816, %v4419
      %v4834 = vsel %vm4821, %v4817, %v4422
      %v4835 = vsel %vm4821, %v4818, %v4425
      %v4836 = vsel %vm4821, %v4819, %v4428
      %v4837 = vsel %vm4821, %v4820, %v4431
      %vm4838 = vcmask 56320
      %v4839 = vsel %vm4838, %v4822, %v4690
      %v4840 = vsel %vm4838, %v4823, %v4693
      %v4841 = vsel %vm4838, %v4824, %v4696
      %v4842 = vsel %vm4838, %v4825, %v4699
      %v4843 = vsel %vm4838, %v4826, %v4702
      %v4844 = vsel %vm4838, %v4827, %v4705
      %v4845 = vsel %vm4838, %v4828, %v4708
      %v4846 = vsel %vm4838, %v4829, %v4711
      %v4847 = vsel %vm4838, %v4830, %v4714
      %v4848 = vsel %vm4838, %v4831, %v4717
      %v4849 = vsel %vm4838, %v4832, %v4720
      %v4850 = vsel %vm4838, %v4833, %v4723
      %v4851 = vsel %vm4838, %v4834, %v4726
      %v4852 = vsel %vm4838, %v4835, %v4729
      %v4853 = vsel %vm4838, %v4836, %v4732
      %v4854 = vsel %vm4838, %v4837, %v4735
      %vm4855 = vcmask 64512
      %v4856 = vsel %vm4855, %v4839, -inf
      %4857 = vmax.xlane.f32.xlu0 %v4856
      %v4858 = vpop.xlane.xlu0 %4857
      %v4859 = vsel %vm4855, %v4840, -inf
      %4860 = vmax.xlane.f32.xlu0 %v4859
      %v4861 = vpop.xlane.xlu0 %4860
      %v4862 = vsel %vm4855, %v4841, -inf
      %4863 = vmax.xlane.f32.xlu0 %v4862
      %v4864 = vpop.xlane.xlu0 %4863
      %v4865 = vsel %vm4855, %v4842, -inf
      %4866 = vmax.xlane.f32.xlu0 %v4865
      %v4867 = vpop.xlane.xlu0 %4866
      %v4868 = vsel %vm4855, %v4843, -inf
      %4869 = vmax.xlane.f32.xlu0 %v4868
      %v4870 = vpop.xlane.xlu0 %4869
      %v4871 = vsel %vm4855, %v4844, -inf
      %4872 = vmax.xlane.f32.xlu0 %v4871
      %v4873 = vpop.xlane.xlu0 %4872
      %v4874 = vsel %vm4855, %v4845, -inf
      %4875 = vmax.xlane.f32.xlu0 %v4874
      %v4876 = vpop.xlane.xlu0 %4875
      %v4877 = vsel %vm4855, %v4846, -inf
      %4878 = vmax.xlane.f32.xlu0 %v4877
      %v4879 = vpop.xlane.xlu0 %4878
      %v4880 = vsel %vm4855, %v4847, -inf
      %4881 = vmax.xlane.f32.xlu0 %v4880
      %v4882 = vpop.xlane.xlu0 %4881
      %v4883 = vsel %vm4855, %v4848, -inf
      %4884 = vmax.xlane.f32.xlu0 %v4883
      %v4885 = vpop.xlane.xlu0 %4884
      %v4886 = vsel %vm4855, %v4849, -inf
      %4887 = vmax.xlane.f32.xlu0 %v4886
      %v4888 = vpop.xlane.xlu0 %4887
      %v4889 = vsel %vm4855, %v4850, -inf
      %4890 = vmax.xlane.f32.xlu0 %v4889
      %v4891 = vpop.xlane.xlu0 %4890
      %v4892 = vsel %vm4855, %v4851, -inf
      %4893 = vmax.xlane.f32.xlu0 %v4892
      %v4894 = vpop.xlane.xlu0 %4893
      %v4895 = vsel %vm4855, %v4852, -inf
      %4896 = vmax.xlane.f32.xlu0 %v4895
      %v4897 = vpop.xlane.xlu0 %4896
      %v4898 = vsel %vm4855, %v4853, -inf
      %4899 = vmax.xlane.f32.xlu0 %v4898
      %v4900 = vpop.xlane.xlu0 %4899
      %v4901 = vsel %vm4855, %v4854, -inf
      %4902 = vmax.xlane.f32.xlu0 %v4901
      %v4903 = vpop.xlane.xlu0 %4902
      %v4904 = vsub.f32 %v4839, %v4858
      %v4905 = vsub.f32 %v4840, %v4861
      %v4906 = vsub.f32 %v4841, %v4864
      %v4907 = vsub.f32 %v4842, %v4867
      %v4908 = vsub.f32 %v4843, %v4870
      %v4909 = vsub.f32 %v4844, %v4873
      %v4910 = vsub.f32 %v4845, %v4876
      %v4911 = vsub.f32 %v4846, %v4879
      %v4912 = vsub.f32 %v4847, %v4882
      %v4913 = vsub.f32 %v4848, %v4885
      %v4914 = vsub.f32 %v4849, %v4888
      %v4915 = vsub.f32 %v4850, %v4891
      %v4916 = vsub.f32 %v4851, %v4894
      %v4917 = vsub.f32 %v4852, %v4897
      %v4918 = vsub.f32 %v4853, %v4900
      %v4919 = vsub.f32 %v4854, %v4903
      %v4920 = vmul.f32 %v4904, 1.442695
      %v4921 = vpow.pop %v4920
      %v4922 = vmul.f32 %v4905, 1.442695
      %v4923 = vpow.pop %v4922
      %v4924 = vmul.f32 %v4906, 1.442695
      %v4925 = vpow.pop %v4924
      %v4926 = vmul.f32 %v4907, 1.442695
      %v4927 = vpow.pop %v4926
      %v4928 = vmul.f32 %v4908, 1.442695
      %v4929 = vpow.pop %v4928
      %v4930 = vmul.f32 %v4909, 1.442695
      %v4931 = vpow.pop %v4930
      %v4932 = vmul.f32 %v4910, 1.442695
      %v4933 = vpow.pop %v4932
      %v4934 = vmul.f32 %v4911, 1.442695
      %v4935 = vpow.pop %v4934
      %v4936 = vmul.f32 %v4912, 1.442695
      %v4937 = vpow.pop %v4936
      %v4938 = vmul.f32 %v4913, 1.442695
      %v4939 = vpow.pop %v4938
      %v4940 = vmul.f32 %v4914, 1.442695
      %v4941 = vpow.pop %v4940
      %v4942 = vmul.f32 %v4915, 1.442695
      %v4943 = vpow.pop %v4942
      %v4944 = vmul.f32 %v4916, 1.442695
      %v4945 = vpow.pop %v4944
      %v4946 = vmul.f32 %v4917, 1.442695
      %v4947 = vpow.pop %v4946
      %v4948 = vmul.f32 %v4918, 1.442695
      %v4949 = vpow.pop %v4948
      %v4950 = vmul.f32 %v4919, 1.442695
      %v4951 = vpow.pop %v4950
      %v4952 = vsel %vm4855, %v4921, 0.0
      %4953 = vadd.xlane.f32.xlu0 %v4952
      %v4954 = vpop.xlane.xlu0 %4953
      %v4955 = vsel %vm4855, %v4923, 0.0
      %4956 = vadd.xlane.f32.xlu0 %v4955
      %v4957 = vpop.xlane.xlu0 %4956
      %v4958 = vsel %vm4855, %v4925, 0.0
      %4959 = vadd.xlane.f32.xlu0 %v4958
      %v4960 = vpop.xlane.xlu0 %4959
      %v4961 = vsel %vm4855, %v4927, 0.0
      %4962 = vadd.xlane.f32.xlu0 %v4961
      %v4963 = vpop.xlane.xlu0 %4962
      %v4964 = vsel %vm4855, %v4929, 0.0
      %4965 = vadd.xlane.f32.xlu0 %v4964
      %v4966 = vpop.xlane.xlu0 %4965
      %v4967 = vsel %vm4855, %v4931, 0.0
      %4968 = vadd.xlane.f32.xlu0 %v4967
      %v4969 = vpop.xlane.xlu0 %4968
      %v4970 = vsel %vm4855, %v4933, 0.0
      %4971 = vadd.xlane.f32.xlu0 %v4970
      %v4972 = vpop.xlane.xlu0 %4971
      %v4973 = vsel %vm4855, %v4935, 0.0
      %4974 = vadd.xlane.f32.xlu0 %v4973
      %v4975 = vpop.xlane.xlu0 %4974
      %v4976 = vsel %vm4855, %v4937, 0.0
      %4977 = vadd.xlane.f32.xlu0 %v4976
      %v4978 = vpop.xlane.xlu0 %4977
      %v4979 = vsel %vm4855, %v4939, 0.0
      %4980 = vadd.xlane.f32.xlu0 %v4979
      %v4981 = vpop.xlane.xlu0 %4980
      %v4982 = vsel %vm4855, %v4941, 0.0
      %4983 = vadd.xlane.f32.xlu0 %v4982
      %v4984 = vpop.xlane.xlu0 %4983
      %v4985 = vsel %vm4855, %v4943, 0.0
      %4986 = vadd.xlane.f32.xlu0 %v4985
      %v4987 = vpop.xlane.xlu0 %4986
      %v4988 = vsel %vm4855, %v4945, 0.0
      %4989 = vadd.xlane.f32.xlu0 %v4988
      %v4990 = vpop.xlane.xlu0 %4989
      %v4991 = vsel %vm4855, %v4947, 0.0
      %4992 = vadd.xlane.f32.xlu0 %v4991
      %v4993 = vpop.xlane.xlu0 %4992
      %v4994 = vsel %vm4855, %v4949, 0.0
      %4995 = vadd.xlane.f32.xlu0 %v4994
      %v4996 = vpop.xlane.xlu0 %4995
      %v4997 = vsel %vm4855, %v4951, 0.0
      %4998 = vadd.xlane.f32.xlu0 %v4997
      %v4999 = vpop.xlane.xlu0 %4998
      %v5000 = vrcp.pop %v4954
      %v5001 = vmul.f32 %v4954, %v5000
      %v5002 = vsub.f32 1.0, %v5001
      %v5003 = vmul.f32 %v5000, %v5002
      %v5004 = vadd.f32 %v5000, %v5003
      %vm5005 = vweird.f32 %v4954
      %vm5006 = vweird.f32 %v5000
      %vm5007 = vmor %vm5005, %vm5006
      %v5008 = vsel %vm5007, %v5000, %v5004
      %v5009 = vand.u32 2147483647, %v4954
      %vm5010 = vcmp.eq.f32.partialorder %v5009, 8.507059e+37
      %v5011 = vand.u32 %v4954, 2147483648
      %v5012 = vor.u32 1.1754944e-38, %v5011
      %v5013 = vsel %vm5010, %v5012, %v5008
      %v5014 = vmul.f32 %v4921, %v5013
      %v5015 = vrcp.pop %v4957
      %v5016 = vmul.f32 %v4957, %v5015
      %v5017 = vsub.f32 1.0, %v5016
      %v5018 = vmul.f32 %v5015, %v5017
      %v5019 = vadd.f32 %v5015, %v5018
      %vm5020 = vweird.f32 %v4957
      %vm5021 = vweird.f32 %v5015
      %vm5022 = vmor %vm5020, %vm5021
      %v5023 = vsel %vm5022, %v5015, %v5019
      %v5024 = vand.u32 2147483647, %v4957
      %vm5025 = vcmp.eq.f32.partialorder %v5024, 8.507059e+37
      %v5026 = vand.u32 %v4957, 2147483648
      %v5027 = vor.u32 1.1754944e-38, %v5026
      %v5028 = vsel %vm5025, %v5027, %v5023
      %v5029 = vmul.f32 %v4923, %v5028
      %v5030 = vrcp.pop %v4960
      %v5031 = vmul.f32 %v4960, %v5030
      %v5032 = vsub.f32 1.0, %v5031
      %v5033 = vmul.f32 %v5030, %v5032
      %v5034 = vadd.f32 %v5030, %v5033
      %vm5035 = vweird.f32 %v4960
      %vm5036 = vweird.f32 %v5030
      %vm5037 = vmor %vm5035, %vm5036
      %v5038 = vsel %vm5037, %v5030, %v5034
      %v5039 = vand.u32 2147483647, %v4960
      %vm5040 = vcmp.eq.f32.partialorder %v5039, 8.507059e+37
      %v5041 = vand.u32 %v4960, 2147483648
      %v5042 = vor.u32 1.1754944e-38, %v5041
      %v5043 = vsel %vm5040, %v5042, %v5038
      %v5044 = vmul.f32 %v4925, %v5043
      %v5045 = vrcp.pop %v4963
      %v5046 = vmul.f32 %v4963, %v5045
      %v5047 = vsub.f32 1.0, %v5046
      %v5048 = vmul.f32 %v5045, %v5047
      %v5049 = vadd.f32 %v5045, %v5048
      %vm5050 = vweird.f32 %v4963
      %vm5051 = vweird.f32 %v5045
      %vm5052 = vmor %vm5050, %vm5051
      %v5053 = vsel %vm5052, %v5045, %v5049
      %v5054 = vand.u32 2147483647, %v4963
      %vm5055 = vcmp.eq.f32.partialorder %v5054, 8.507059e+37
      %v5056 = vand.u32 %v4963, 2147483648
      %v5057 = vor.u32 1.1754944e-38, %v5056
      %v5058 = vsel %vm5055, %v5057, %v5053
      %v5059 = vmul.f32 %v4927, %v5058
      %v5060 = vrcp.pop %v4966
      %v5061 = vmul.f32 %v4966, %v5060
      %v5062 = vsub.f32 1.0, %v5061
      %v5063 = vmul.f32 %v5060, %v5062
      %v5064 = vadd.f32 %v5060, %v5063
      %vm5065 = vweird.f32 %v4966
      %vm5066 = vweird.f32 %v5060
      %vm5067 = vmor %vm5065, %vm5066
      %v5068 = vsel %vm5067, %v5060, %v5064
      %v5069 = vand.u32 2147483647, %v4966
      %vm5070 = vcmp.eq.f32.partialorder %v5069, 8.507059e+37
      %v5071 = vand.u32 %v4966, 2147483648
      %v5072 = vor.u32 1.1754944e-38, %v5071
      %v5073 = vsel %vm5070, %v5072, %v5068
      %v5074 = vmul.f32 %v4929, %v5073
      %v5075 = vrcp.pop %v4969
      %v5076 = vmul.f32 %v4969, %v5075
      %v5077 = vsub.f32 1.0, %v5076
      %v5078 = vmul.f32 %v5075, %v5077
      %v5079 = vadd.f32 %v5075, %v5078
      %vm5080 = vweird.f32 %v4969
      %vm5081 = vweird.f32 %v5075
      %vm5082 = vmor %vm5080, %vm5081
      %v5083 = vsel %vm5082, %v5075, %v5079
      %v5084 = vand.u32 2147483647, %v4969
      %vm5085 = vcmp.eq.f32.partialorder %v5084, 8.507059e+37
      %v5086 = vand.u32 %v4969, 2147483648
      %v5087 = vor.u32 1.1754944e-38, %v5086
      %v5088 = vsel %vm5085, %v5087, %v5083
      %v5089 = vmul.f32 %v4931, %v5088
      %v5090 = vrcp.pop %v4972
      %v5091 = vmul.f32 %v4972, %v5090
      %v5092 = vsub.f32 1.0, %v5091
      %v5093 = vmul.f32 %v5090, %v5092
      %v5094 = vadd.f32 %v5090, %v5093
      %vm5095 = vweird.f32 %v4972
      %vm5096 = vweird.f32 %v5090
      %vm5097 = vmor %vm5095, %vm5096
      %v5098 = vsel %vm5097, %v5090, %v5094
      %v5099 = vand.u32 2147483647, %v4972
      %vm5100 = vcmp.eq.f32.partialorder %v5099, 8.507059e+37
      %v5101 = vand.u32 %v4972, 2147483648
      %v5102 = vor.u32 1.1754944e-38, %v5101
      %v5103 = vsel %vm5100, %v5102, %v5098
      %v5104 = vmul.f32 %v4933, %v5103
      %v5105 = vrcp.pop %v4975
      %v5106 = vmul.f32 %v4975, %v5105
      %v5107 = vsub.f32 1.0, %v5106
      %v5108 = vmul.f32 %v5105, %v5107
      %v5109 = vadd.f32 %v5105, %v5108
      %vm5110 = vweird.f32 %v4975
      %vm5111 = vweird.f32 %v5105
      %vm5112 = vmor %vm5110, %vm5111
      %v5113 = vsel %vm5112, %v5105, %v5109
      %v5114 = vand.u32 2147483647, %v4975
      %vm5115 = vcmp.eq.f32.partialorder %v5114, 8.507059e+37
      %v5116 = vand.u32 %v4975, 2147483648
      %v5117 = vor.u32 1.1754944e-38, %v5116
      %v5118 = vsel %vm5115, %v5117, %v5113
      %v5119 = vmul.f32 %v4935, %v5118
      %v5120 = vrcp.pop %v4978
      %v5121 = vmul.f32 %v4978, %v5120
      %v5122 = vsub.f32 1.0, %v5121
      %v5123 = vmul.f32 %v5120, %v5122
      %v5124 = vadd.f32 %v5120, %v5123
      %vm5125 = vweird.f32 %v4978
      %vm5126 = vweird.f32 %v5120
      %vm5127 = vmor %vm5125, %vm5126
      %v5128 = vsel %vm5127, %v5120, %v5124
      %v5129 = vand.u32 2147483647, %v4978
      %vm5130 = vcmp.eq.f32.partialorder %v5129, 8.507059e+37
      %v5131 = vand.u32 %v4978, 2147483648
      %v5132 = vor.u32 1.1754944e-38, %v5131
      %v5133 = vsel %vm5130, %v5132, %v5128
      %v5134 = vmul.f32 %v4937, %v5133
      %v5135 = vrcp.pop %v4981
      %v5136 = vmul.f32 %v4981, %v5135
      %v5137 = vsub.f32 1.0, %v5136
      %v5138 = vmul.f32 %v5135, %v5137
      %v5139 = vadd.f32 %v5135, %v5138
      %vm5140 = vweird.f32 %v4981
      %vm5141 = vweird.f32 %v5135
      %vm5142 = vmor %vm5140, %vm5141
      %v5143 = vsel %vm5142, %v5135, %v5139
      %v5144 = vand.u32 2147483647, %v4981
      %vm5145 = vcmp.eq.f32.partialorder %v5144, 8.507059e+37
      %v5146 = vand.u32 %v4981, 2147483648
      %v5147 = vor.u32 1.1754944e-38, %v5146
      %v5148 = vsel %vm5145, %v5147, %v5143
      %v5149 = vmul.f32 %v4939, %v5148
      %v5150 = vrcp.pop %v4984
      %v5151 = vmul.f32 %v4984, %v5150
      %v5152 = vsub.f32 1.0, %v5151
      %v5153 = vmul.f32 %v5150, %v5152
      %v5154 = vadd.f32 %v5150, %v5153
      %vm5155 = vweird.f32 %v4984
      %vm5156 = vweird.f32 %v5150
      %vm5157 = vmor %vm5155, %vm5156
      %v5158 = vsel %vm5157, %v5150, %v5154
      %v5159 = vand.u32 2147483647, %v4984
      %vm5160 = vcmp.eq.f32.partialorder %v5159, 8.507059e+37
      %v5161 = vand.u32 %v4984, 2147483648
      %v5162 = vor.u32 1.1754944e-38, %v5161
      %v5163 = vsel %vm5160, %v5162, %v5158
      %v5164 = vmul.f32 %v4941, %v5163
      %v5165 = vrcp.pop %v4987
      %v5166 = vmul.f32 %v4987, %v5165
      %v5167 = vsub.f32 1.0, %v5166
      %v5168 = vmul.f32 %v5165, %v5167
      %v5169 = vadd.f32 %v5165, %v5168
      %vm5170 = vweird.f32 %v4987
      %vm5171 = vweird.f32 %v5165
      %vm5172 = vmor %vm5170, %vm5171
      %v5173 = vsel %vm5172, %v5165, %v5169
      %v5174 = vand.u32 2147483647, %v4987
      %vm5175 = vcmp.eq.f32.partialorder %v5174, 8.507059e+37
      %v5176 = vand.u32 %v4987, 2147483648
      %v5177 = vor.u32 1.1754944e-38, %v5176
      %v5178 = vsel %vm5175, %v5177, %v5173
      %v5179 = vmul.f32 %v4943, %v5178
      %v5180 = vrcp.pop %v4990
      %v5181 = vmul.f32 %v4990, %v5180
      %v5182 = vsub.f32 1.0, %v5181
      %v5183 = vmul.f32 %v5180, %v5182
      %v5184 = vadd.f32 %v5180, %v5183
      %vm5185 = vweird.f32 %v4990
      %vm5186 = vweird.f32 %v5180
      %vm5187 = vmor %vm5185, %vm5186
      %v5188 = vsel %vm5187, %v5180, %v5184
      %v5189 = vand.u32 2147483647, %v4990
      %vm5190 = vcmp.eq.f32.partialorder %v5189, 8.507059e+37
      %v5191 = vand.u32 %v4990, 2147483648
      %v5192 = vor.u32 1.1754944e-38, %v5191
      %v5193 = vsel %vm5190, %v5192, %v5188
      %v5194 = vmul.f32 %v4945, %v5193
      %v5195 = vrcp.pop %v4993
      %v5196 = vmul.f32 %v4993, %v5195
      %v5197 = vsub.f32 1.0, %v5196
      %v5198 = vmul.f32 %v5195, %v5197
      %v5199 = vadd.f32 %v5195, %v5198
      %vm5200 = vweird.f32 %v4993
      %vm5201 = vweird.f32 %v5195
      %vm5202 = vmor %vm5200, %vm5201
      %v5203 = vsel %vm5202, %v5195, %v5199
      %v5204 = vand.u32 2147483647, %v4993
      %vm5205 = vcmp.eq.f32.partialorder %v5204, 8.507059e+37
      %v5206 = vand.u32 %v4993, 2147483648
      %v5207 = vor.u32 1.1754944e-38, %v5206
      %v5208 = vsel %vm5205, %v5207, %v5203
      %v5209 = vmul.f32 %v4947, %v5208
      %v5210 = vrcp.pop %v4996
      %v5211 = vmul.f32 %v4996, %v5210
      %v5212 = vsub.f32 1.0, %v5211
      %v5213 = vmul.f32 %v5210, %v5212
      %v5214 = vadd.f32 %v5210, %v5213
      %vm5215 = vweird.f32 %v4996
      %vm5216 = vweird.f32 %v5210
      %vm5217 = vmor %vm5215, %vm5216
      %v5218 = vsel %vm5217, %v5210, %v5214
      %v5219 = vand.u32 2147483647, %v4996
      %vm5220 = vcmp.eq.f32.partialorder %v5219, 8.507059e+37
      %v5221 = vand.u32 %v4996, 2147483648
      %v5222 = vor.u32 1.1754944e-38, %v5221
      %v5223 = vsel %vm5220, %v5222, %v5218
      %v5224 = vmul.f32 %v4949, %v5223
      %v5225 = vrcp.pop %v4999
      %v5226 = vmul.f32 %v4999, %v5225
      %v5227 = vsub.f32 1.0, %v5226
      %v5228 = vmul.f32 %v5225, %v5227
      %v5229 = vadd.f32 %v5225, %v5228
      %vm5230 = vweird.f32 %v4999
      %vm5231 = vweird.f32 %v5225
      %vm5232 = vmor %vm5230, %vm5231
      %v5233 = vsel %vm5232, %v5225, %v5229
      %v5234 = vand.u32 2147483647, %v4999
      %vm5235 = vcmp.eq.f32.partialorder %v5234, 8.507059e+37
      %v5236 = vand.u32 %v4999, 2147483648
      %v5237 = vor.u32 1.1754944e-38, %v5236
      %v5238 = vsel %vm5235, %v5237, %v5233
      %v5239 = vmul.f32 %v4951, %v5238
      %5241 = vset.pattern.permute.xlu0 0
      %5242 = vperm.xlu0 %5241, %v5014
      %v5243 = vpop.permute.xlu0 %5242
      %5246 = vset.pattern.permute.xlu0 0
      %5247 = vperm.xlu0 %5246, %v5029
      %v5248 = vpop.permute.xlu0 %5247
      %5251 = vset.pattern.permute.xlu0 0
      %5252 = vperm.xlu0 %5251, %v5044
      %v5253 = vpop.permute.xlu0 %5252
      %5256 = vset.pattern.permute.xlu0 0
      %5257 = vperm.xlu0 %5256, %v5059
      %v5258 = vpop.permute.xlu0 %5257
      %5261 = vset.pattern.permute.xlu0 0
      %5262 = vperm.xlu0 %5261, %v5074
      %v5263 = vpop.permute.xlu0 %5262
      %5266 = vset.pattern.permute.xlu0 0
      %5267 = vperm.xlu0 %5266, %v5089
      %v5268 = vpop.permute.xlu0 %5267
      %5271 = vset.pattern.permute.xlu0 0
      %5272 = vperm.xlu0 %5271, %v5104
      %v5273 = vpop.permute.xlu0 %5272
      %5276 = vset.pattern.permute.xlu0 0
      %5277 = vperm.xlu0 %5276, %v5119
      %v5278 = vpop.permute.xlu0 %5277
      %5281 = vset.pattern.permute.xlu0 0
      %5282 = vperm.xlu0 %5281, %v5134
      %v5283 = vpop.permute.xlu0 %5282
      %5286 = vset.pattern.permute.xlu0 0
      %5287 = vperm.xlu0 %5286, %v5149
      %v5288 = vpop.permute.xlu0 %5287
      %5291 = vset.pattern.permute.xlu0 0
      %5292 = vperm.xlu0 %5291, %v5164
      %v5293 = vpop.permute.xlu0 %5292
      %5296 = vset.pattern.permute.xlu0 0
      %5297 = vperm.xlu0 %5296, %v5179
      %v5298 = vpop.permute.xlu0 %5297
      %5301 = vset.pattern.permute.xlu0 0
      %5302 = vperm.xlu0 %5301, %v5194
      %v5303 = vpop.permute.xlu0 %5302
      %5306 = vset.pattern.permute.xlu0 0
      %5307 = vperm.xlu0 %5306, %v5209
      %v5308 = vpop.permute.xlu0 %5307
      %5311 = vset.pattern.permute.xlu0 0
      %5312 = vperm.xlu0 %5311, %v5224
      %v5313 = vpop.permute.xlu0 %5312
      %5316 = vset.pattern.permute.xlu0 0
      %5317 = vperm.xlu0 %5316, %v5239
      %v5318 = vpop.permute.xlu0 %5317
      %v5320 = vmul.f32 %v5243, %v1165
      %v5321 = vmul.f32 %v5248, %v1179
      %v5322 = vmul.f32 %v5253, %v1193
      %v5323 = vmul.f32 %v5258, %v1207
      %v5324 = vmul.f32 %v5263, %v1221
      %v5325 = vmul.f32 %v5268, %v1235
      %v5326 = vmul.f32 %v5273, %v1249
      %v5327 = vmul.f32 %v5278, %v1263
      %v5328 = vmul.f32 %v5283, %v1277
      %v5329 = vmul.f32 %v5288, %v1291
      %v5330 = vmul.f32 %v5293, %v1305
      %v5331 = vmul.f32 %v5298, %v1319
      %v5332 = vmul.f32 %v5303, %v1333
      %v5333 = vmul.f32 %v5308, %v1347
      %v5334 = vmul.f32 %v5313, %v1361
      %v5335 = vmul.f32 %v5318, %v1375
      %v5336 = vadd.f32 %v5320, 0.0
      %v5337 = vadd.f32 %v5321, 0.0
      %v5338 = vadd.f32 %v5322, 0.0
      %v5339 = vadd.f32 %v5323, 0.0
      %v5340 = vadd.f32 %v5324, 0.0
      %v5341 = vadd.f32 %v5325, 0.0
      %v5342 = vadd.f32 %v5326, 0.0
      %v5343 = vadd.f32 %v5327, 0.0
      %v5344 = vadd.f32 %v5328, 0.0
      %v5345 = vadd.f32 %v5329, 0.0
      %v5346 = vadd.f32 %v5330, 0.0
      %v5347 = vadd.f32 %v5331, 0.0
      %v5348 = vadd.f32 %v5332, 0.0
      %v5349 = vadd.f32 %v5333, 0.0
      %v5350 = vadd.f32 %v5334, 0.0
      %v5351 = vadd.f32 %v5335, 0.0
      %5352 = vset.pattern.permute.xlu0 1
      %5353 = vperm.xlu0 %5352, %v5014
      %v5354 = vpop.permute.xlu0 %5353
      %5356 = vset.pattern.permute.xlu0 1
      %5357 = vperm.xlu0 %5356, %v5029
      %v5358 = vpop.permute.xlu0 %5357
      %5360 = vset.pattern.permute.xlu0 1
      %5361 = vperm.xlu0 %5360, %v5044
      %v5362 = vpop.permute.xlu0 %5361
      %5364 = vset.pattern.permute.xlu0 1
      %5365 = vperm.xlu0 %5364, %v5059
      %v5366 = vpop.permute.xlu0 %5365
      %5368 = vset.pattern.permute.xlu0 1
      %5369 = vperm.xlu0 %5368, %v5074
      %v5370 = vpop.permute.xlu0 %5369
      %5372 = vset.pattern.permute.xlu0 1
      %5373 = vperm.xlu0 %5372, %v5089
      %v5374 = vpop.permute.xlu0 %5373
      %5376 = vset.pattern.permute.xlu0 1
      %5377 = vperm.xlu0 %5376, %v5104
      %v5378 = vpop.permute.xlu0 %5377
      %5380 = vset.pattern.permute.xlu0 1
      %5381 = vperm.xlu0 %5380, %v5119
      %v5382 = vpop.permute.xlu0 %5381
      %5384 = vset.pattern.permute.xlu0 1
      %5385 = vperm.xlu0 %5384, %v5134
      %v5386 = vpop.permute.xlu0 %5385
      %5388 = vset.pattern.permute.xlu0 1
      %5389 = vperm.xlu0 %5388, %v5149
      %v5390 = vpop.permute.xlu0 %5389
      %5392 = vset.pattern.permute.xlu0 1
      %5393 = vperm.xlu0 %5392, %v5164
      %v5394 = vpop.permute.xlu0 %5393
      %5396 = vset.pattern.permute.xlu0 1
      %5397 = vperm.xlu0 %5396, %v5179
      %v5398 = vpop.permute.xlu0 %5397
      %5400 = vset.pattern.permute.xlu0 1
      %5401 = vperm.xlu0 %5400, %v5194
      %v5402 = vpop.permute.xlu0 %5401
      %5404 = vset.pattern.permute.xlu0 1
      %5405 = vperm.xlu0 %5404, %v5209
      %v5406 = vpop.permute.xlu0 %5405
      %5408 = vset.pattern.permute.xlu0 1
      %5409 = vperm.xlu0 %5408, %v5224
      %v5410 = vpop.permute.xlu0 %5409
      %5412 = vset.pattern.permute.xlu0 1
      %5413 = vperm.xlu0 %5412, %v5239
      %v5414 = vpop.permute.xlu0 %5413
      %v5416 = vmul.f32 %v5354, %v1469
      %v5417 = vmul.f32 %v5358, %v1483
      %v5418 = vmul.f32 %v5362, %v1497
      %v5419 = vmul.f32 %v5366, %v1511
      %v5420 = vmul.f32 %v5370, %v1525
      %v5421 = vmul.f32 %v5374, %v1539
      %v5422 = vmul.f32 %v5378, %v1553
      %v5423 = vmul.f32 %v5382, %v1567
      %v5424 = vmul.f32 %v5386, %v1581
      %v5425 = vmul.f32 %v5390, %v1595
      %v5426 = vmul.f32 %v5394, %v1609
      %v5427 = vmul.f32 %v5398, %v1623
      %v5428 = vmul.f32 %v5402, %v1637
      %v5429 = vmul.f32 %v5406, %v1651
      %v5430 = vmul.f32 %v5410, %v1665
      %v5431 = vmul.f32 %v5414, %v1679
      %v5432 = vadd.f32 %v5336, %v5416
      %v5433 = vadd.f32 %v5337, %v5417
      %v5434 = vadd.f32 %v5338, %v5418
      %v5435 = vadd.f32 %v5339, %v5419
      %v5436 = vadd.f32 %v5340, %v5420
      %v5437 = vadd.f32 %v5341, %v5421
      %v5438 = vadd.f32 %v5342, %v5422
      %v5439 = vadd.f32 %v5343, %v5423
      %v5440 = vadd.f32 %v5344, %v5424
      %v5441 = vadd.f32 %v5345, %v5425
      %v5442 = vadd.f32 %v5346, %v5426
      %v5443 = vadd.f32 %v5347, %v5427
      %v5444 = vadd.f32 %v5348, %v5428
      %v5445 = vadd.f32 %v5349, %v5429
      %v5446 = vadd.f32 %v5350, %v5430
      %v5447 = vadd.f32 %v5351, %v5431
      %5448 = vset.pattern.permute.xlu0 2
      %5449 = vperm.xlu0 %5448, %v5014
      %v5450 = vpop.permute.xlu0 %5449
      %5452 = vset.pattern.permute.xlu0 2
      %5453 = vperm.xlu0 %5452, %v5029
      %v5454 = vpop.permute.xlu0 %5453
      %5456 = vset.pattern.permute.xlu0 2
      %5457 = vperm.xlu0 %5456, %v5044
      %v5458 = vpop.permute.xlu0 %5457
      %5460 = vset.pattern.permute.xlu0 2
      %5461 = vperm.xlu0 %5460, %v5059
      %v5462 = vpop.permute.xlu0 %5461
      %5464 = vset.pattern.permute.xlu0 2
      %5465 = vperm.xlu0 %5464, %v5074
      %v5466 = vpop.permute.xlu0 %5465
      %5468 = vset.pattern.permute.xlu0 2
      %5469 = vperm.xlu0 %5468, %v5089
      %v5470 = vpop.permute.xlu0 %5469
      %5472 = vset.pattern.permute.xlu0 2
      %5473 = vperm.xlu0 %5472, %v5104
      %v5474 = vpop.permute.xlu0 %5473
      %5476 = vset.pattern.permute.xlu0 2
      %5477 = vperm.xlu0 %5476, %v5119
      %v5478 = vpop.permute.xlu0 %5477
      %5480 = vset.pattern.permute.xlu0 2
      %5481 = vperm.xlu0 %5480, %v5134
      %v5482 = vpop.permute.xlu0 %5481
      %5484 = vset.pattern.permute.xlu0 2
      %5485 = vperm.xlu0 %5484, %v5149
      %v5486 = vpop.permute.xlu0 %5485
      %5488 = vset.pattern.permute.xlu0 2
      %5489 = vperm.xlu0 %5488, %v5164
      %v5490 = vpop.permute.xlu0 %5489
      %5492 = vset.pattern.permute.xlu0 2
      %5493 = vperm.xlu0 %5492, %v5179
      %v5494 = vpop.permute.xlu0 %5493
      %5496 = vset.pattern.permute.xlu0 2
      %5497 = vperm.xlu0 %5496, %v5194
      %v5498 = vpop.permute.xlu0 %5497
      %5500 = vset.pattern.permute.xlu0 2
      %5501 = vperm.xlu0 %5500, %v5209
      %v5502 = vpop.permute.xlu0 %5501
      %5504 = vset.pattern.permute.xlu0 2
      %5505 = vperm.xlu0 %5504, %v5224
      %v5506 = vpop.permute.xlu0 %5505
      %5508 = vset.pattern.permute.xlu0 2
      %5509 = vperm.xlu0 %5508, %v5239
      %v5510 = vpop.permute.xlu0 %5509
      %v5512 = vmul.f32 %v5450, %v2157
      %v5513 = vmul.f32 %v5454, %v2171
      %v5514 = vmul.f32 %v5458, %v2185
      %v5515 = vmul.f32 %v5462, %v2199
      %v5516 = vmul.f32 %v5466, %v2213
      %v5517 = vmul.f32 %v5470, %v2227
      %v5518 = vmul.f32 %v5474, %v2241
      %v5519 = vmul.f32 %v5478, %v2255
      %v5520 = vmul.f32 %v5482, %v2269
      %v5521 = vmul.f32 %v5486, %v2283
      %v5522 = vmul.f32 %v5490, %v2297
      %v5523 = vmul.f32 %v5494, %v2311
      %v5524 = vmul.f32 %v5498, %v2325
      %v5525 = vmul.f32 %v5502, %v2339
      %v5526 = vmul.f32 %v5506, %v2353
      %v5527 = vmul.f32 %v5510, %v2367
      %v5528 = vadd.f32 %v5432, %v5512
      %v5529 = vadd.f32 %v5433, %v5513
      %v5530 = vadd.f32 %v5434, %v5514
      %v5531 = vadd.f32 %v5435, %v5515
      %v5532 = vadd.f32 %v5436, %v5516
      %v5533 = vadd.f32 %v5437, %v5517
      %v5534 = vadd.f32 %v5438, %v5518
      %v5535 = vadd.f32 %v5439, %v5519
      %v5536 = vadd.f32 %v5440, %v5520
      %v5537 = vadd.f32 %v5441, %v5521
      %v5538 = vadd.f32 %v5442, %v5522
      %v5539 = vadd.f32 %v5443, %v5523
      %v5540 = vadd.f32 %v5444, %v5524
      %v5541 = vadd.f32 %v5445, %v5525
      %v5542 = vadd.f32 %v5446, %v5526
      %v5543 = vadd.f32 %v5447, %v5527
      %5544 = vset.pattern.permute.xlu0 3
      %5545 = vperm.xlu0 %5544, %v5014
      %v5546 = vpop.permute.xlu0 %5545
      %5548 = vset.pattern.permute.xlu0 3
      %5549 = vperm.xlu0 %5548, %v5029
      %v5550 = vpop.permute.xlu0 %5549
      %5552 = vset.pattern.permute.xlu0 3
      %5553 = vperm.xlu0 %5552, %v5044
      %v5554 = vpop.permute.xlu0 %5553
      %5556 = vset.pattern.permute.xlu0 3
      %5557 = vperm.xlu0 %5556, %v5059
      %v5558 = vpop.permute.xlu0 %5557
      %5560 = vset.pattern.permute.xlu0 3
      %5561 = vperm.xlu0 %5560, %v5074
      %v5562 = vpop.permute.xlu0 %5561
      %5564 = vset.pattern.permute.xlu0 3
      %5565 = vperm.xlu0 %5564, %v5089
      %v5566 = vpop.permute.xlu0 %5565
      %5568 = vset.pattern.permute.xlu0 3
      %5569 = vperm.xlu0 %5568, %v5104
      %v5570 = vpop.permute.xlu0 %5569
      %5572 = vset.pattern.permute.xlu0 3
      %5573 = vperm.xlu0 %5572, %v5119
      %v5574 = vpop.permute.xlu0 %5573
      %5576 = vset.pattern.permute.xlu0 3
      %5577 = vperm.xlu0 %5576, %v5134
      %v5578 = vpop.permute.xlu0 %5577
      %5580 = vset.pattern.permute.xlu0 3
      %5581 = vperm.xlu0 %5580, %v5149
      %v5582 = vpop.permute.xlu0 %5581
      %5584 = vset.pattern.permute.xlu0 3
      %5585 = vperm.xlu0 %5584, %v5164
      %v5586 = vpop.permute.xlu0 %5585
      %5588 = vset.pattern.permute.xlu0 3
      %5589 = vperm.xlu0 %5588, %v5179
      %v5590 = vpop.permute.xlu0 %5589
      %5592 = vset.pattern.permute.xlu0 3
      %5593 = vperm.xlu0 %5592, %v5194
      %v5594 = vpop.permute.xlu0 %5593
      %5596 = vset.pattern.permute.xlu0 3
      %5597 = vperm.xlu0 %5596, %v5209
      %v5598 = vpop.permute.xlu0 %5597
      %5600 = vset.pattern.permute.xlu0 3
      %5601 = vperm.xlu0 %5600, %v5224
      %v5602 = vpop.permute.xlu0 %5601
      %5604 = vset.pattern.permute.xlu0 3
      %5605 = vperm.xlu0 %5604, %v5239
      %v5606 = vpop.permute.xlu0 %5605
      %v5608 = vmul.f32 %v5546, %v2461
      %v5609 = vmul.f32 %v5550, %v2475
      %v5610 = vmul.f32 %v5554, %v2489
      %v5611 = vmul.f32 %v5558, %v2503
      %v5612 = vmul.f32 %v5562, %v2517
      %v5613 = vmul.f32 %v5566, %v2531
      %v5614 = vmul.f32 %v5570, %v2545
      %v5615 = vmul.f32 %v5574, %v2559
      %v5616 = vmul.f32 %v5578, %v2573
      %v5617 = vmul.f32 %v5582, %v2587
      %v5618 = vmul.f32 %v5586, %v2601
      %v5619 = vmul.f32 %v5590, %v2615
      %v5620 = vmul.f32 %v5594, %v2629
      %v5621 = vmul.f32 %v5598, %v2643
      %v5622 = vmul.f32 %v5602, %v2657
      %v5623 = vmul.f32 %v5606, %v2671
      %v5624 = vadd.f32 %v5528, %v5608
      %v5625 = vadd.f32 %v5529, %v5609
      %v5626 = vadd.f32 %v5530, %v5610
      %v5627 = vadd.f32 %v5531, %v5611
      %v5628 = vadd.f32 %v5532, %v5612
      %v5629 = vadd.f32 %v5533, %v5613
      %v5630 = vadd.f32 %v5534, %v5614
      %v5631 = vadd.f32 %v5535, %v5615
      %v5632 = vadd.f32 %v5536, %v5616
      %v5633 = vadd.f32 %v5537, %v5617
      %v5634 = vadd.f32 %v5538, %v5618
      %v5635 = vadd.f32 %v5539, %v5619
      %v5636 = vadd.f32 %v5540, %v5620
      %v5637 = vadd.f32 %v5541, %v5621
      %v5638 = vadd.f32 %v5542, %v5622
      %v5639 = vadd.f32 %v5543, %v5623
      %5640 = vset.pattern.permute.xlu0 4
      %5641 = vperm.xlu0 %5640, %v5014
      %v5642 = vpop.permute.xlu0 %5641
      %5644 = vset.pattern.permute.xlu0 4
      %5645 = vperm.xlu0 %5644, %v5029
      %v5646 = vpop.permute.xlu0 %5645
      %5648 = vset.pattern.permute.xlu0 4
      %5649 = vperm.xlu0 %5648, %v5044
      %v5650 = vpop.permute.xlu0 %5649
      %5652 = vset.pattern.permute.xlu0 4
      %5653 = vperm.xlu0 %5652, %v5059
      %v5654 = vpop.permute.xlu0 %5653
      %5656 = vset.pattern.permute.xlu0 4
      %5657 = vperm.xlu0 %5656, %v5074
      %v5658 = vpop.permute.xlu0 %5657
      %5660 = vset.pattern.permute.xlu0 4
      %5661 = vperm.xlu0 %5660, %v5089
      %v5662 = vpop.permute.xlu0 %5661
      %5664 = vset.pattern.permute.xlu0 4
      %5665 = vperm.xlu0 %5664, %v5104
      %v5666 = vpop.permute.xlu0 %5665
      %5668 = vset.pattern.permute.xlu0 4
      %5669 = vperm.xlu0 %5668, %v5119
      %v5670 = vpop.permute.xlu0 %5669
      %5672 = vset.pattern.permute.xlu0 4
      %5673 = vperm.xlu0 %5672, %v5134
      %v5674 = vpop.permute.xlu0 %5673
      %5676 = vset.pattern.permute.xlu0 4
      %5677 = vperm.xlu0 %5676, %v5149
      %v5678 = vpop.permute.xlu0 %5677
      %5680 = vset.pattern.permute.xlu0 4
      %5681 = vperm.xlu0 %5680, %v5164
      %v5682 = vpop.permute.xlu0 %5681
      %5684 = vset.pattern.permute.xlu0 4
      %5685 = vperm.xlu0 %5684, %v5179
      %v5686 = vpop.permute.xlu0 %5685
      %5688 = vset.pattern.permute.xlu0 4
      %5689 = vperm.xlu0 %5688, %v5194
      %v5690 = vpop.permute.xlu0 %5689
      %5692 = vset.pattern.permute.xlu0 4
      %5693 = vperm.xlu0 %5692, %v5209
      %v5694 = vpop.permute.xlu0 %5693
      %5696 = vset.pattern.permute.xlu0 4
      %5697 = vperm.xlu0 %5696, %v5224
      %v5698 = vpop.permute.xlu0 %5697
      %5700 = vset.pattern.permute.xlu0 4
      %5701 = vperm.xlu0 %5700, %v5239
      %v5702 = vpop.permute.xlu0 %5701
      %v5704 = vmul.f32 %v5642, %v3149
      %v5705 = vmul.f32 %v5646, %v3163
      %v5706 = vmul.f32 %v5650, %v3177
      %v5707 = vmul.f32 %v5654, %v3191
      %v5708 = vmul.f32 %v5658, %v3205
      %v5709 = vmul.f32 %v5662, %v3219
      %v5710 = vmul.f32 %v5666, %v3233
      %v5711 = vmul.f32 %v5670, %v3247
      %v5712 = vmul.f32 %v5674, %v3261
      %v5713 = vmul.f32 %v5678, %v3275
      %v5714 = vmul.f32 %v5682, %v3289
      %v5715 = vmul.f32 %v5686, %v3303
      %v5716 = vmul.f32 %v5690, %v3317
      %v5717 = vmul.f32 %v5694, %v3331
      %v5718 = vmul.f32 %v5698, %v3345
      %v5719 = vmul.f32 %v5702, %v3359
      %v5720 = vadd.f32 %v5624, %v5704
      %v5721 = vadd.f32 %v5625, %v5705
      %v5722 = vadd.f32 %v5626, %v5706
      %v5723 = vadd.f32 %v5627, %v5707
      %v5724 = vadd.f32 %v5628, %v5708
      %v5725 = vadd.f32 %v5629, %v5709
      %v5726 = vadd.f32 %v5630, %v5710
      %v5727 = vadd.f32 %v5631, %v5711
      %v5728 = vadd.f32 %v5632, %v5712
      %v5729 = vadd.f32 %v5633, %v5713
      %v5730 = vadd.f32 %v5634, %v5714
      %v5731 = vadd.f32 %v5635, %v5715
      %v5732 = vadd.f32 %v5636, %v5716
      %v5733 = vadd.f32 %v5637, %v5717
      %v5734 = vadd.f32 %v5638, %v5718
      %v5735 = vadd.f32 %v5639, %v5719
      %5736 = vset.pattern.permute.xlu0 5
      %5737 = vperm.xlu0 %5736, %v5014
      %v5738 = vpop.permute.xlu0 %5737
      %5740 = vset.pattern.permute.xlu0 5
      %5741 = vperm.xlu0 %5740, %v5029
      %v5742 = vpop.permute.xlu0 %5741
      %5744 = vset.pattern.permute.xlu0 5
      %5745 = vperm.xlu0 %5744, %v5044
      %v5746 = vpop.permute.xlu0 %5745
      %5748 = vset.pattern.permute.xlu0 5
      %5749 = vperm.xlu0 %5748, %v5059
      %v5750 = vpop.permute.xlu0 %5749
      %5752 = vset.pattern.permute.xlu0 5
      %5753 = vperm.xlu0 %5752, %v5074
      %v5754 = vpop.permute.xlu0 %5753
      %5756 = vset.pattern.permute.xlu0 5
      %5757 = vperm.xlu0 %5756, %v5089
      %v5758 = vpop.permute.xlu0 %5757
      %5760 = vset.pattern.permute.xlu0 5
      %5761 = vperm.xlu0 %5760, %v5104
      %v5762 = vpop.permute.xlu0 %5761
      %5764 = vset.pattern.permute.xlu0 5
      %5765 = vperm.xlu0 %5764, %v5119
      %v5766 = vpop.permute.xlu0 %5765
      %5768 = vset.pattern.permute.xlu0 5
      %5769 = vperm.xlu0 %5768, %v5134
      %v5770 = vpop.permute.xlu0 %5769
      %5772 = vset.pattern.permute.xlu0 5
      %5773 = vperm.xlu0 %5772, %v5149
      %v5774 = vpop.permute.xlu0 %5773
      %5776 = vset.pattern.permute.xlu0 5
      %5777 = vperm.xlu0 %5776, %v5164
      %v5778 = vpop.permute.xlu0 %5777
      %5780 = vset.pattern.permute.xlu0 5
      %5781 = vperm.xlu0 %5780, %v5179
      %v5782 = vpop.permute.xlu0 %5781
      %5784 = vset.pattern.permute.xlu0 5
      %5785 = vperm.xlu0 %5784, %v5194
      %v5786 = vpop.permute.xlu0 %5785
      %5788 = vset.pattern.permute.xlu0 5
      %5789 = vperm.xlu0 %5788, %v5209
      %v5790 = vpop.permute.xlu0 %5789
      %5792 = vset.pattern.permute.xlu0 5
      %5793 = vperm.xlu0 %5792, %v5224
      %v5794 = vpop.permute.xlu0 %5793
      %5796 = vset.pattern.permute.xlu0 5
      %5797 = vperm.xlu0 %5796, %v5239
      %v5798 = vpop.permute.xlu0 %5797
      %v5800 = vmul.f32 %v5738, %v3453
      %v5801 = vmul.f32 %v5742, %v3467
      %v5802 = vmul.f32 %v5746, %v3481
      %v5803 = vmul.f32 %v5750, %v3495
      %v5804 = vmul.f32 %v5754, %v3509
      %v5805 = vmul.f32 %v5758, %v3523
      %v5806 = vmul.f32 %v5762, %v3537
      %v5807 = vmul.f32 %v5766, %v3551
      %v5808 = vmul.f32 %v5770, %v3565
      %v5809 = vmul.f32 %v5774, %v3579
      %v5810 = vmul.f32 %v5778, %v3593
      %v5811 = vmul.f32 %v5782, %v3607
      %v5812 = vmul.f32 %v5786, %v3621
      %v5813 = vmul.f32 %v5790, %v3635
      %v5814 = vmul.f32 %v5794, %v3649
      %v5815 = vmul.f32 %v5798, %v3663
      %v5816 = vadd.f32 %v5720, %v5800
      %v5817 = vadd.f32 %v5721, %v5801
      %v5818 = vadd.f32 %v5722, %v5802
      %v5819 = vadd.f32 %v5723, %v5803
      %v5820 = vadd.f32 %v5724, %v5804
      %v5821 = vadd.f32 %v5725, %v5805
      %v5822 = vadd.f32 %v5726, %v5806
      %v5823 = vadd.f32 %v5727, %v5807
      %v5824 = vadd.f32 %v5728, %v5808
      %v5825 = vadd.f32 %v5729, %v5809
      %v5826 = vadd.f32 %v5730, %v5810
      %v5827 = vadd.f32 %v5731, %v5811
      %v5828 = vadd.f32 %v5732, %v5812
      %v5829 = vadd.f32 %v5733, %v5813
      %v5830 = vadd.f32 %v5734, %v5814
      %v5831 = vadd.f32 %v5735, %v5815
      %5832 = vset.pattern.permute.xlu0 6
      %5833 = vperm.xlu0 %5832, %v5014
      %v5834 = vpop.permute.xlu0 %5833
      %5836 = vset.pattern.permute.xlu0 6
      %5837 = vperm.xlu0 %5836, %v5029
      %v5838 = vpop.permute.xlu0 %5837
      %5840 = vset.pattern.permute.xlu0 6
      %5841 = vperm.xlu0 %5840, %v5044
      %v5842 = vpop.permute.xlu0 %5841
      %5844 = vset.pattern.permute.xlu0 6
      %5845 = vperm.xlu0 %5844, %v5059
      %v5846 = vpop.permute.xlu0 %5845
      %5848 = vset.pattern.permute.xlu0 6
      %5849 = vperm.xlu0 %5848, %v5074
      %v5850 = vpop.permute.xlu0 %5849
      %5852 = vset.pattern.permute.xlu0 6
      %5853 = vperm.xlu0 %5852, %v5089
      %v5854 = vpop.permute.xlu0 %5853
      %5856 = vset.pattern.permute.xlu0 6
      %5857 = vperm.xlu0 %5856, %v5104
      %v5858 = vpop.permute.xlu0 %5857
      %5860 = vset.pattern.permute.xlu0 6
      %5861 = vperm.xlu0 %5860, %v5119
      %v5862 = vpop.permute.xlu0 %5861
      %5864 = vset.pattern.permute.xlu0 6
      %5865 = vperm.xlu0 %5864, %v5134
      %v5866 = vpop.permute.xlu0 %5865
      %5868 = vset.pattern.permute.xlu0 6
      %5869 = vperm.xlu0 %5868, %v5149
      %v5870 = vpop.permute.xlu0 %5869
      %5872 = vset.pattern.permute.xlu0 6
      %5873 = vperm.xlu0 %5872, %v5164
      %v5874 = vpop.permute.xlu0 %5873
      %5876 = vset.pattern.permute.xlu0 6
      %5877 = vperm.xlu0 %5876, %v5179
      %v5878 = vpop.permute.xlu0 %5877
      %5880 = vset.pattern.permute.xlu0 6
      %5881 = vperm.xlu0 %5880, %v5194
      %v5882 = vpop.permute.xlu0 %5881
      %5884 = vset.pattern.permute.xlu0 6
      %5885 = vperm.xlu0 %5884, %v5209
      %v5886 = vpop.permute.xlu0 %5885
      %5888 = vset.pattern.permute.xlu0 6
      %5889 = vperm.xlu0 %5888, %v5224
      %v5890 = vpop.permute.xlu0 %5889
      %5892 = vset.pattern.permute.xlu0 6
      %5893 = vperm.xlu0 %5892, %v5239
      %v5894 = vpop.permute.xlu0 %5893
      %v5896 = vmul.f32 %v5834, %v4141
      %v5897 = vmul.f32 %v5838, %v4155
      %v5898 = vmul.f32 %v5842, %v4169
      %v5899 = vmul.f32 %v5846, %v4183
      %v5900 = vmul.f32 %v5850, %v4197
      %v5901 = vmul.f32 %v5854, %v4211
      %v5902 = vmul.f32 %v5858, %v4225
      %v5903 = vmul.f32 %v5862, %v4239
      %v5904 = vmul.f32 %v5866, %v4253
      %v5905 = vmul.f32 %v5870, %v4267
      %v5906 = vmul.f32 %v5874, %v4281
      %v5907 = vmul.f32 %v5878, %v4295
      %v5908 = vmul.f32 %v5882, %v4309
      %v5909 = vmul.f32 %v5886, %v4323
      %v5910 = vmul.f32 %v5890, %v4337
      %v5911 = vmul.f32 %v5894, %v4351
      %v5912 = vadd.f32 %v5816, %v5896
      %v5913 = vadd.f32 %v5817, %v5897
      %v5914 = vadd.f32 %v5818, %v5898
      %v5915 = vadd.f32 %v5819, %v5899
      %v5916 = vadd.f32 %v5820, %v5900
      %v5917 = vadd.f32 %v5821, %v5901
      %v5918 = vadd.f32 %v5822, %v5902
      %v5919 = vadd.f32 %v5823, %v5903
      %v5920 = vadd.f32 %v5824, %v5904
      %v5921 = vadd.f32 %v5825, %v5905
      %v5922 = vadd.f32 %v5826, %v5906
      %v5923 = vadd.f32 %v5827, %v5907
      %v5924 = vadd.f32 %v5828, %v5908
      %v5925 = vadd.f32 %v5829, %v5909
      %v5926 = vadd.f32 %v5830, %v5910
      %v5927 = vadd.f32 %v5831, %v5911
      %5928 = vset.pattern.permute.xlu0 7
      %5929 = vperm.xlu0 %5928, %v5014
      %v5930 = vpop.permute.xlu0 %5929
      %5932 = vset.pattern.permute.xlu0 7
      %5933 = vperm.xlu0 %5932, %v5029
      %v5934 = vpop.permute.xlu0 %5933
      %5936 = vset.pattern.permute.xlu0 7
      %5937 = vperm.xlu0 %5936, %v5044
      %v5938 = vpop.permute.xlu0 %5937
      %5940 = vset.pattern.permute.xlu0 7
      %5941 = vperm.xlu0 %5940, %v5059
      %v5942 = vpop.permute.xlu0 %5941
      %5944 = vset.pattern.permute.xlu0 7
      %5945 = vperm.xlu0 %5944, %v5074
      %v5946 = vpop.permute.xlu0 %5945
      %5948 = vset.pattern.permute.xlu0 7
      %5949 = vperm.xlu0 %5948, %v5089
      %v5950 = vpop.permute.xlu0 %5949
      %5952 = vset.pattern.permute.xlu0 7
      %5953 = vperm.xlu0 %5952, %v5104
      %v5954 = vpop.permute.xlu0 %5953
      %5956 = vset.pattern.permute.xlu0 7
      %5957 = vperm.xlu0 %5956, %v5119
      %v5958 = vpop.permute.xlu0 %5957
      %5960 = vset.pattern.permute.xlu0 7
      %5961 = vperm.xlu0 %5960, %v5134
      %v5962 = vpop.permute.xlu0 %5961
      %5964 = vset.pattern.permute.xlu0 7
      %5965 = vperm.xlu0 %5964, %v5149
      %v5966 = vpop.permute.xlu0 %5965
      %5968 = vset.pattern.permute.xlu0 7
      %5969 = vperm.xlu0 %5968, %v5164
      %v5970 = vpop.permute.xlu0 %5969
      %5972 = vset.pattern.permute.xlu0 7
      %5973 = vperm.xlu0 %5972, %v5179
      %v5974 = vpop.permute.xlu0 %5973
      %5976 = vset.pattern.permute.xlu0 7
      %5977 = vperm.xlu0 %5976, %v5194
      %v5978 = vpop.permute.xlu0 %5977
      %5980 = vset.pattern.permute.xlu0 7
      %5981 = vperm.xlu0 %5980, %v5209
      %v5982 = vpop.permute.xlu0 %5981
      %5984 = vset.pattern.permute.xlu0 7
      %5985 = vperm.xlu0 %5984, %v5224
      %v5986 = vpop.permute.xlu0 %5985
      %5988 = vset.pattern.permute.xlu0 7
      %5989 = vperm.xlu0 %5988, %v5239
      %v5990 = vpop.permute.xlu0 %5989
      %v5992 = vmul.f32 %v5930, %v4445
      %v5993 = vmul.f32 %v5934, %v4459
      %v5994 = vmul.f32 %v5938, %v4473
      %v5995 = vmul.f32 %v5942, %v4487
      %v5996 = vmul.f32 %v5946, %v4501
      %v5997 = vmul.f32 %v5950, %v4515
      %v5998 = vmul.f32 %v5954, %v4529
      %v5999 = vmul.f32 %v5958, %v4543
      %v6000 = vmul.f32 %v5962, %v4557
      %v6001 = vmul.f32 %v5966, %v4571
      %v6002 = vmul.f32 %v5970, %v4585
      %v6003 = vmul.f32 %v5974, %v4599
      %v6004 = vmul.f32 %v5978, %v4613
      %v6005 = vmul.f32 %v5982, %v4627
      %v6006 = vmul.f32 %v5986, %v4641
      %v6007 = vmul.f32 %v5990, %v4655
      %v6008 = vadd.f32 %v5912, %v5992
      %v6009 = vadd.f32 %v5913, %v5993
      %v6010 = vadd.f32 %v5914, %v5994
      %v6011 = vadd.f32 %v5915, %v5995
      %v6012 = vadd.f32 %v5916, %v5996
      %v6013 = vadd.f32 %v5917, %v5997
      %v6014 = vadd.f32 %v5918, %v5998
      %v6015 = vadd.f32 %v5919, %v5999
      %v6016 = vadd.f32 %v5920, %v6000
      %v6017 = vadd.f32 %v5921, %v6001
      %v6018 = vadd.f32 %v5922, %v6002
      %v6019 = vadd.f32 %v5923, %v6003
      %v6020 = vadd.f32 %v5924, %v6004
      %v6021 = vadd.f32 %v5925, %v6005
      %v6022 = vadd.f32 %v5926, %v6006
      %v6023 = vadd.f32 %v5927, %v6007
      %v6024 = vld [vmem:[%s442] sm:$0xf]
      %v6025 = vld [vmem:[%s442 + $0x4] sm:$0xf]
      %v6026 = vld [vmem:[%s442 + $0x8] sm:$0xf]
      %v6027 = vld [vmem:[%s442 + $0xc] sm:$0xf]
      %v6028 = vld [vmem:[%s442 + $0x10] sm:$0xf]
      %v6029 = vld [vmem:[%s442 + $0x14] sm:$0xf]
      %v6030 = vld [vmem:[%s442 + $0x18] sm:$0xf]
      %v6031 = vld [vmem:[%s442 + $0x1c] sm:$0xf]
      %v6032 = vld [vmem:[%s442 + $0x20] sm:$0xf]
      %v6033 = vld [vmem:[%s442 + $0x24] sm:$0xf]
      %v6034 = vld [vmem:[%s442 + $0x28] sm:$0xf]
      %v6035 = vld [vmem:[%s442 + $0x2c] sm:$0xf]
      %v6036 = vld [vmem:[%s442 + $0x30] sm:$0xf]
      %v6037 = vld [vmem:[%s442 + $0x34] sm:$0xf]
      %v6038 = vld [vmem:[%s442 + $0x38] sm:$0xf]
      %v6039 = vld [vmem:[%s442 + $0x3c] sm:$0xf]
      %v6040 = vld [vmem:[%s7] sm:$0xf]
      %v6041 = vld [vmem:[%s7 + $0x4] sm:$0xf]
      %v6042 = vld [vmem:[%s8] sm:$0x1]
      %v6044 = vperm.slane %v6042, 0
      %v6062 = vunpack.c.l.b16 %v6024
      %v6063 = vunpack.c.l.b16 %v6025
      %v6064 = vunpack.c.l.b16 %v6026
      %v6065 = vunpack.c.l.b16 %v6027
      %v6066 = vunpack.c.l.b16 %v6028
      %v6067 = vunpack.c.l.b16 %v6029
      %v6068 = vunpack.c.l.b16 %v6030
      %v6069 = vunpack.c.l.b16 %v6031
      %v6070 = vunpack.c.l.b16 %v6032
      %v6071 = vunpack.c.l.b16 %v6033
      %v6072 = vunpack.c.l.b16 %v6034
      %v6073 = vunpack.c.l.b16 %v6035
      %v6074 = vunpack.c.l.b16 %v6036
      %v6075 = vunpack.c.l.b16 %v6037
      %v6076 = vunpack.c.l.b16 %v6038
      %v6077 = vunpack.c.l.b16 %v6039
      %v6078 = vpack.c.b16 %v6063, %v6062
      %v6079 = vpack.c.b16 %v6065, %v6064
      %v6080 = vpack.c.b16 %v6067, %v6066
      %v6081 = vpack.c.b16 %v6069, %v6068
      %v6082 = vpack.c.b16 %v6071, %v6070
      %v6083 = vpack.c.b16 %v6073, %v6072
      %v6084 = vpack.c.b16 %v6075, %v6074
      %v6085 = vpack.c.b16 %v6077, %v6076
      %v6088 = vunpack.c.l.b16 %v6040
      %v6089 = vunpack.c.l.b16 %v6041
      %v6090 = vpack.c.b16 %v6089, %v6088
      %v6093 = vsel %vm541, %v6078, 0
      %v6096 = vsel %vm541, %v6079, 0
      %v6099 = vsel %vm541, %v6080, 0
      %v6102 = vsel %vm541, %v6081, 0
      %v6105 = vsel %vm541, %v6082, 0
      %v6108 = vsel %vm541, %v6083, 0
      %v6111 = vsel %vm541, %v6084, 0
      %v6114 = vsel %vm541, %v6085, 0
      %6116 = vmatpush.bf16.msra.mxu0 0
      %6117 = vmatpush.bf16.msra.mxu0 0
      %6118 = vmatpush.bf16.msra.mxu0 0
      %6119 = vmatpush.bf16.msra.mxu0 0
      %6120 = vmatpush.bf16.msra.mxu0 0
      %6121 = vmatpush.bf16.msra.mxu0 0
      %6122 = vmatpush.bf16.msra.mxu0 0
      %6123 = vmatpush.bf16.msra.mxu0 %v6090
      %6124 = vmatmul.bf16.gmra.mxu0 %v6093
      %v6125 = vpop.f32.mrf.mxu0
      %v6126 = vadd.f32 %v6044, %v6125
      %v6127 = vpop.f32.mrf.mxu0
      %v6128 = vadd.f32 %v6044, %v6127
      %6129 = vmatmul.bf16.gmra.mxu0 %v6096
      %v6130 = vpop.f32.mrf.mxu0
      %v6131 = vadd.f32 %v6044, %v6130
      %v6132 = vpop.f32.mrf.mxu0
      %v6133 = vadd.f32 %v6044, %v6132
      %6134 = vmatmul.bf16.gmra.mxu0 %v6099
      %v6135 = vpop.f32.mrf.mxu0
      %v6136 = vadd.f32 %v6044, %v6135
      %v6137 = vpop.f32.mrf.mxu0
      %v6138 = vadd.f32 %v6044, %v6137
      %6139 = vmatmul.bf16.gmra.mxu0 %v6102
      %v6140 = vpop.f32.mrf.mxu0
      %v6141 = vadd.f32 %v6044, %v6140
      %v6142 = vpop.f32.mrf.mxu0
      %v6143 = vadd.f32 %v6044, %v6142
      %6144 = vmatmul.bf16.gmra.mxu0 %v6105
      %v6145 = vpop.f32.mrf.mxu0
      %v6146 = vadd.f32 %v6044, %v6145
      %v6147 = vpop.f32.mrf.mxu0
      %v6148 = vadd.f32 %v6044, %v6147
      %6149 = vmatmul.bf16.gmra.mxu0 %v6108
      %v6150 = vpop.f32.mrf.mxu0
      %v6151 = vadd.f32 %v6044, %v6150
      %v6152 = vpop.f32.mrf.mxu0
      %v6153 = vadd.f32 %v6044, %v6152
      %6154 = vmatmul.bf16.gmra.mxu0 %v6111
      %v6155 = vpop.f32.mrf.mxu0
      %v6156 = vadd.f32 %v6044, %v6155
      %v6157 = vpop.f32.mrf.mxu0
      %v6158 = vadd.f32 %v6044, %v6157
      %6159 = vmatmul.bf16.gmra.mxu0 %v6114
      %v6160 = vpop.f32.mrf.mxu0
      %v6161 = vadd.f32 %v6044, %v6160
      %v6162 = vpop.f32.mrf.mxu0
      %v6163 = vadd.f32 %v6044, %v6162
      %6164 = vdwg.mxu0
      %v6165 = vpack.c.bf16 %v6009, %v6008
      %v6166 = vpack.c.bf16 %v6011, %v6010
      %v6167 = vpack.c.bf16 %v6013, %v6012
      %v6168 = vpack.c.bf16 %v6015, %v6014
      %v6169 = vpack.c.bf16 %v6017, %v6016
      %v6170 = vpack.c.bf16 %v6019, %v6018
      %v6171 = vpack.c.bf16 %v6021, %v6020
      %v6172 = vpack.c.bf16 %v6023, %v6022
      %v6173 = vld [vmem:[%s9] sm:$0xf]
      %v6174 = vld [vmem:[%s9 + $0x4] sm:$0xf]
      %v6175 = vld [vmem:[%s9 + $0x8] sm:$0xf]
      %v6176 = vld [vmem:[%s9 + $0xc] sm:$0xf]
      %v6177 = vld [vmem:[%s10] sm:$0x1]
      %v6179 = vperm.slane %v6177, 0
      %v6185 = vunpack.c.l.b16 %v6173
      %v6186 = vunpack.c.l.b16 %v6174
      %v6187 = vunpack.c.l.b16 %v6175
      %v6188 = vunpack.c.l.b16 %v6176
      %v6189 = vpack.c.b16 %v6186, %v6185
      %v6190 = vpack.c.b16 %v6188, %v6187
      %v6194 = vsel %vm667, %v6165, 0
      %v6197 = vsel %vm667, %v6166, 0
      %v6200 = vsel %vm667, %v6167, 0
      %v6203 = vsel %vm667, %v6168, 0
      %v6206 = vsel %vm667, %v6169, 0
      %v6209 = vsel %vm667, %v6170, 0
      %v6212 = vsel %vm667, %v6171, 0
      %v6215 = vsel %vm667, %v6172, 0
      %6217 = vmatpush.bf16.msra.mxu0 0
      %6218 = vmatpush.bf16.msra.mxu0 0
      %6219 = vmatpush.bf16.msra.mxu0 0
      %6220 = vmatpush.bf16.msra.mxu0 0
      %6221 = vmatpush.bf16.msra.mxu0 0
      %6222 = vmatpush.bf16.msra.mxu0 0
      %6223 = vmatpush.bf16.msra.mxu0 %v6190
      %6224 = vmatpush.bf16.msra.mxu0 %v6189
      %6225 = vmatmul.bf16.gmra.mxu0 %v6194
      %v6226 = vpop.f32.mrf.mxu0
      %v6227 = vadd.f32 %v6179, %v6226
      %v6228 = vpop.f32.mrf.mxu0
      %v6229 = vadd.f32 %v6179, %v6228
      %6230 = vmatmul.bf16.gmra.mxu0 %v6197
      %v6231 = vpop.f32.mrf.mxu0
      %v6232 = vadd.f32 %v6179, %v6231
      %v6233 = vpop.f32.mrf.mxu0
      %v6234 = vadd.f32 %v6179, %v6233
      %6235 = vmatmul.bf16.gmra.mxu0 %v6200
      %v6236 = vpop.f32.mrf.mxu0
      %v6237 = vadd.f32 %v6179, %v6236
      %v6238 = vpop.f32.mrf.mxu0
      %v6239 = vadd.f32 %v6179, %v6238
      %6240 = vmatmul.bf16.gmra.mxu0 %v6203
      %v6241 = vpop.f32.mrf.mxu0
      %v6242 = vadd.f32 %v6179, %v6241
      %v6243 = vpop.f32.mrf.mxu0
      %v6244 = vadd.f32 %v6179, %v6243
      %6245 = vmatmul.bf16.gmra.mxu0 %v6206
      %v6246 = vpop.f32.mrf.mxu0
      %v6247 = vadd.f32 %v6179, %v6246
      %v6248 = vpop.f32.mrf.mxu0
      %v6249 = vadd.f32 %v6179, %v6248
      %6250 = vmatmul.bf16.gmra.mxu0 %v6209
      %v6251 = vpop.f32.mrf.mxu0
      %v6252 = vadd.f32 %v6179, %v6251
      %v6253 = vpop.f32.mrf.mxu0
      %v6254 = vadd.f32 %v6179, %v6253
      %6255 = vmatmul.bf16.gmra.mxu0 %v6212
      %v6256 = vpop.f32.mrf.mxu0
      %v6257 = vadd.f32 %v6179, %v6256
      %v6258 = vpop.f32.mrf.mxu0
      %v6259 = vadd.f32 %v6179, %v6258
      %6260 = vmatmul.bf16.gmra.mxu0 %v6215
      %v6261 = vpop.f32.mrf.mxu0
      %v6262 = vadd.f32 %v6179, %v6261
      %v6263 = vpop.f32.mrf.mxu0
      %v6264 = vadd.f32 %v6179, %v6263
      %6265 = vdwg.mxu0
      %v6266 = vadd.f32 %v6126, %v6227
      %v6267 = vadd.f32 %v6128, %v6229
      %v6268 = vadd.f32 %v6131, %v6232
      %v6269 = vadd.f32 %v6133, %v6234
      %v6270 = vadd.f32 %v6136, %v6237
      %v6271 = vadd.f32 %v6138, %v6239
      %v6272 = vadd.f32 %v6141, %v6242
      %v6273 = vadd.f32 %v6143, %v6244
      %v6274 = vadd.f32 %v6146, %v6247
      %v6275 = vadd.f32 %v6148, %v6249
      %v6276 = vadd.f32 %v6151, %v6252
      %v6277 = vadd.f32 %v6153, %v6254
      %v6278 = vadd.f32 %v6156, %v6257
      %v6279 = vadd.f32 %v6158, %v6259
      %v6280 = vadd.f32 %v6161, %v6262
      %v6281 = vadd.f32 %v6163, %v6264
      %v6282 = vxor.u32 %v6266, 2147483648
      %v6283 = vxor.u32 %v6267, 2147483648
      %v6284 = vxor.u32 %v6268, 2147483648
      %v6285 = vxor.u32 %v6269, 2147483648
      %v6286 = vxor.u32 %v6270, 2147483648
      %v6287 = vxor.u32 %v6271, 2147483648
      %v6288 = vxor.u32 %v6272, 2147483648
      %v6289 = vxor.u32 %v6273, 2147483648
      %v6290 = vxor.u32 %v6274, 2147483648
      %v6291 = vxor.u32 %v6275, 2147483648
      %v6292 = vxor.u32 %v6276, 2147483648
      %v6293 = vxor.u32 %v6277, 2147483648
      %v6294 = vxor.u32 %v6278, 2147483648
      %v6295 = vxor.u32 %v6279, 2147483648
      %v6296 = vxor.u32 %v6280, 2147483648
      %v6297 = vxor.u32 %v6281, 2147483648
      %v6298 = vmul.f32 %v6282, 1.442695
      %v6299 = vpow.pop %v6298
      %v6300 = vmul.f32 %v6283, 1.442695
      %v6301 = vpow.pop %v6300
      %v6302 = vmul.f32 %v6284, 1.442695
      %v6303 = vpow.pop %v6302
      %v6304 = vmul.f32 %v6285, 1.442695
      %v6305 = vpow.pop %v6304
      %v6306 = vmul.f32 %v6286, 1.442695
      %v6307 = vpow.pop %v6306
      %v6308 = vmul.f32 %v6287, 1.442695
      %v6309 = vpow.pop %v6308
      %v6310 = vmul.f32 %v6288, 1.442695
      %v6311 = vpow.pop %v6310
      %v6312 = vmul.f32 %v6289, 1.442695
      %v6313 = vpow.pop %v6312
      %v6314 = vmul.f32 %v6290, 1.442695
      %v6315 = vpow.pop %v6314
      %v6316 = vmul.f32 %v6291, 1.442695
      %v6317 = vpow.pop %v6316
      %v6318 = vmul.f32 %v6292, 1.442695
      %v6319 = vpow.pop %v6318
      %v6320 = vmul.f32 %v6293, 1.442695
      %v6321 = vpow.pop %v6320
      %v6322 = vmul.f32 %v6294, 1.442695
      %v6323 = vpow.pop %v6322
      %v6324 = vmul.f32 %v6295, 1.442695
      %v6325 = vpow.pop %v6324
      %v6326 = vmul.f32 %v6296, 1.442695
      %v6327 = vpow.pop %v6326
      %v6328 = vmul.f32 %v6297, 1.442695
      %v6329 = vpow.pop %v6328
      %v6330 = vadd.f32 %v6299, 1.0
      %v6331 = vadd.f32 %v6301, 1.0
      %v6332 = vadd.f32 %v6303, 1.0
      %v6333 = vadd.f32 %v6305, 1.0
      %v6334 = vadd.f32 %v6307, 1.0
      %v6335 = vadd.f32 %v6309, 1.0
      %v6336 = vadd.f32 %v6311, 1.0
      %v6337 = vadd.f32 %v6313, 1.0
      %v6338 = vadd.f32 %v6315, 1.0
      %v6339 = vadd.f32 %v6317, 1.0
      %v6340 = vadd.f32 %v6319, 1.0
      %v6341 = vadd.f32 %v6321, 1.0
      %v6342 = vadd.f32 %v6323, 1.0
      %v6343 = vadd.f32 %v6325, 1.0
      %v6344 = vadd.f32 %v6327, 1.0
      %v6345 = vadd.f32 %v6329, 1.0
      %v6346 = vrcp.pop %v6330
      %v6347 = vmul.f32 %v6330, %v6346
      %v6348 = vsub.f32 1.0, %v6347
      %v6349 = vmul.f32 %v6346, %v6348
      %v6350 = vadd.f32 %v6346, %v6349
      %vm6351 = vweird.f32 %v6330
      %vm6352 = vweird.f32 %v6346
      %vm6353 = vmor %vm6351, %vm6352
      %v6354 = vsel %vm6353, %v6346, %v6350
      %v6355 = vand.u32 2147483647, %v6330
      %vm6356 = vcmp.eq.f32.partialorder %v6355, 8.507059e+37
      %v6357 = vand.u32 %v6330, 2147483648
      %v6358 = vor.u32 1.1754944e-38, %v6357
      %v6359 = vsel %vm6356, %v6358, %v6354
      %v6360 = vmul.f32 1.0, %v6359
      %v6361 = vrcp.pop %v6331
      %v6362 = vmul.f32 %v6331, %v6361
      %v6363 = vsub.f32 1.0, %v6362
      %v6364 = vmul.f32 %v6361, %v6363
      %v6365 = vadd.f32 %v6361, %v6364
      %vm6366 = vweird.f32 %v6331
      %vm6367 = vweird.f32 %v6361
      %vm6368 = vmor %vm6366, %vm6367
      %v6369 = vsel %vm6368, %v6361, %v6365
      %v6370 = vand.u32 2147483647, %v6331
      %vm6371 = vcmp.eq.f32.partialorder %v6370, 8.507059e+37
      %v6372 = vand.u32 %v6331, 2147483648
      %v6373 = vor.u32 1.1754944e-38, %v6372
      %v6374 = vsel %vm6371, %v6373, %v6369
      %v6375 = vmul.f32 1.0, %v6374
      %v6376 = vrcp.pop %v6332
      %v6377 = vmul.f32 %v6332, %v6376
      %v6378 = vsub.f32 1.0, %v6377
      %v6379 = vmul.f32 %v6376, %v6378
      %v6380 = vadd.f32 %v6376, %v6379
      %vm6381 = vweird.f32 %v6332
      %vm6382 = vweird.f32 %v6376
      %vm6383 = vmor %vm6381, %vm6382
      %v6384 = vsel %vm6383, %v6376, %v6380
      %v6385 = vand.u32 2147483647, %v6332
      %vm6386 = vcmp.eq.f32.partialorder %v6385, 8.507059e+37
      %v6387 = vand.u32 %v6332, 2147483648
      %v6388 = vor.u32 1.1754944e-38, %v6387
      %v6389 = vsel %vm6386, %v6388, %v6384
      %v6390 = vmul.f32 1.0, %v6389
      %v6391 = vrcp.pop %v6333
      %v6392 = vmul.f32 %v6333, %v6391
      %v6393 = vsub.f32 1.0, %v6392
      %v6394 = vmul.f32 %v6391, %v6393
      %v6395 = vadd.f32 %v6391, %v6394
      %vm6396 = vweird.f32 %v6333
      %vm6397 = vweird.f32 %v6391
      %vm6398 = vmor %vm6396, %vm6397
      %v6399 = vsel %vm6398, %v6391, %v6395
      %v6400 = vand.u32 2147483647, %v6333
      %vm6401 = vcmp.eq.f32.partialorder %v6400, 8.507059e+37
      %v6402 = vand.u32 %v6333, 2147483648
      %v6403 = vor.u32 1.1754944e-38, %v6402
      %v6404 = vsel %vm6401, %v6403, %v6399
      %v6405 = vmul.f32 1.0, %v6404
      %v6406 = vrcp.pop %v6334
      %v6407 = vmul.f32 %v6334, %v6406
      %v6408 = vsub.f32 1.0, %v6407
      %v6409 = vmul.f32 %v6406, %v6408
      %v6410 = vadd.f32 %v6406, %v6409
      %vm6411 = vweird.f32 %v6334
      %vm6412 = vweird.f32 %v6406
      %vm6413 = vmor %vm6411, %vm6412
      %v6414 = vsel %vm6413, %v6406, %v6410
      %v6415 = vand.u32 2147483647, %v6334
      %vm6416 = vcmp.eq.f32.partialorder %v6415, 8.507059e+37
      %v6417 = vand.u32 %v6334, 2147483648
      %v6418 = vor.u32 1.1754944e-38, %v6417
      %v6419 = vsel %vm6416, %v6418, %v6414
      %v6420 = vmul.f32 1.0, %v6419
      %v6421 = vrcp.pop %v6335
      %v6422 = vmul.f32 %v6335, %v6421
      %v6423 = vsub.f32 1.0, %v6422
      %v6424 = vmul.f32 %v6421, %v6423
      %v6425 = vadd.f32 %v6421, %v6424
      %vm6426 = vweird.f32 %v6335
      %vm6427 = vweird.f32 %v6421
      %vm6428 = vmor %vm6426, %vm6427
      %v6429 = vsel %vm6428, %v6421, %v6425
      %v6430 = vand.u32 2147483647, %v6335
      %vm6431 = vcmp.eq.f32.partialorder %v6430, 8.507059e+37
      %v6432 = vand.u32 %v6335, 2147483648
      %v6433 = vor.u32 1.1754944e-38, %v6432
      %v6434 = vsel %vm6431, %v6433, %v6429
      %v6435 = vmul.f32 1.0, %v6434
      %v6436 = vrcp.pop %v6336
      %v6437 = vmul.f32 %v6336, %v6436
      %v6438 = vsub.f32 1.0, %v6437
      %v6439 = vmul.f32 %v6436, %v6438
      %v6440 = vadd.f32 %v6436, %v6439
      %vm6441 = vweird.f32 %v6336
      %vm6442 = vweird.f32 %v6436
      %vm6443 = vmor %vm6441, %vm6442
      %v6444 = vsel %vm6443, %v6436, %v6440
      %v6445 = vand.u32 2147483647, %v6336
      %vm6446 = vcmp.eq.f32.partialorder %v6445, 8.507059e+37
      %v6447 = vand.u32 %v6336, 2147483648
      %v6448 = vor.u32 1.1754944e-38, %v6447
      %v6449 = vsel %vm6446, %v6448, %v6444
      %v6450 = vmul.f32 1.0, %v6449
      %v6451 = vrcp.pop %v6337
      %v6452 = vmul.f32 %v6337, %v6451
      %v6453 = vsub.f32 1.0, %v6452
      %v6454 = vmul.f32 %v6451, %v6453
      %v6455 = vadd.f32 %v6451, %v6454
      %vm6456 = vweird.f32 %v6337
      %vm6457 = vweird.f32 %v6451
      %vm6458 = vmor %vm6456, %vm6457
      %v6459 = vsel %vm6458, %v6451, %v6455
      %v6460 = vand.u32 2147483647, %v6337
      %vm6461 = vcmp.eq.f32.partialorder %v6460, 8.507059e+37
      %v6462 = vand.u32 %v6337, 2147483648
      %v6463 = vor.u32 1.1754944e-38, %v6462
      %v6464 = vsel %vm6461, %v6463, %v6459
      %v6465 = vmul.f32 1.0, %v6464
      %v6466 = vrcp.pop %v6338
      %v6467 = vmul.f32 %v6338, %v6466
      %v6468 = vsub.f32 1.0, %v6467
      %v6469 = vmul.f32 %v6466, %v6468
      %v6470 = vadd.f32 %v6466, %v6469
      %vm6471 = vweird.f32 %v6338
      %vm6472 = vweird.f32 %v6466
      %vm6473 = vmor %vm6471, %vm6472
      %v6474 = vsel %vm6473, %v6466, %v6470
      %v6475 = vand.u32 2147483647, %v6338
      %vm6476 = vcmp.eq.f32.partialorder %v6475, 8.507059e+37
      %v6477 = vand.u32 %v6338, 2147483648
      %v6478 = vor.u32 1.1754944e-38, %v6477
      %v6479 = vsel %vm6476, %v6478, %v6474
      %v6480 = vmul.f32 1.0, %v6479
      %v6481 = vrcp.pop %v6339
      %v6482 = vmul.f32 %v6339, %v6481
      %v6483 = vsub.f32 1.0, %v6482
      %v6484 = vmul.f32 %v6481, %v6483
      %v6485 = vadd.f32 %v6481, %v6484
      %vm6486 = vweird.f32 %v6339
      %vm6487 = vweird.f32 %v6481
      %vm6488 = vmor %vm6486, %vm6487
      %v6489 = vsel %vm6488, %v6481, %v6485
      %v6490 = vand.u32 2147483647, %v6339
      %vm6491 = vcmp.eq.f32.partialorder %v6490, 8.507059e+37
      %v6492 = vand.u32 %v6339, 2147483648
      %v6493 = vor.u32 1.1754944e-38, %v6492
      %v6494 = vsel %vm6491, %v6493, %v6489
      %v6495 = vmul.f32 1.0, %v6494
      %v6496 = vrcp.pop %v6340
      %v6497 = vmul.f32 %v6340, %v6496
      %v6498 = vsub.f32 1.0, %v6497
      %v6499 = vmul.f32 %v6496, %v6498
      %v6500 = vadd.f32 %v6496, %v6499
      %vm6501 = vweird.f32 %v6340
      %vm6502 = vweird.f32 %v6496
      %vm6503 = vmor %vm6501, %vm6502
      %v6504 = vsel %vm6503, %v6496, %v6500
      %v6505 = vand.u32 2147483647, %v6340
      %vm6506 = vcmp.eq.f32.partialorder %v6505, 8.507059e+37
      %v6507 = vand.u32 %v6340, 2147483648
      %v6508 = vor.u32 1.1754944e-38, %v6507
      %v6509 = vsel %vm6506, %v6508, %v6504
      %v6510 = vmul.f32 1.0, %v6509
      %v6511 = vrcp.pop %v6341
      %v6512 = vmul.f32 %v6341, %v6511
      %v6513 = vsub.f32 1.0, %v6512
      %v6514 = vmul.f32 %v6511, %v6513
      %v6515 = vadd.f32 %v6511, %v6514
      %vm6516 = vweird.f32 %v6341
      %vm6517 = vweird.f32 %v6511
      %vm6518 = vmor %vm6516, %vm6517
      %v6519 = vsel %vm6518, %v6511, %v6515
      %v6520 = vand.u32 2147483647, %v6341
      %vm6521 = vcmp.eq.f32.partialorder %v6520, 8.507059e+37
      %v6522 = vand.u32 %v6341, 2147483648
      %v6523 = vor.u32 1.1754944e-38, %v6522
      %v6524 = vsel %vm6521, %v6523, %v6519
      %v6525 = vmul.f32 1.0, %v6524
      %v6526 = vrcp.pop %v6342
      %v6527 = vmul.f32 %v6342, %v6526
      %v6528 = vsub.f32 1.0, %v6527
      %v6529 = vmul.f32 %v6526, %v6528
      %v6530 = vadd.f32 %v6526, %v6529
      %vm6531 = vweird.f32 %v6342
      %vm6532 = vweird.f32 %v6526
      %vm6533 = vmor %vm6531, %vm6532
      %v6534 = vsel %vm6533, %v6526, %v6530
      %v6535 = vand.u32 2147483647, %v6342
      %vm6536 = vcmp.eq.f32.partialorder %v6535, 8.507059e+37
      %v6537 = vand.u32 %v6342, 2147483648
      %v6538 = vor.u32 1.1754944e-38, %v6537
      %v6539 = vsel %vm6536, %v6538, %v6534
      %v6540 = vmul.f32 1.0, %v6539
      %v6541 = vrcp.pop %v6343
      %v6542 = vmul.f32 %v6343, %v6541
      %v6543 = vsub.f32 1.0, %v6542
      %v6544 = vmul.f32 %v6541, %v6543
      %v6545 = vadd.f32 %v6541, %v6544
      %vm6546 = vweird.f32 %v6343
      %vm6547 = vweird.f32 %v6541
      %vm6548 = vmor %vm6546, %vm6547
      %v6549 = vsel %vm6548, %v6541, %v6545
      %v6550 = vand.u32 2147483647, %v6343
      %vm6551 = vcmp.eq.f32.partialorder %v6550, 8.507059e+37
      %v6552 = vand.u32 %v6343, 2147483648
      %v6553 = vor.u32 1.1754944e-38, %v6552
      %v6554 = vsel %vm6551, %v6553, %v6549
      %v6555 = vmul.f32 1.0, %v6554
      %v6556 = vrcp.pop %v6344
      %v6557 = vmul.f32 %v6344, %v6556
      %v6558 = vsub.f32 1.0, %v6557
      %v6559 = vmul.f32 %v6556, %v6558
      %v6560 = vadd.f32 %v6556, %v6559
      %vm6561 = vweird.f32 %v6344
      %vm6562 = vweird.f32 %v6556
      %vm6563 = vmor %vm6561, %vm6562
      %v6564 = vsel %vm6563, %v6556, %v6560
      %v6565 = vand.u32 2147483647, %v6344
      %vm6566 = vcmp.eq.f32.partialorder %v6565, 8.507059e+37
      %v6567 = vand.u32 %v6344, 2147483648
      %v6568 = vor.u32 1.1754944e-38, %v6567
      %v6569 = vsel %vm6566, %v6568, %v6564
      %v6570 = vmul.f32 1.0, %v6569
      %v6571 = vrcp.pop %v6345
      %v6572 = vmul.f32 %v6345, %v6571
      %v6573 = vsub.f32 1.0, %v6572
      %v6574 = vmul.f32 %v6571, %v6573
      %v6575 = vadd.f32 %v6571, %v6574
      %vm6576 = vweird.f32 %v6345
      %vm6577 = vweird.f32 %v6571
      %vm6578 = vmor %vm6576, %vm6577
      %v6579 = vsel %vm6578, %v6571, %v6575
      %v6580 = vand.u32 2147483647, %v6345
      %vm6581 = vcmp.eq.f32.partialorder %v6580, 8.507059e+37
      %v6582 = vand.u32 %v6345, 2147483648
      %v6583 = vor.u32 1.1754944e-38, %v6582
      %v6584 = vsel %vm6581, %v6583, %v6579
      %v6585 = vmul.f32 1.0, %v6584
      %6602 = vrot.lane.b32.xlu0 %v6227, 64
      %v6603 = vpop.permute.xlu0 %6602
      %6604 = vrot.lane.b32.xlu0 %v6229, 64
      %v6605 = vpop.permute.xlu0 %6604
      %6606 = vrot.lane.b32.xlu0 %v6232, 64
      %v6607 = vpop.permute.xlu0 %6606
      %6608 = vrot.lane.b32.xlu0 %v6234, 64
      %v6609 = vpop.permute.xlu0 %6608
      %6610 = vrot.lane.b32.xlu0 %v6237, 64
      %v6611 = vpop.permute.xlu0 %6610
      %6612 = vrot.lane.b32.xlu0 %v6239, 64
      %v6613 = vpop.permute.xlu0 %6612
      %6614 = vrot.lane.b32.xlu0 %v6242, 64
      %v6615 = vpop.permute.xlu0 %6614
      %6616 = vrot.lane.b32.xlu0 %v6244, 64
      %v6617 = vpop.permute.xlu0 %6616
      %6618 = vrot.lane.b32.xlu0 %v6247, 64
      %v6619 = vpop.permute.xlu0 %6618
      %6620 = vrot.lane.b32.xlu0 %v6249, 64
      %v6621 = vpop.permute.xlu0 %6620
      %6622 = vrot.lane.b32.xlu0 %v6252, 64
      %v6623 = vpop.permute.xlu0 %6622
      %6624 = vrot.lane.b32.xlu0 %v6254, 64
      %v6625 = vpop.permute.xlu0 %6624
      %6626 = vrot.lane.b32.xlu0 %v6257, 64
      %v6627 = vpop.permute.xlu0 %6626
      %6628 = vrot.lane.b32.xlu0 %v6259, 64
      %v6629 = vpop.permute.xlu0 %6628
      %6630 = vrot.lane.b32.xlu0 %v6262, 64
      %v6631 = vpop.permute.xlu0 %6630
      %6632 = vrot.lane.b32.xlu0 %v6264, 64
      %v6633 = vpop.permute.xlu0 %6632
      %v6650 = vmul.f32 %v6360, %v6603
      %v6651 = vmul.f32 %v6375, %v6605
      %v6652 = vmul.f32 %v6390, %v6607
      %v6653 = vmul.f32 %v6405, %v6609
      %v6654 = vmul.f32 %v6420, %v6611
      %v6655 = vmul.f32 %v6435, %v6613
      %v6656 = vmul.f32 %v6450, %v6615
      %v6657 = vmul.f32 %v6465, %v6617
      %v6658 = vmul.f32 %v6480, %v6619
      %v6659 = vmul.f32 %v6495, %v6621
      %v6660 = vmul.f32 %v6510, %v6623
      %v6661 = vmul.f32 %v6525, %v6625
      %v6662 = vmul.f32 %v6540, %v6627
      %v6663 = vmul.f32 %v6555, %v6629
      %v6664 = vmul.f32 %v6570, %v6631
      %v6665 = vmul.f32 %v6585, %v6633
      %6682 = vrot.lane.b32.xlu0 %v6650, 64
      %v6683 = vpop.permute.xlu0 %6682
      %6684 = vrot.lane.b32.xlu0 %v6651, 64
      %v6685 = vpop.permute.xlu0 %6684
      %6686 = vrot.lane.b32.xlu0 %v6652, 64
      %v6687 = vpop.permute.xlu0 %6686
      %6688 = vrot.lane.b32.xlu0 %v6653, 64
      %v6689 = vpop.permute.xlu0 %6688
      %6690 = vrot.lane.b32.xlu0 %v6654, 64
      %v6691 = vpop.permute.xlu0 %6690
      %6692 = vrot.lane.b32.xlu0 %v6655, 64
      %v6693 = vpop.permute.xlu0 %6692
      %6694 = vrot.lane.b32.xlu0 %v6656, 64
      %v6695 = vpop.permute.xlu0 %6694
      %6696 = vrot.lane.b32.xlu0 %v6657, 64
      %v6697 = vpop.permute.xlu0 %6696
      %6698 = vrot.lane.b32.xlu0 %v6658, 64
      %v6699 = vpop.permute.xlu0 %6698
      %6700 = vrot.lane.b32.xlu0 %v6659, 64
      %v6701 = vpop.permute.xlu0 %6700
      %6702 = vrot.lane.b32.xlu0 %v6660, 64
      %v6703 = vpop.permute.xlu0 %6702
      %6704 = vrot.lane.b32.xlu0 %v6661, 64
      %v6705 = vpop.permute.xlu0 %6704
      %6706 = vrot.lane.b32.xlu0 %v6662, 64
      %v6707 = vpop.permute.xlu0 %6706
      %6708 = vrot.lane.b32.xlu0 %v6663, 64
      %v6709 = vpop.permute.xlu0 %6708
      %6710 = vrot.lane.b32.xlu0 %v6664, 64
      %v6711 = vpop.permute.xlu0 %6710
      %6712 = vrot.lane.b32.xlu0 %v6665, 64
      %v6713 = vpop.permute.xlu0 %6712
      %v6730 = vadd.f32 %v6126, %v6683
      %v6731 = vadd.f32 %v6128, %v6685
      %v6732 = vadd.f32 %v6131, %v6687
      %v6733 = vadd.f32 %v6133, %v6689
      %v6734 = vadd.f32 %v6136, %v6691
      %v6735 = vadd.f32 %v6138, %v6693
      %v6736 = vadd.f32 %v6141, %v6695
      %v6737 = vadd.f32 %v6143, %v6697
      %v6738 = vadd.f32 %v6146, %v6699
      %v6739 = vadd.f32 %v6148, %v6701
      %v6740 = vadd.f32 %v6151, %v6703
      %v6741 = vadd.f32 %v6153, %v6705
      %v6742 = vadd.f32 %v6156, %v6707
      %v6743 = vadd.f32 %v6158, %v6709
      %v6744 = vadd.f32 %v6161, %v6711
      %v6745 = vadd.f32 %v6163, %v6713
      %v6746 = vtanh.pop %v6730
      %v6747 = vtanh.pop %v6731
      %v6748 = vtanh.pop %v6732
      %v6749 = vtanh.pop %v6733
      %v6750 = vtanh.pop %v6734
      %v6751 = vtanh.pop %v6735
      %v6752 = vtanh.pop %v6736
      %v6753 = vtanh.pop %v6737
      %v6754 = vtanh.pop %v6738
      %v6755 = vtanh.pop %v6739
      %v6756 = vtanh.pop %v6740
      %v6757 = vtanh.pop %v6741
      %v6758 = vtanh.pop %v6742
      %v6759 = vtanh.pop %v6743
      %v6760 = vtanh.pop %v6744
      %v6761 = vtanh.pop %v6745
      %v6762 = vsub.f32 1.0, %v6360
      %v6763 = vsub.f32 1.0, %v6375
      %v6764 = vsub.f32 1.0, %v6390
      %v6765 = vsub.f32 1.0, %v6405
      %v6766 = vsub.f32 1.0, %v6420
      %v6767 = vsub.f32 1.0, %v6435
      %v6768 = vsub.f32 1.0, %v6450
      %v6769 = vsub.f32 1.0, %v6465
      %v6770 = vsub.f32 1.0, %v6480
      %v6771 = vsub.f32 1.0, %v6495
      %v6772 = vsub.f32 1.0, %v6510
      %v6773 = vsub.f32 1.0, %v6525
      %v6774 = vsub.f32 1.0, %v6540
      %v6775 = vsub.f32 1.0, %v6555
      %v6776 = vsub.f32 1.0, %v6570
      %v6777 = vsub.f32 1.0, %v6585
      %6794 = vrot.lane.b32.xlu0 %v6746, 96
      %v6795 = vpop.permute.xlu0 %6794
      %6796 = vrot.lane.b32.xlu0 %v6747, 96
      %v6797 = vpop.permute.xlu0 %6796
      %6798 = vrot.lane.b32.xlu0 %v6748, 96
      %v6799 = vpop.permute.xlu0 %6798
      %6800 = vrot.lane.b32.xlu0 %v6749, 96
      %v6801 = vpop.permute.xlu0 %6800
      %6802 = vrot.lane.b32.xlu0 %v6750, 96
      %v6803 = vpop.permute.xlu0 %6802
      %6804 = vrot.lane.b32.xlu0 %v6751, 96
      %v6805 = vpop.permute.xlu0 %6804
      %6806 = vrot.lane.b32.xlu0 %v6752, 96
      %v6807 = vpop.permute.xlu0 %6806
      %6808 = vrot.lane.b32.xlu0 %v6753, 96
      %v6809 = vpop.permute.xlu0 %6808
      %6810 = vrot.lane.b32.xlu0 %v6754, 96
      %v6811 = vpop.permute.xlu0 %6810
      %6812 = vrot.lane.b32.xlu0 %v6755, 96
      %v6813 = vpop.permute.xlu0 %6812
      %6814 = vrot.lane.b32.xlu0 %v6756, 96
      %v6815 = vpop.permute.xlu0 %6814
      %6816 = vrot.lane.b32.xlu0 %v6757, 96
      %v6817 = vpop.permute.xlu0 %6816
      %6818 = vrot.lane.b32.xlu0 %v6758, 96
      %v6819 = vpop.permute.xlu0 %6818
      %6820 = vrot.lane.b32.xlu0 %v6759, 96
      %v6821 = vpop.permute.xlu0 %6820
      %6822 = vrot.lane.b32.xlu0 %v6760, 96
      %v6823 = vpop.permute.xlu0 %6822
      %6824 = vrot.lane.b32.xlu0 %v6761, 96
      %v6825 = vpop.permute.xlu0 %6824
      %v6842 = vmul.f32 %v6762, %v6795
      %v6843 = vmul.f32 %v6763, %v6797
      %v6844 = vmul.f32 %v6764, %v6799
      %v6845 = vmul.f32 %v6765, %v6801
      %v6846 = vmul.f32 %v6766, %v6803
      %v6847 = vmul.f32 %v6767, %v6805
      %v6848 = vmul.f32 %v6768, %v6807
      %v6849 = vmul.f32 %v6769, %v6809
      %v6850 = vmul.f32 %v6770, %v6811
      %v6851 = vmul.f32 %v6771, %v6813
      %v6852 = vmul.f32 %v6772, %v6815
      %v6853 = vmul.f32 %v6773, %v6817
      %v6854 = vmul.f32 %v6774, %v6819
      %v6855 = vmul.f32 %v6775, %v6821
      %v6856 = vmul.f32 %v6776, %v6823
      %v6857 = vmul.f32 %v6777, %v6825
      %6874 = vrot.lane.b32.xlu0 %v6008, 32
      %v6875 = vpop.permute.xlu0 %6874
      %6876 = vrot.lane.b32.xlu0 %v6009, 32
      %v6877 = vpop.permute.xlu0 %6876
      %6878 = vrot.lane.b32.xlu0 %v6010, 32
      %v6879 = vpop.permute.xlu0 %6878
      %6880 = vrot.lane.b32.xlu0 %v6011, 32
      %v6881 = vpop.permute.xlu0 %6880
      %6882 = vrot.lane.b32.xlu0 %v6012, 32
      %v6883 = vpop.permute.xlu0 %6882
      %6884 = vrot.lane.b32.xlu0 %v6013, 32
      %v6885 = vpop.permute.xlu0 %6884
      %6886 = vrot.lane.b32.xlu0 %v6014, 32
      %v6887 = vpop.permute.xlu0 %6886
      %6888 = vrot.lane.b32.xlu0 %v6015, 32
      %v6889 = vpop.permute.xlu0 %6888
      %6890 = vrot.lane.b32.xlu0 %v6016, 32
      %v6891 = vpop.permute.xlu0 %6890
      %6892 = vrot.lane.b32.xlu0 %v6017, 32
      %v6893 = vpop.permute.xlu0 %6892
      %6894 = vrot.lane.b32.xlu0 %v6018, 32
      %v6895 = vpop.permute.xlu0 %6894
      %6896 = vrot.lane.b32.xlu0 %v6019, 32
      %v6897 = vpop.permute.xlu0 %6896
      %6898 = vrot.lane.b32.xlu0 %v6020, 32
      %v6899 = vpop.permute.xlu0 %6898
      %6900 = vrot.lane.b32.xlu0 %v6021, 32
      %v6901 = vpop.permute.xlu0 %6900
      %6902 = vrot.lane.b32.xlu0 %v6022, 32
      %v6903 = vpop.permute.xlu0 %6902
      %6904 = vrot.lane.b32.xlu0 %v6023, 32
      %v6905 = vpop.permute.xlu0 %6904
      %v6922 = vmul.f32 %v6360, %v6875
      %v6923 = vmul.f32 %v6375, %v6877
      %v6924 = vmul.f32 %v6390, %v6879
      %v6925 = vmul.f32 %v6405, %v6881
      %v6926 = vmul.f32 %v6420, %v6883
      %v6927 = vmul.f32 %v6435, %v6885
      %v6928 = vmul.f32 %v6450, %v6887
      %v6929 = vmul.f32 %v6465, %v6889
      %v6930 = vmul.f32 %v6480, %v6891
      %v6931 = vmul.f32 %v6495, %v6893
      %v6932 = vmul.f32 %v6510, %v6895
      %v6933 = vmul.f32 %v6525, %v6897
      %v6934 = vmul.f32 %v6540, %v6899
      %v6935 = vmul.f32 %v6555, %v6901
      %v6936 = vmul.f32 %v6570, %v6903
      %v6937 = vmul.f32 %v6585, %v6905
      %v6938 = vadd.f32 %v6842, %v6922
      %v6939 = vadd.f32 %v6843, %v6923
      %v6940 = vadd.f32 %v6844, %v6924
      %v6941 = vadd.f32 %v6845, %v6925
      %v6942 = vadd.f32 %v6846, %v6926
      %v6943 = vadd.f32 %v6847, %v6927
      %v6944 = vadd.f32 %v6848, %v6928
      %v6945 = vadd.f32 %v6849, %v6929
      %v6946 = vadd.f32 %v6850, %v6930
      %v6947 = vadd.f32 %v6851, %v6931
      %v6948 = vadd.f32 %v6852, %v6932
      %v6949 = vadd.f32 %v6853, %v6933
      %v6950 = vadd.f32 %v6854, %v6934
      %v6951 = vadd.f32 %v6855, %v6935
      %v6952 = vadd.f32 %v6856, %v6936
      %v6953 = vadd.f32 %v6857, %v6937
      %6970 = vrot.lane.b32.xlu0 %v6938, 96
      %v6971 = vpop.permute.xlu0 %6970
      %6972 = vrot.lane.b32.xlu0 %v6939, 96
      %v6973 = vpop.permute.xlu0 %6972
      %6974 = vrot.lane.b32.xlu0 %v6940, 96
      %v6975 = vpop.permute.xlu0 %6974
      %6976 = vrot.lane.b32.xlu0 %v6941, 96
      %v6977 = vpop.permute.xlu0 %6976
      %6978 = vrot.lane.b32.xlu0 %v6942, 96
      %v6979 = vpop.permute.xlu0 %6978
      %6980 = vrot.lane.b32.xlu0 %v6943, 96
      %v6981 = vpop.permute.xlu0 %6980
      %6982 = vrot.lane.b32.xlu0 %v6944, 96
      %v6983 = vpop.permute.xlu0 %6982
      %6984 = vrot.lane.b32.xlu0 %v6945, 96
      %v6985 = vpop.permute.xlu0 %6984
      %6986 = vrot.lane.b32.xlu0 %v6946, 96
      %v6987 = vpop.permute.xlu0 %6986
      %6988 = vrot.lane.b32.xlu0 %v6947, 96
      %v6989 = vpop.permute.xlu0 %6988
      %6990 = vrot.lane.b32.xlu0 %v6948, 96
      %v6991 = vpop.permute.xlu0 %6990
      %6992 = vrot.lane.b32.xlu0 %v6949, 96
      %v6993 = vpop.permute.xlu0 %6992
      %6994 = vrot.lane.b32.xlu0 %v6950, 96
      %v6995 = vpop.permute.xlu0 %6994
      %6996 = vrot.lane.b32.xlu0 %v6951, 96
      %v6997 = vpop.permute.xlu0 %6996
      %6998 = vrot.lane.b32.xlu0 %v6952, 96
      %v6999 = vpop.permute.xlu0 %6998
      %7000 = vrot.lane.b32.xlu0 %v6953, 96
      %v7001 = vpop.permute.xlu0 %7000
      %7018 = vst.msk [vmem:[%s454] sm:$0xff] %vm667, %v6971
      %7019 = vst.msk [vmem:[%s454 + $0x8] sm:$0xff] %vm667, %v6973
      %7020 = vst.msk [vmem:[%s454 + $0x10] sm:$0xff] %vm667, %v6975
      %7021 = vst.msk [vmem:[%s454 + $0x18] sm:$0xff] %vm667, %v6977
      %7022 = vst.msk [vmem:[%s454 + $0x20] sm:$0xff] %vm667, %v6979
      %7023 = vst.msk [vmem:[%s454 + $0x28] sm:$0xff] %vm667, %v6981
      %7024 = vst.msk [vmem:[%s454 + $0x30] sm:$0xff] %vm667, %v6983
      %7025 = vst.msk [vmem:[%s454 + $0x38] sm:$0xff] %vm667, %v6985
      %7026 = vst.msk [vmem:[%s454 + $0x40] sm:$0xff] %vm667, %v6987
      %7027 = vst.msk [vmem:[%s454 + $0x48] sm:$0xff] %vm667, %v6989
      %7028 = vst.msk [vmem:[%s454 + $0x50] sm:$0xff] %vm667, %v6991
      %7029 = vst.msk [vmem:[%s454 + $0x58] sm:$0xff] %vm667, %v6993
      %7030 = vst.msk [vmem:[%s454 + $0x60] sm:$0xff] %vm667, %v6995
      %7031 = vst.msk [vmem:[%s454 + $0x68] sm:$0xff] %vm667, %v6997
      %7032 = vst.msk [vmem:[%s454 + $0x70] sm:$0xff] %vm667, %v6999
      %7033 = vst.msk [vmem:[%s454 + $0x78] sm:$0xff] %vm667, %v7001
      %s7034 = smul.u32 16, %s22
      %p7035 = scmp.lt.s32.totalorder %s7034, 31
      %s7036 = scalar_select %p7035, %s7034, 31
      %s7037 = smul.addr %s7036, 8
      %s7038 = scalar_lea.vmem %s11, %s7037
      // Predicated region
      $region65: #{tree_rnn_cell_gru.1} parent=63 // pred_check
        %p7039 = pneg %p291
      $region66: #{tree_rnn_cell_gru.1} parent=63 // pred_check_branch
        %7041 = sbr.rel (%p7039) target = $region68
      $region67: #{tree_rnn_cell_gru.1} parent=63 // pred_region
        %s7042 = smul.u32 16, %s22
      $region68: #{tree_rnn_cell_gru.1} parent=63 // pred_fallthru
        _
    $region64: #{tree_rnn_cell_gru.1} parent=5 // pred_fallthru
      _
    %p7043 = scmp.le.s32.totalorder 2, %s17
    // Predicated region
    $region69: #{tree_rnn_cell_gru.1} parent=5 // pred_check
      %p7044 = pneg %p7043
    $region70: #{tree_rnn_cell_gru.1} parent=5 // pred_check_branch
      %7046 = sbr.rel (%p7044) target = $region72
    $region71: #{tree_rnn_cell_gru.1} parent=5 // pred_region
      %s7047 = ssub.s32 %s17, 2
      // Predicated region
      $region73: #{tree_rnn_cell_gru.1} parent=71 // pred_check
        %p7048 = pneg %p297
      $region74: #{tree_rnn_cell_gru.1} parent=71 // pred_check_branch
        %7050 = sbr.rel (%p7048) target = $region76
      $region75: #{tree_rnn_cell_gru.1} parent=71 // pred_region
        %s7051 = smul.u32 16, %s23
        %p7052 = scmp.lt.s32.totalorder %s7051, 31
        %s7053 = scalar_select %p7052, %s7051, 31
        %s7054 = smul.addr %s7053, 8
        %s7055 = scalar_lea.vmem %s11, %s7054
      $region76: #{tree_rnn_cell_gru.1} parent=71 // pred_fallthru
        _
    $region72: #{tree_rnn_cell_gru.1} parent=5 // pred_fallthru
      _
  $region6: #{tree_rnn_cell_gru.1} parent=0 // loop_footer
    %s21 = sadd.s32 1, %s17
  $region7: #{tree_rnn_cell_gru.1} parent=0 // loop_footer_branch
    %16 = sbr.rel target = $region3
  $region8: #{tree_rnn_cell_gru.1} parent=0 // loop_exit
    _

</llo_original>
